<compile_context>
chip_gen: v6e
topology: v6e:2x2x1
jax: 0.10.0
libtpu: 0.0.40
codegen_flags: <defaults>
</compile_context>

<pallas_src>
import jax
import jax.numpy as jnp
from jax.experimental import pallas as pl
from jax.experimental.pallas import tpu as pltpu

CAT_DIM = 2           # categorical_dim
CAT_LATENT = 1        # categorical_latent_dim
CONT_LATENT = 1       # continous_latent_dim
IN_DIM = 784
OUT_PAD = 896         # 7 * 128: lane-dense padded width for the recon output
GUMBEL_EPS = 1e-20
SUBLANE = 8


def _vae_kernel(inv_temp_ref, x_ref, g_ref,
                w1_ref, b1_ref, w2_ref, b2_ref, w3t_ref, b3_ref,
                w4_ref, b4_ref, w5_ref, b5_ref, w6_ref, b6_ref,
                w7z_ref, w7c_ref, b7_ref,
                recon_ref, qyc_ref):
    relu = lambda v: jnp.maximum(v, 0.0)

    def mxu(h, w_ref, b_ref):
        # Large layers: bf16 operands on the MXU, f32 accumulate, f32 bias add.
        return jnp.dot(h.astype(jnp.bfloat16), w_ref[...],
                       preferred_element_type=jnp.float32) + b_ref[...]

    x = x_ref[...]                                              # [B, 784] f32

    # ---- encode(x) == encode_continous(x): relu(fc3(relu(fc2(relu(fc1(x)))))) ----
    h1 = relu(mxu(x, w1_ref, b1_ref))                           # [B, 512]
    h2 = relu(mxu(h1, w2_ref, b2_ref))                          # [B, 256]

    # fc3 (256 -> 2) is a degenerate N=2 matmul: do it on the VPU + lane-reduce
    # (XLU) one output column at a time, using the transposed weight rows.
    q0 = jnp.sum(h2 * w3t_ref[0:1, :], axis=-1, keepdims=True)  # [B, 1]
    q1 = jnp.sum(h2 * w3t_ref[1:2, :], axis=-1, keepdims=True)  # [B, 1]
    q0 = relu(q0 + b3_ref[0:1, 0:1])
    q1 = relu(q1 + b3_ref[0:1, 1:2])        # q == q_c (same weights & same input)

    # ---- gumbel_softmax(q, temp), straight-through ----
    # Forward value of the straight-through estimator is exactly the hard one-hot
    # and argmax(softmax(s)) == argmax(s), so only the scaled logits are needed.
    inv_temp = inv_temp_ref[0, 0]
    s0 = (q0 + g_ref[:, 0:1]) * inv_temp
    s1 = (q1 + g_ref[:, 1:2]) * inv_temp
    z0 = (s0 >= s1).astype(jnp.float32)                         # first-max tie-break
    z1 = 1.0 - z0                                               # z = [z0, z1] one-hot

    # ---- fc7(cat([z, q_c], dim=1)): K=4, N=2 -> expand the dot on the VPU ----
    q_yc = (z0 * w7z_ref[0:1, :] + z1 * w7z_ref[1:2, :]
            + q0 * w7c_ref[0:1, :] + q1 * w7c_ref[1:2, :]
            + b7_ref[...])                                      # [B, 2]
    qyc_ref[...] = q_yc

    # ---- decode(z): sigmoid(fc6(relu(fc5(relu(fc4(z)))))) ----
    # fc4 (2 -> 256): K=2 matmul expanded as a multiply-add row combine (VPU);
    # exactly z @ W4 (and a pure row-select since z is one-hot).
    h4 = relu(z0 * w4_ref[0:1, :] + z1 * w4_ref[1:2, :] + b4_ref[...])  # [B, 256]
    h5 = relu(mxu(h4, w5_ref, b5_ref))                          # [B, 512]
    logits = mxu(h5, w6_ref, b6_ref)                            # [B, 896] lane-dense
    # sigmoid via the EUP: sigmoid(x) = 0.5 * tanh(0.5 * x) + 0.5
    recon_ref[...] = 0.5 * jnp.tanh(0.5 * logits) + 0.5


def _init_linear(key, in_dim, out_dim):
    # Deterministic PyTorch-style uniform(-1/sqrt(in), 1/sqrt(in)) init.
    kw, kb = jax.random.split(key)
    bound = 1.0 / (in_dim ** 0.5)
    w = jax.random.uniform(kw, (in_dim, out_dim), jnp.float32, -bound, bound)
    b = jax.random.uniform(kb, (1, out_dim), jnp.float32, -bound, bound)
    return w, b


def init_vae_params(key):
    keys = jax.random.split(key, 7)
    lc = CAT_LATENT * CAT_DIM
    p = {}
    p["fc1"] = _init_linear(keys[0], IN_DIM, 512)
    p["fc2"] = _init_linear(keys[1], 512, 256)
    p["fc3"] = _init_linear(keys[2], 256, lc)
    p["fc4"] = _init_linear(keys[3], lc, 256)       # see TODO(synk) above
    p["fc5"] = _init_linear(keys[4], 256, 512)
    p["fc6"] = _init_linear(keys[5], 512, IN_DIM)
    p["fc7"] = _init_linear(keys[6], 2 * lc, 2 * CONT_LATENT)
    return p


def _pack_params(params):
    """Convert math-layout f32 params into the kernel's DMA-friendly layout."""
    lc = CAT_LATENT * CAT_DIM
    w1, b1 = params["fc1"]; w2, b2 = params["fc2"]; w3, b3 = params["fc3"]
    w4, b4 = params["fc4"]; w5, b5 = params["fc5"]; w6, b6 = params["fc6"]
    w7, b7 = params["fc7"]
    # Big matmul weights in bf16: halves the dominant HBM->VMEM DMA bytes and
    # feeds the MXU natively; biases / tiny weights stay f32.
    w1 = w1.astype(jnp.bfloat16)
    w2 = w2.astype(jnp.bfloat16)
    w5 = w5.astype(jnp.bfloat16)
    # fc6: pad output features 784 -> 896 (= 7*128) so the recon store is
    # lane-dense; padded columns yield sigmoid(0) = 0.5 and are cropped outside.
    w6 = jnp.pad(w6, ((0, 0), (0, OUT_PAD - IN_DIM))).astype(jnp.bfloat16)
    b6 = jnp.pad(b6, ((0, 0), (0, OUT_PAD - IN_DIM)))
    # Degenerate layers: transpose / pre-split in the wrapper (no in-kernel
    # value-level slicing of a loaded weight).
    w3t = w3.T                                      # [2, 256]
    w7z, w7c = w7[:lc, :], w7[lc:, :]               # [2, 2] each
    return (w1, b1, w2, b2, w3t, b3, w4, b4, w5, b5, w6, b6, w7z, w7c, b7)


def vae_forward(x_nchw, temp, params, noise_key):
    B = x_nchw.shape[0]
    b_pad = max(SUBLANE, ((B + SUBLANE - 1) // SUBLANE) * SUBLANE)

    x = x_nchw.reshape(B, IN_DIM).astype(jnp.float32)
    x = jnp.pad(x, ((0, b_pad - B), (0, 0)))

    # sample_gumbel: -log(-log(U + eps) + eps), U ~ Uniform[0,1)
    u = jax.random.uniform(noise_key, (B, CAT_LATENT * CAT_DIM), jnp.float32)
    g = -jnp.log(-jnp.log(u + GUMBEL_EPS) + GUMBEL_EPS)
    g = jnp.pad(g, ((0, b_pad - B), (0, 0)))

    inv_temp = jnp.full((1, 1), 1.0 / temp, dtype=jnp.float32)

    flat_params = _pack_params(params)

    vmem = pl.BlockSpec(memory_space=pltpu.MemorySpace.VMEM)
    smem = pl.BlockSpec(memory_space=pltpu.MemorySpace.SMEM)

    recon_pad, qyc_pad = pl.pallas_call(
        _vae_kernel,
        out_shape=(
            jax.ShapeDtypeStruct((b_pad, OUT_PAD), jnp.float32),
            jax.ShapeDtypeStruct((b_pad, 2 * CONT_LATENT), jnp.float32),
        ),
        in_specs=[smem] + [vmem] * (2 + len(flat_params)),
        out_specs=(vmem, vmem),
        # Total VMEM footprint is ~2.5 MB; the default scoped limit is plenty on
        # v5e/v6e/v7x, so no vmem_limit override (64 MiB == all of v7x VMEM).
    )(inv_temp, x, g, *flat_params)

    recon = recon_pad[:B, :IN_DIM]
    q_yc = qyc_pad[:B]

    # sample_gaussian (dead code w.r.t. the returned value; plain-JAX glue).
    # TODO(synk): the reference slices q_yc on the batch axis (q_yc[:1]/q_yc[1:]);
    #             reproduced verbatim, only shape-consistent for B == 2.
    if B == 2:
        mean = q_yc[:CONT_LATENT]
        sig = jnp.exp(q_yc[CONT_LATENT:])
        _z_continous = mean + sig * jax.random.normal(
            jax.random.fold_in(noise_key, 1), mean.shape)

    return recon  # forward() returns self.decode(z)


if __name__ == "__main__":
    root = jax.random.PRNGKey(0)
    k_params, k_x, k_noise = jax.random.split(root, 3)

    params = init_vae_params(k_params)
    # MNIST-like input, NCHW: (batch=2, channels=1, 28, 28)
    x = jax.random.uniform(k_x, (2, 1, 28, 28), jnp.float32)
    temp = 0.5

    out = vae_forward(x, temp, params, k_noise)
    out = jax.block_until_ready(out)

    assert out.shape == (2, IN_DIM), out.shape
    assert bool(jnp.all(jnp.isfinite(out)))
    assert bool(jnp.all((out >= 0.0) & (out <= 1.0)))  # sigmoid range
    print("KERNEL_OK")
</pallas_src>

<mosaic_0001>
module attributes {stable_mosaic.version = 11 : i64} {
  func.func @_vae_kernel(%arg0: memref<1x1xf32, #tpu.memory_space<smem>>, %arg1: memref<8x784xf32, #tpu.memory_space<vmem>>, %arg2: memref<8x2xf32, #tpu.memory_space<vmem>>, %arg3: memref<784x512xbf16, #tpu.memory_space<vmem>>, %arg4: memref<1x512xf32, #tpu.memory_space<vmem>>, %arg5: memref<512x256xbf16, #tpu.memory_space<vmem>>, %arg6: memref<1x256xf32, #tpu.memory_space<vmem>>, %arg7: memref<2x256xf32, #tpu.memory_space<vmem>>, %arg8: memref<1x2xf32, #tpu.memory_space<vmem>>, %arg9: memref<2x256xf32, #tpu.memory_space<vmem>>, %arg10: memref<1x256xf32, #tpu.memory_space<vmem>>, %arg11: memref<256x512xbf16, #tpu.memory_space<vmem>>, %arg12: memref<1x512xf32, #tpu.memory_space<vmem>>, %arg13: memref<512x896xbf16, #tpu.memory_space<vmem>>, %arg14: memref<1x896xf32, #tpu.memory_space<vmem>>, %arg15: memref<2x2xf32, #tpu.memory_space<vmem>>, %arg16: memref<2x2xf32, #tpu.memory_space<vmem>>, %arg17: memref<1x2xf32, #tpu.memory_space<vmem>>, %arg18: memref<8x896xf32, #tpu.memory_space<vmem>>, %arg19: memref<8x2xf32, #tpu.memory_space<vmem>>) attributes {dimension_semantics = [], scalar_prefetch = 0 : i64, scratch_operands = 0 : i64, tpu.core_type = #tpu.core_type<tc>} {
    %c0 = arith.constant 0 : index
    %c0_0 = arith.constant 0 : index
    %0 = vector.load %arg1[%c0, %c0_0] : memref<8x784xf32, #tpu.memory_space<vmem>>, vector<8x784xf32>
    %1 = arith.truncf %0 : vector<8x784xf32> to vector<8x784xbf16>
    %c0_1 = arith.constant 0 : index
    %c0_2 = arith.constant 0 : index
    %2 = vector.load %arg3[%c0_1, %c0_2] : memref<784x512xbf16, #tpu.memory_space<vmem>>, vector<784x512xbf16>
    %cst = arith.constant dense<0.000000e+00> : vector<8x512xf32>
    %3 = tpu.matmul %1, %2, %cst {dimension_numbers = #tpu.dot_dimension_numbers<[1], [0], [0], [1], [0, 0, 1, 1], [], []>} : vector<8x784xbf16>, vector<784x512xbf16>, vector<8x512xf32> -> vector<8x512xf32>
    %c0_3 = arith.constant 0 : index
    %c0_4 = arith.constant 0 : index
    %4 = vector.load %arg4[%c0_3, %c0_4] : memref<1x512xf32, #tpu.memory_space<vmem>>, vector<1x512xf32>
    %5 = vector.broadcast %4 : vector<1x512xf32> to vector<8x512xf32>
    %6 = arith.addf %3, %5 : vector<8x512xf32>
    %cst_5 = arith.constant 0.000000e+00 : f32
    %7 = vector.broadcast %cst_5 : f32 to vector<8x512xf32>
    %8 = arith.maximumf %6, %7 : vector<8x512xf32>
    %9 = arith.truncf %8 : vector<8x512xf32> to vector<8x512xbf16>
    %c0_6 = arith.constant 0 : index
    %c0_7 = arith.constant 0 : index
    %10 = vector.load %arg5[%c0_6, %c0_7] : memref<512x256xbf16, #tpu.memory_space<vmem>>, vector<512x256xbf16>
    %cst_8 = arith.constant dense<0.000000e+00> : vector<8x256xf32>
    %11 = tpu.matmul %9, %10, %cst_8 {dimension_numbers = #tpu.dot_dimension_numbers<[1], [0], [0], [1], [0, 0, 1, 1], [], []>} : vector<8x512xbf16>, vector<512x256xbf16>, vector<8x256xf32> -> vector<8x256xf32>
    %c0_9 = arith.constant 0 : index
    %c0_10 = arith.constant 0 : index
    %12 = vector.load %arg6[%c0_9, %c0_10] : memref<1x256xf32, #tpu.memory_space<vmem>>, vector<1x256xf32>
    %13 = vector.broadcast %12 : vector<1x256xf32> to vector<8x256xf32>
    %14 = arith.addf %11, %13 : vector<8x256xf32>
    %cst_11 = arith.constant 0.000000e+00 : f32
    %15 = vector.broadcast %cst_11 : f32 to vector<8x256xf32>
    %16 = arith.maximumf %14, %15 : vector<8x256xf32>
    %c0_12 = arith.constant 0 : index
    %c0_13 = arith.constant 0 : index
    %17 = vector.load %arg7[%c0_12, %c0_13] : memref<2x256xf32, #tpu.memory_space<vmem>>, vector<1x256xf32>
    %18 = vector.broadcast %17 : vector<1x256xf32> to vector<8x256xf32>
    %19 = arith.mulf %16, %18 : vector<8x256xf32>
    %cst_14 = arith.constant dense<0.000000e+00> : vector<8xf32>
    %20 = vector.multi_reduction <add>, %19, %cst_14 [1] : vector<8x256xf32> to vector<8xf32>
    %21 = vector.shape_cast %20 : vector<8xf32> to vector<8x1xf32>
    %c1 = arith.constant 1 : index
    %c0_15 = arith.constant 0 : index
    %22 = vector.load %arg7[%c1, %c0_15] : memref<2x256xf32, #tpu.memory_space<vmem>>, vector<1x256xf32>
    %23 = vector.broadcast %22 : vector<1x256xf32> to vector<8x256xf32>
    %24 = arith.mulf %16, %23 : vector<8x256xf32>
    %cst_16 = arith.constant dense<0.000000e+00> : vector<8xf32>
    %25 = vector.multi_reduction <add>, %24, %cst_16 [1] : vector<8x256xf32> to vector<8xf32>
    %26 = vector.shape_cast %25 : vector<8xf32> to vector<8x1xf32>
    %c0_17 = arith.constant 0 : index
    %c0_18 = arith.constant 0 : index
    %27 = vector.load %arg8[%c0_17, %c0_18] : memref<1x2xf32, #tpu.memory_space<vmem>>, vector<1x1xf32>
    %28 = vector.broadcast %27 : vector<1x1xf32> to vector<8x1xf32>
    %29 = arith.addf %21, %28 : vector<8x1xf32>
    %cst_19 = arith.constant 0.000000e+00 : f32
    %30 = vector.broadcast %cst_19 : f32 to vector<8x1xf32>
    %31 = arith.maximumf %29, %30 : vector<8x1xf32>
    %c0_20 = arith.constant 0 : index
    %c1_21 = arith.constant 1 : index
    %32 = vector.load %arg8[%c0_20, %c1_21] : memref<1x2xf32, #tpu.memory_space<vmem>>, vector<1x1xf32>
    %33 = vector.broadcast %32 : vector<1x1xf32> to vector<8x1xf32>
    %34 = arith.addf %26, %33 : vector<8x1xf32>
    %cst_22 = arith.constant 0.000000e+00 : f32
    %35 = vector.broadcast %cst_22 : f32 to vector<8x1xf32>
    %36 = arith.maximumf %34, %35 : vector<8x1xf32>
    %c0_23 = arith.constant 0 : index
    %c0_24 = arith.constant 0 : index
    %37 = memref.load %arg0[%c0_23, %c0_24] : memref<1x1xf32, #tpu.memory_space<smem>>
    %c0_25 = arith.constant 0 : index
    %c0_26 = arith.constant 0 : index
    %38 = vector.load %arg2[%c0_25, %c0_26] : memref<8x2xf32, #tpu.memory_space<vmem>>, vector<8x1xf32>
    %39 = arith.addf %31, %38 : vector<8x1xf32>
    %40 = vector.broadcast %37 : f32 to vector<8x1xf32>
    %41 = arith.mulf %39, %40 : vector<8x1xf32>
    %c0_27 = arith.constant 0 : index
    %c1_28 = arith.constant 1 : index
    %42 = vector.load %arg2[%c0_27, %c1_28] : memref<8x2xf32, #tpu.memory_space<vmem>>, vector<8x1xf32>
    %43 = arith.addf %36, %42 : vector<8x1xf32>
    %44 = vector.broadcast %37 : f32 to vector<8x1xf32>
    %45 = arith.mulf %43, %44 : vector<8x1xf32>
    %46 = arith.cmpf oge, %41, %45 : vector<8x1xf32>
    %47 = arith.extui %46 : vector<8x1xi1> to vector<8x1xi32>
    %48 = arith.sitofp %47 : vector<8x1xi32> to vector<8x1xf32>
    %cst_29 = arith.constant 1.000000e+00 : f32
    %49 = vector.broadcast %cst_29 : f32 to vector<8x1xf32>
    %50 = arith.subf %49, %48 : vector<8x1xf32>
    %c0_30 = arith.constant 0 : index
    %c0_31 = arith.constant 0 : index
    %51 = vector.load %arg15[%c0_30, %c0_31] : memref<2x2xf32, #tpu.memory_space<vmem>>, vector<1x2xf32>
    %52 = vector.broadcast %48 : vector<8x1xf32> to vector<8x2xf32>
    %53 = vector.broadcast %51 : vector<1x2xf32> to vector<8x2xf32>
    %54 = arith.mulf %52, %53 : vector<8x2xf32>
    %c1_32 = arith.constant 1 : index
    %c0_33 = arith.constant 0 : index
    %55 = vector.load %arg15[%c1_32, %c0_33] : memref<2x2xf32, #tpu.memory_space<vmem>>, vector<1x2xf32>
    %56 = vector.broadcast %50 : vector<8x1xf32> to vector<8x2xf32>
    %57 = vector.broadcast %55 : vector<1x2xf32> to vector<8x2xf32>
    %58 = arith.mulf %56, %57 : vector<8x2xf32>
    %59 = arith.addf %54, %58 : vector<8x2xf32>
    %c0_34 = arith.constant 0 : index
    %c0_35 = arith.constant 0 : index
    %60 = vector.load %arg16[%c0_34, %c0_35] : memref<2x2xf32, #tpu.memory_space<vmem>>, vector<1x2xf32>
    %61 = vector.broadcast %31 : vector<8x1xf32> to vector<8x2xf32>
    %62 = vector.broadcast %60 : vector<1x2xf32> to vector<8x2xf32>
    %63 = arith.mulf %61, %62 : vector<8x2xf32>
    %64 = arith.addf %59, %63 : vector<8x2xf32>
    %c1_36 = arith.constant 1 : index
    %c0_37 = arith.constant 0 : index
    %65 = vector.load %arg16[%c1_36, %c0_37] : memref<2x2xf32, #tpu.memory_space<vmem>>, vector<1x2xf32>
    %66 = vector.broadcast %36 : vector<8x1xf32> to vector<8x2xf32>
    %67 = vector.broadcast %65 : vector<1x2xf32> to vector<8x2xf32>
    %68 = arith.mulf %66, %67 : vector<8x2xf32>
    %69 = arith.addf %64, %68 : vector<8x2xf32>
    %c0_38 = arith.constant 0 : index
    %c0_39 = arith.constant 0 : index
    %70 = vector.load %arg17[%c0_38, %c0_39] : memref<1x2xf32, #tpu.memory_space<vmem>>, vector<1x2xf32>
    %71 = vector.broadcast %70 : vector<1x2xf32> to vector<8x2xf32>
    %72 = arith.addf %69, %71 : vector<8x2xf32>
    %c0_40 = arith.constant 0 : index
    %c0_41 = arith.constant 0 : index
    %73 = vector.load %arg19[%c0_40, %c0_41] : memref<8x2xf32, #tpu.memory_space<vmem>>, vector<8x2xf32>
    tpu.vector_store %arg19[%c0_40, %c0_41], %72 {strides = array<i32>} : memref<8x2xf32, #tpu.memory_space<vmem>>, vector<8x2xf32>,
    %c0_42 = arith.constant 0 : index
    %c0_43 = arith.constant 0 : index
    %74 = vector.load %arg9[%c0_42, %c0_43] : memref<2x256xf32, #tpu.memory_space<vmem>>, vector<1x256xf32>
    %75 = vector.broadcast %48 : vector<8x1xf32> to vector<8x256xf32>
    %76 = vector.broadcast %74 : vector<1x256xf32> to vector<8x256xf32>
    %77 = arith.mulf %75, %76 : vector<8x256xf32>
    %c1_44 = arith.constant 1 : index
    %c0_45 = arith.constant 0 : index
    %78 = vector.load %arg9[%c1_44, %c0_45] : memref<2x256xf32, #tpu.memory_space<vmem>>, vector<1x256xf32>
    %79 = vector.broadcast %50 : vector<8x1xf32> to vector<8x256xf32>
    %80 = vector.broadcast %78 : vector<1x256xf32> to vector<8x256xf32>
    %81 = arith.mulf %79, %80 : vector<8x256xf32>
    %82 = arith.addf %77, %81 : vector<8x256xf32>
    %c0_46 = arith.constant 0 : index
    %c0_47 = arith.constant 0 : index
    %83 = vector.load %arg10[%c0_46, %c0_47] : memref<1x256xf32, #tpu.memory_space<vmem>>, vector<1x256xf32>
    %84 = vector.broadcast %83 : vector<1x256xf32> to vector<8x256xf32>
    %85 = arith.addf %82, %84 : vector<8x256xf32>
    %cst_48 = arith.constant 0.000000e+00 : f32
    %86 = vector.broadcast %cst_48 : f32 to vector<8x256xf32>
    %87 = arith.maximumf %85, %86 : vector<8x256xf32>
    %88 = arith.truncf %87 : vector<8x256xf32> to vector<8x256xbf16>
    %c0_49 = arith.constant 0 : index
    %c0_50 = arith.constant 0 : index
    %89 = vector.load %arg11[%c0_49, %c0_50] : memref<256x512xbf16, #tpu.memory_space<vmem>>, vector<256x512xbf16>
    %cst_51 = arith.constant dense<0.000000e+00> : vector<8x512xf32>
    %90 = tpu.matmul %88, %89, %cst_51 {dimension_numbers = #tpu.dot_dimension_numbers<[1], [0], [0], [1], [0, 0, 1, 1], [], []>} : vector<8x256xbf16>, vector<256x512xbf16>, vector<8x512xf32> -> vector<8x512xf32>
    %c0_52 = arith.constant 0 : index
    %c0_53 = arith.constant 0 : index
    %91 = vector.load %arg12[%c0_52, %c0_53] : memref<1x512xf32, #tpu.memory_space<vmem>>, vector<1x512xf32>
    %92 = vector.broadcast %91 : vector<1x512xf32> to vector<8x512xf32>
    %93 = arith.addf %90, %92 : vector<8x512xf32>
    %cst_54 = arith.constant 0.000000e+00 : f32
    %94 = vector.broadcast %cst_54 : f32 to vector<8x512xf32>
    %95 = arith.maximumf %93, %94 : vector<8x512xf32>
    %96 = arith.truncf %95 : vector<8x512xf32> to vector<8x512xbf16>
    %c0_55 = arith.constant 0 : index
    %c0_56 = arith.constant 0 : index
    %97 = vector.load %arg13[%c0_55, %c0_56] : memref<512x896xbf16, #tpu.memory_space<vmem>>, vector<512x896xbf16>
    %cst_57 = arith.constant dense<0.000000e+00> : vector<8x896xf32>
    %98 = tpu.matmul %96, %97, %cst_57 {dimension_numbers = #tpu.dot_dimension_numbers<[1], [0], [0], [1], [0, 0, 1, 1], [], []>} : vector<8x512xbf16>, vector<512x896xbf16>, vector<8x896xf32> -> vector<8x896xf32>
    %c0_58 = arith.constant 0 : index
    %c0_59 = arith.constant 0 : index
    %99 = vector.load %arg14[%c0_58, %c0_59] : memref<1x896xf32, #tpu.memory_space<vmem>>, vector<1x896xf32>
    %100 = vector.broadcast %99 : vector<1x896xf32> to vector<8x896xf32>
    %101 = arith.addf %98, %100 : vector<8x896xf32>
    %cst_60 = arith.constant 5.000000e-01 : f32
    %102 = vector.broadcast %cst_60 : f32 to vector<8x896xf32>
    %103 = arith.mulf %102, %101 : vector<8x896xf32>
    %104 = math.tanh %103 : vector<8x896xf32>
    %cst_61 = arith.constant 5.000000e-01 : f32
    %105 = vector.broadcast %cst_61 : f32 to vector<8x896xf32>
    %106 = arith.mulf %105, %104 : vector<8x896xf32>
    %cst_62 = arith.constant 5.000000e-01 : f32
    %107 = vector.broadcast %cst_62 : f32 to vector<8x896xf32>
    %108 = arith.addf %106, %107 : vector<8x896xf32>
    %c0_63 = arith.constant 0 : index
    %c0_64 = arith.constant 0 : index
    %109 = vector.load %arg18[%c0_63, %c0_64] : memref<8x896xf32, #tpu.memory_space<vmem>>, vector<8x896xf32>
    tpu.vector_store %arg18[%c0_63, %c0_64], %108 {strides = array<i32>} : memref<8x896xf32, #tpu.memory_space<vmem>>, vector<8x896xf32>,
    return
  }
}

</mosaic_0001>

<llo_original>
// kernel: tpu_custom_call.1
$region0: #{tpu_custom_call.1}
  #allocation0 [shape = 'u32[]', space=smem, size = 0x4, offset = 0x4, fixed_abs, tag = 'smem constant byte address 0x4 - core index']
  #allocation1 [shape = 'u32[144,128]{1,0:T(1,128)}', space=vmem, size = 0x12000, scoped, tag = 'internal scratch']
  #allocation2 [shape = 'f32[1,1]{1,0:T(1,128)S(6)}', space=smem, size = 0x200, scoped, tag = 'scoped memory for tpu_custom_call.1']
  %s0 = inlined_call_operand.<no memory space> [shape: f32[1,1], index: 0, kind: input, shape index: {}]
  %s1 = inlined_call_operand.hbm [shape: f32[8,784], index: 1, kind: input, shape index: {}]
  %s2 = inlined_call_operand.vmem [shape: f32[8,2], index: 2, kind: input, shape index: {}]
  %s3 = inlined_call_operand.hbm [shape: bf16[784,512], index: 3, kind: input, shape index: {}]
  %s4 = inlined_call_operand.vmem [shape: f32[1,512], index: 4, kind: input, shape index: {}]
  %s5 = inlined_call_operand.hbm [shape: bf16[512,256], index: 5, kind: input, shape index: {}]
  %s6 = inlined_call_operand.hbm [shape: f32[1,256], index: 6, kind: input, shape index: {}]
  %s7 = inlined_call_operand.vmem [shape: f32[2,256], index: 7, kind: input, shape index: {}]
  %s8 = inlined_call_operand.vmem [shape: f32[1,2], index: 8, kind: input, shape index: {}]
  %s9 = inlined_call_operand.vmem [shape: f32[2,256], index: 9, kind: input, shape index: {}]
  %s10 = inlined_call_operand.vmem [shape: f32[1,256], index: 10, kind: input, shape index: {}]
  %s11 = inlined_call_operand.hbm [shape: bf16[256,512], index: 11, kind: input, shape index: {}]
  %s12 = inlined_call_operand.vmem [shape: f32[1,512], index: 12, kind: input, shape index: {}]
  %s13 = inlined_call_operand.hbm [shape: bf16[512,896], index: 13, kind: input, shape index: {}]
  %s14 = inlined_call_operand.vmem [shape: f32[1,896], index: 14, kind: input, shape index: {}]
  %s15 = inlined_call_operand.vmem [shape: f32[2,2], index: 15, kind: input, shape index: {}]
  %s16 = inlined_call_operand.vmem [shape: f32[2,2], index: 16, kind: input, shape index: {}]
  %s17 = inlined_call_operand.vmem [shape: f32[1,2], index: 17, kind: input, shape index: {}]
  %s18 = inlined_call_operand.hbm [shape: f32[8,896], index: 18, kind: output, shape index: {0}]
  %s19 = inlined_call_operand.vmem [shape: f32[8,2], index: 19, kind: output, shape index: {1}]
  %20 = xla_tuple %s18, %s19
  %s21 = sld [smem:[#allocation0]]
  $region114: #{tpu_custom_call.1} parent=0
    _
  %s23 = ssub.s32 1, %s21
  %s24 = scalar_select 0, %s23, %s21
  %25 = sst [smem:[#allocation2]] %s0
  $region1: #{tpu_custom_call.1} parent=0
    #allocation3 [shape = 'u8[28672]{0}', space=vmem, size = 0x7000, scoped, tag = 'input window, operand 1, single buffered']
    #allocation4 [shape = 's32[1]{0}', space=sflag, size = 0x4, scoped, tag = 'scoped memory for tpu_custom_call.1']
    #allocation5 [shape = 's32[1]{0}', space=sflag, size = 0x4, scoped, tag = 'scoped memory for tpu_custom_call.1']
    #allocation6 [shape = 'u8[802816]{0}', space=vmem, size = 0xc4000, scoped, tag = 'input window, operand 3, single buffered']
    #allocation7 [shape = 's32[1]{0}', space=sflag, size = 0x4, scoped, tag = 'scoped memory for tpu_custom_call.1']
    #allocation8 [shape = 'u8[262144]{0}', space=vmem, size = 0x40000, scoped, tag = 'input window, operand 5, single buffered']
    #allocation9 [shape = 'u8[1024]{0}', space=vmem, size = 0x400, scoped, tag = 'input window, operand 6, single buffered']
    #allocation10 [shape = 's32[1]{0}', space=sflag, size = 0x4, scoped, tag = 'scoped memory for tpu_custom_call.1']
    #allocation11 [shape = 'u8[262144]{0}', space=vmem, size = 0x40000, scoped, tag = 'input window, operand 11, single buffered']
    #allocation12 [shape = 'u8[917504]{0}', space=vmem, size = 0xe0000, scoped, tag = 'input window, operand 13, single buffered']
    #allocation13 [shape = 's32[1]{0}', space=sflag, size = 0x4, scoped, tag = 'scoped memory for tpu_custom_call.1']
    #allocation14 [shape = 'u8[28672]{0}', space=vmem, size = 0x7000, scoped, tag = 'output window, operand 0, single buffered']
    %26 = vsyncpa [#allocation4], 0
    %27 = vsyncpa [#allocation7], 0
    %28 = vsyncpa [#allocation10], 0
    %29 = vsyncpa [#allocation13], 0
    %30 = vsyncpa [#allocation5], 0
    // Predicated region
    $region2: #{tpu_custom_call.1} parent=1 // pred_check
      _
    $region3: #{tpu_custom_call.1} parent=1 // pred_check_branch
      %32 = sbr.rel (0) target = $region5
    $region4: #{tpu_custom_call.1} parent=1 // pred_region
      _
    $region5: #{tpu_custom_call.1} parent=1 // pred_fallthru
      _
    // Predicated region
    $region6: #{tpu_custom_call.1} parent=1 // pred_check
      _
    $region7: #{tpu_custom_call.1} parent=1 // pred_check_branch
      %34 = sbr.rel (0) target = $region9
    $region8: #{tpu_custom_call.1} parent=1 // pred_region
      %s36 = ssub.s32 896, 896
      %37 = vsyncadd [#allocation4], %s36
      %s39 = sshll.u32 [#allocation3], 4
      %s40 = int_to_ptr.vmem [resolvable:$true] %s39
      %42 = dma.hbm_to_vmem [thread:$0]  %s1, 896, %s40, [#allocation4]
    $region9: #{tpu_custom_call.1} parent=1 // pred_fallthru
      _
    // Predicated region
    $region10: #{tpu_custom_call.1} parent=1 // pred_check
      _
    $region11: #{tpu_custom_call.1} parent=1 // pred_check_branch
      %44 = sbr.rel (0) target = $region13
    $region12: #{tpu_custom_call.1} parent=1 // pred_region
      _
    $region13: #{tpu_custom_call.1} parent=1 // pred_fallthru
      _
    // Predicated region
    $region14: #{tpu_custom_call.1} parent=1 // pred_check
      _
    $region15: #{tpu_custom_call.1} parent=1 // pred_check_branch
      %46 = sbr.rel (0) target = $region17
    $region16: #{tpu_custom_call.1} parent=1 // pred_region
      %s48 = ssub.s32 25088, 25088
      %49 = vsyncadd [#allocation7], %s48
      %s50 = sshll.u32 [#allocation6], 4
      %s51 = int_to_ptr.vmem [resolvable:$true] %s50
      %56 = dma.hbm_to_vmem [thread:$0]  %s3, 25088, %s51, [#allocation7], 256, 256, 16
    $region17: #{tpu_custom_call.1} parent=1 // pred_fallthru
      _
    // Predicated region
    $region18: #{tpu_custom_call.1} parent=1 // pred_check
      _
    $region19: #{tpu_custom_call.1} parent=1 // pred_check_branch
      %58 = sbr.rel (0) target = $region21
    $region20: #{tpu_custom_call.1} parent=1 // pred_region
      _
    $region21: #{tpu_custom_call.1} parent=1 // pred_fallthru
      _
    // Predicated region
    $region22: #{tpu_custom_call.1} parent=1 // pred_check
      _
    $region23: #{tpu_custom_call.1} parent=1 // pred_check_branch
      %60 = sbr.rel (0) target = $region25
    $region24: #{tpu_custom_call.1} parent=1 // pred_region
      %s62 = ssub.s32 8192, 8192
      %63 = vsyncadd [#allocation7], %s62
      %s64 = sshll.u32 [#allocation8], 4
      %s65 = int_to_ptr.vmem [resolvable:$true] %s64
      %70 = dma.hbm_to_vmem [thread:$0]  %s5, 8192, %s65, [#allocation7], 128, 128, 8
    $region25: #{tpu_custom_call.1} parent=1 // pred_fallthru
      _
    // Predicated region
    $region26: #{tpu_custom_call.1} parent=1 // pred_check
      _
    $region27: #{tpu_custom_call.1} parent=1 // pred_check_branch
      %72 = sbr.rel (0) target = $region29
    $region28: #{tpu_custom_call.1} parent=1 // pred_region
      %s74 = ssub.s32 32, 32
      %75 = vsyncadd [#allocation10], %s74
      %s77 = sshll.u32 [#allocation9], 4
      %s78 = int_to_ptr.vmem [resolvable:$true] %s77
      %80 = dma.hbm_to_vmem [thread:$0]  %s6, 32, %s78, [#allocation10]
    $region29: #{tpu_custom_call.1} parent=1 // pred_fallthru
      _
    // Predicated region
    $region30: #{tpu_custom_call.1} parent=1 // pred_check
      _
    $region31: #{tpu_custom_call.1} parent=1 // pred_check_branch
      %82 = sbr.rel (0) target = $region33
    $region32: #{tpu_custom_call.1} parent=1 // pred_region
      _
    $region33: #{tpu_custom_call.1} parent=1 // pred_fallthru
      _
    // Predicated region
    $region34: #{tpu_custom_call.1} parent=1 // pred_check
      _
    $region35: #{tpu_custom_call.1} parent=1 // pred_check_branch
      %84 = sbr.rel (0) target = $region37
    $region36: #{tpu_custom_call.1} parent=1 // pred_region
      _
    $region37: #{tpu_custom_call.1} parent=1 // pred_fallthru
      _
    // Predicated region
    $region38: #{tpu_custom_call.1} parent=1 // pred_check
      _
    $region39: #{tpu_custom_call.1} parent=1 // pred_check_branch
      %86 = sbr.rel (0) target = $region41
    $region40: #{tpu_custom_call.1} parent=1 // pred_region
      _
    $region41: #{tpu_custom_call.1} parent=1 // pred_fallthru
      _
    // Predicated region
    $region42: #{tpu_custom_call.1} parent=1 // pred_check
      _
    $region43: #{tpu_custom_call.1} parent=1 // pred_check_branch
      %88 = sbr.rel (0) target = $region45
    $region44: #{tpu_custom_call.1} parent=1 // pred_region
      _
    $region45: #{tpu_custom_call.1} parent=1 // pred_fallthru
      _
    // Predicated region
    $region46: #{tpu_custom_call.1} parent=1 // pred_check
      _
    $region47: #{tpu_custom_call.1} parent=1 // pred_check_branch
      %90 = sbr.rel (0) target = $region49
    $region48: #{tpu_custom_call.1} parent=1 // pred_region
      %s92 = ssub.s32 8192, 8192
      %93 = vsyncadd [#allocation10], %s92
      %s94 = sshll.u32 [#allocation11], 4
      %s95 = int_to_ptr.vmem [resolvable:$true] %s94
      %100 = dma.hbm_to_vmem [thread:$0]  %s11, 8192, %s95, [#allocation10], 256, 256, 16
    $region49: #{tpu_custom_call.1} parent=1 // pred_fallthru
      _
    // Predicated region
    $region50: #{tpu_custom_call.1} parent=1 // pred_check
      _
    $region51: #{tpu_custom_call.1} parent=1 // pred_check_branch
      %102 = sbr.rel (0) target = $region53
    $region52: #{tpu_custom_call.1} parent=1 // pred_region
      _
    $region53: #{tpu_custom_call.1} parent=1 // pred_fallthru
      _
    // Predicated region
    $region54: #{tpu_custom_call.1} parent=1 // pred_check
      _
    $region55: #{tpu_custom_call.1} parent=1 // pred_check_branch
      %104 = sbr.rel (0) target = $region57
    $region56: #{tpu_custom_call.1} parent=1 // pred_region
      %s106 = ssub.s32 28672, 28672
      %107 = vsyncadd [#allocation13], %s106
      %s108 = sshll.u32 [#allocation12], 4
      %s109 = int_to_ptr.vmem [resolvable:$true] %s108
      %114 = dma.hbm_to_vmem [thread:$0]  %s13, 28672, %s109, [#allocation13], 448, 448, 28
    $region57: #{tpu_custom_call.1} parent=1 // pred_fallthru
      _
    // Predicated region
    $region58: #{tpu_custom_call.1} parent=1 // pred_check
      _
    $region59: #{tpu_custom_call.1} parent=1 // pred_check_branch
      %116 = sbr.rel (0) target = $region61
    $region60: #{tpu_custom_call.1} parent=1 // pred_region
      _
    $region61: #{tpu_custom_call.1} parent=1 // pred_fallthru
      _
    // Predicated region
    $region62: #{tpu_custom_call.1} parent=1 // pred_check
      _
    $region63: #{tpu_custom_call.1} parent=1 // pred_check_branch
      %118 = sbr.rel (0) target = $region65
    $region64: #{tpu_custom_call.1} parent=1 // pred_region
      _
    $region65: #{tpu_custom_call.1} parent=1 // pred_fallthru
      _
    // Predicated region
    $region66: #{tpu_custom_call.1} parent=1 // pred_check
      _
    $region67: #{tpu_custom_call.1} parent=1 // pred_check_branch
      %120 = sbr.rel (0) target = $region69
    $region68: #{tpu_custom_call.1} parent=1 // pred_region
      _
    $region69: #{tpu_custom_call.1} parent=1 // pred_fallthru
      _
    // Predicated region
    $region70: #{tpu_custom_call.1} parent=1 // pred_check
      _
    $region71: #{tpu_custom_call.1} parent=1 // pred_check_branch
      %122 = sbr.rel (0) target = $region73
    $region72: #{tpu_custom_call.1} parent=1 // pred_region
      _
    $region73: #{tpu_custom_call.1} parent=1 // pred_fallthru
      _
    // Predicated region
    $region74: #{tpu_custom_call.1} parent=1 // pred_check
      _
    $region75: #{tpu_custom_call.1} parent=1 // pred_check_branch
      %124 = sbr.rel (0) target = $region77
    $region76: #{tpu_custom_call.1} parent=1 // pred_region
      %125 = dma.done [#allocation4], 896
    $region77: #{tpu_custom_call.1} parent=1 // pred_fallthru
      _
    // Predicated region
    $region78: #{tpu_custom_call.1} parent=1 // pred_check
      _
    $region79: #{tpu_custom_call.1} parent=1 // pred_check_branch
      %127 = sbr.rel (0) target = $region81
    $region80: #{tpu_custom_call.1} parent=1 // pred_region
      %128 = dma.done [#allocation7], 25088
    $region81: #{tpu_custom_call.1} parent=1 // pred_fallthru
      _
    // Predicated region
    $region82: #{tpu_custom_call.1} parent=1 // pred_check
      _
    $region83: #{tpu_custom_call.1} parent=1 // pred_check_branch
      %130 = sbr.rel (0) target = $region85
    $region84: #{tpu_custom_call.1} parent=1 // pred_region
      %131 = dma.done [#allocation7], 8192
    $region85: #{tpu_custom_call.1} parent=1 // pred_fallthru
      _
    // Predicated region
    $region86: #{tpu_custom_call.1} parent=1 // pred_check
      _
    $region87: #{tpu_custom_call.1} parent=1 // pred_check_branch
      %133 = sbr.rel (0) target = $region89
    $region88: #{tpu_custom_call.1} parent=1 // pred_region
      %134 = dma.done [#allocation10], 32
    $region89: #{tpu_custom_call.1} parent=1 // pred_fallthru
      _
    // Predicated region
    $region90: #{tpu_custom_call.1} parent=1 // pred_check
      _
    $region91: #{tpu_custom_call.1} parent=1 // pred_check_branch
      %136 = sbr.rel (0) target = $region93
    $region92: #{tpu_custom_call.1} parent=1 // pred_region
      %137 = dma.done [#allocation10], 8192
    $region93: #{tpu_custom_call.1} parent=1 // pred_fallthru
      _
    // Predicated region
    $region94: #{tpu_custom_call.1} parent=1 // pred_check
      _
    $region95: #{tpu_custom_call.1} parent=1 // pred_check_branch
      %139 = sbr.rel (0) target = $region97
    $region96: #{tpu_custom_call.1} parent=1 // pred_region
      %140 = dma.done [#allocation13], 28672
    $region97: #{tpu_custom_call.1} parent=1 // pred_fallthru
      _
    %v142 = vld [vmem:[#allocation3] sm:$0xff]
    %v143 = vld [vmem:[#allocation3 + $0x8] sm:$0xff]
    %v144 = vld [vmem:[#allocation3 + $0x10] sm:$0xff]
    %v145 = vld [vmem:[#allocation3 + $0x18] sm:$0xff]
    %v146 = vld [vmem:[#allocation3 + $0x20] sm:$0xff]
    %v147 = vld [vmem:[#allocation3 + $0x28] sm:$0xff]
    %v148 = vld [vmem:[#allocation3 + $0x30] sm:$0xff]
    %v149 = vpack.c.bf16 %v142, %v142
    %v150 = vpack.c.bf16 %v143, %v143
    %v151 = vpack.c.bf16 %v144, %v144
    %v152 = vpack.c.bf16 %v145, %v145
    %v153 = vpack.c.bf16 %v146, %v146
    %v154 = vpack.c.bf16 %v147, %v147
    %v155 = vpack.c.bf16 %v148, %v148
    %v156 = vld [vmem:[#allocation6] sm:$0xff]
    %v157 = vld [vmem:[#allocation6 + $0x8] sm:$0xff]
    %v158 = vld [vmem:[#allocation6 + $0x10] sm:$0xff]
    %v159 = vld [vmem:[#allocation6 + $0x18] sm:$0xff]
    %v160 = vld [vmem:[#allocation6 + $0x20] sm:$0xff]
    %v161 = vld [vmem:[#allocation6 + $0x28] sm:$0xff]
    %v162 = vld [vmem:[#allocation6 + $0x30] sm:$0xff]
    %v163 = vld [vmem:[#allocation6 + $0x38] sm:$0xff]
    %v164 = vld [vmem:[#allocation6 + $0x40] sm:$0xff]
    %v165 = vld [vmem:[#allocation6 + $0x48] sm:$0xff]
    %v166 = vld [vmem:[#allocation6 + $0x50] sm:$0xff]
    %v167 = vld [vmem:[#allocation6 + $0x58] sm:$0xff]
    %v168 = vld [vmem:[#allocation6 + $0x60] sm:$0xff]
    %v169 = vld [vmem:[#allocation6 + $0x68] sm:$0xff]
    %v170 = vld [vmem:[#allocation6 + $0x70] sm:$0xff]
    %v171 = vld [vmem:[#allocation6 + $0x78] sm:$0xff]
    %v172 = vld [vmem:[#allocation6 + $0x80] sm:$0xff]
    %v173 = vld [vmem:[#allocation6 + $0x88] sm:$0xff]
    %v174 = vld [vmem:[#allocation6 + $0x90] sm:$0xff]
    %v175 = vld [vmem:[#allocation6 + $0x98] sm:$0xff]
    %v176 = vld [vmem:[#allocation6 + $0xa0] sm:$0xff]
    %v177 = vld [vmem:[#allocation6 + $0xa8] sm:$0xff]
    %v178 = vld [vmem:[#allocation6 + $0xb0] sm:$0xff]
    %v179 = vld [vmem:[#allocation6 + $0xb8] sm:$0xff]
    %v180 = vld [vmem:[#allocation6 + $0xc0] sm:$0xff]
    %v181 = vld [vmem:[#allocation6 + $0xc8] sm:$0xff]
    %v182 = vld [vmem:[#allocation6 + $0xd0] sm:$0xff]
    %v183 = vld [vmem:[#allocation6 + $0xd8] sm:$0xff]
    %v184 = vld [vmem:[#allocation6 + $0xe0] sm:$0xff]
    %v185 = vld [vmem:[#allocation6 + $0xe8] sm:$0xff]
    %v186 = vld [vmem:[#allocation6 + $0xf0] sm:$0xff]
    %v187 = vld [vmem:[#allocation6 + $0xf8] sm:$0xff]
    %v188 = vld [vmem:[#allocation6 + $0x100] sm:$0xff]
    %v189 = vld [vmem:[#allocation6 + $0x108] sm:$0xff]
    %v190 = vld [vmem:[#allocation6 + $0x110] sm:$0xff]
    %v191 = vld [vmem:[#allocation6 + $0x118] sm:$0xff]
    %v192 = vld [vmem:[#allocation6 + $0x120] sm:$0xff]
    %v193 = vld [vmem:[#allocation6 + $0x128] sm:$0xff]
    %v194 = vld [vmem:[#allocation6 + $0x130] sm:$0xff]
    %v195 = vld [vmem:[#allocation6 + $0x138] sm:$0xff]
    %v196 = vld [vmem:[#allocation6 + $0x140] sm:$0xff]
    %v197 = vld [vmem:[#allocation6 + $0x148] sm:$0xff]
    %v198 = vld [vmem:[#allocation6 + $0x150] sm:$0xff]
    %v199 = vld [vmem:[#allocation6 + $0x158] sm:$0xff]
    %v200 = vld [vmem:[#allocation6 + $0x160] sm:$0xff]
    %v201 = vld [vmem:[#allocation6 + $0x168] sm:$0xff]
    %v202 = vld [vmem:[#allocation6 + $0x170] sm:$0xff]
    %v203 = vld [vmem:[#allocation6 + $0x178] sm:$0xff]
    %v204 = vld [vmem:[#allocation6 + $0x180] sm:$0xff]
    %v205 = vld [vmem:[#allocation6 + $0x188] sm:$0xff]
    %v206 = vld [vmem:[#allocation6 + $0x190] sm:$0xff]
    %v207 = vld [vmem:[#allocation6 + $0x198] sm:$0xff]
    %v208 = vld [vmem:[#allocation6 + $0x1a0] sm:$0xff]
    %v209 = vld [vmem:[#allocation6 + $0x1a8] sm:$0xff]
    %v210 = vld [vmem:[#allocation6 + $0x1b0] sm:$0xff]
    %v211 = vld [vmem:[#allocation6 + $0x1b8] sm:$0xff]
    %v212 = vld [vmem:[#allocation6 + $0x1c0] sm:$0xff]
    %v213 = vld [vmem:[#allocation6 + $0x1c8] sm:$0xff]
    %v214 = vld [vmem:[#allocation6 + $0x1d0] sm:$0xff]
    %v215 = vld [vmem:[#allocation6 + $0x1d8] sm:$0xff]
    %v216 = vld [vmem:[#allocation6 + $0x1e0] sm:$0xff]
    %v217 = vld [vmem:[#allocation6 + $0x1e8] sm:$0xff]
    %v218 = vld [vmem:[#allocation6 + $0x1f0] sm:$0xff]
    %v219 = vld [vmem:[#allocation6 + $0x1f8] sm:$0xff]
    %v220 = vld [vmem:[#allocation6 + $0x200] sm:$0xff]
    %v221 = vld [vmem:[#allocation6 + $0x208] sm:$0xff]
    %v222 = vld [vmem:[#allocation6 + $0x210] sm:$0xff]
    %v223 = vld [vmem:[#allocation6 + $0x218] sm:$0xff]
    %v224 = vld [vmem:[#allocation6 + $0x220] sm:$0xff]
    %v225 = vld [vmem:[#allocation6 + $0x228] sm:$0xff]
    %v226 = vld [vmem:[#allocation6 + $0x230] sm:$0xff]
    %v227 = vld [vmem:[#allocation6 + $0x238] sm:$0xff]
    %v228 = vld [vmem:[#allocation6 + $0x240] sm:$0xff]
    %v229 = vld [vmem:[#allocation6 + $0x248] sm:$0xff]
    %v230 = vld [vmem:[#allocation6 + $0x250] sm:$0xff]
    %v231 = vld [vmem:[#allocation6 + $0x258] sm:$0xff]
    %v232 = vld [vmem:[#allocation6 + $0x260] sm:$0xff]
    %v233 = vld [vmem:[#allocation6 + $0x268] sm:$0xff]
    %v234 = vld [vmem:[#allocation6 + $0x270] sm:$0xff]
    %v235 = vld [vmem:[#allocation6 + $0x278] sm:$0xff]
    %v236 = vld [vmem:[#allocation6 + $0x280] sm:$0xff]
    %v237 = vld [vmem:[#allocation6 + $0x288] sm:$0xff]
    %v238 = vld [vmem:[#allocation6 + $0x290] sm:$0xff]
    %v239 = vld [vmem:[#allocation6 + $0x298] sm:$0xff]
    %v240 = vld [vmem:[#allocation6 + $0x2a0] sm:$0xff]
    %v241 = vld [vmem:[#allocation6 + $0x2a8] sm:$0xff]
    %v242 = vld [vmem:[#allocation6 + $0x2b0] sm:$0xff]
    %v243 = vld [vmem:[#allocation6 + $0x2b8] sm:$0xff]
    %v244 = vld [vmem:[#allocation6 + $0x2c0] sm:$0xff]
    %v245 = vld [vmem:[#allocation6 + $0x2c8] sm:$0xff]
    %v246 = vld [vmem:[#allocation6 + $0x2d0] sm:$0xff]
    %v247 = vld [vmem:[#allocation6 + $0x2d8] sm:$0xff]
    %v248 = vld [vmem:[#allocation6 + $0x2e0] sm:$0xff]
    %v249 = vld [vmem:[#allocation6 + $0x2e8] sm:$0xff]
    %v250 = vld [vmem:[#allocation6 + $0x2f0] sm:$0xff]
    %v251 = vld [vmem:[#allocation6 + $0x2f8] sm:$0xff]
    %v252 = vld [vmem:[#allocation6 + $0x300] sm:$0xff]
    %v253 = vld [vmem:[#allocation6 + $0x308] sm:$0xff]
    %v254 = vld [vmem:[#allocation6 + $0x310] sm:$0xff]
    %v255 = vld [vmem:[#allocation6 + $0x318] sm:$0xff]
    %v256 = vld [vmem:[#allocation6 + $0x320] sm:$0xff]
    %v257 = vld [vmem:[#allocation6 + $0x328] sm:$0xff]
    %v258 = vld [vmem:[#allocation6 + $0x330] sm:$0xff]
    %v259 = vld [vmem:[#allocation6 + $0x338] sm:$0xff]
    %v260 = vld [vmem:[#allocation6 + $0x340] sm:$0xff]
    %v261 = vld [vmem:[#allocation6 + $0x348] sm:$0xff]
    %v262 = vld [vmem:[#allocation6 + $0x350] sm:$0xff]
    %v263 = vld [vmem:[#allocation6 + $0x358] sm:$0xff]
    %v264 = vld [vmem:[#allocation6 + $0x360] sm:$0xff]
    %v265 = vld [vmem:[#allocation6 + $0x368] sm:$0xff]
    %v266 = vld [vmem:[#allocation6 + $0x370] sm:$0xff]
    %v267 = vld [vmem:[#allocation6 + $0x378] sm:$0xff]
    %v268 = vld [vmem:[#allocation6 + $0x380] sm:$0xff]
    %v269 = vld [vmem:[#allocation6 + $0x388] sm:$0xff]
    %v270 = vld [vmem:[#allocation6 + $0x390] sm:$0xff]
    %v271 = vld [vmem:[#allocation6 + $0x398] sm:$0xff]
    %v272 = vld [vmem:[#allocation6 + $0x3a0] sm:$0xff]
    %v273 = vld [vmem:[#allocation6 + $0x3a8] sm:$0xff]
    %v274 = vld [vmem:[#allocation6 + $0x3b0] sm:$0xff]
    %v275 = vld [vmem:[#allocation6 + $0x3b8] sm:$0xff]
    %v276 = vld [vmem:[#allocation6 + $0x3c0] sm:$0xff]
    %v277 = vld [vmem:[#allocation6 + $0x3c8] sm:$0xff]
    %v278 = vld [vmem:[#allocation6 + $0x3d0] sm:$0xff]
    %v279 = vld [vmem:[#allocation6 + $0x3d8] sm:$0xff]
    %v280 = vld [vmem:[#allocation6 + $0x3e0] sm:$0xff]
    %v281 = vld [vmem:[#allocation6 + $0x3e8] sm:$0xff]
    %v282 = vld [vmem:[#allocation6 + $0x3f0] sm:$0xff]
    %v283 = vld [vmem:[#allocation6 + $0x3f8] sm:$0xff]
    %v284 = vld [vmem:[#allocation6 + $0x400] sm:$0xff]
    %v285 = vld [vmem:[#allocation6 + $0x408] sm:$0xff]
    %v286 = vld [vmem:[#allocation6 + $0x410] sm:$0xff]
    %v287 = vld [vmem:[#allocation6 + $0x418] sm:$0xff]
    %v288 = vld [vmem:[#allocation6 + $0x420] sm:$0xff]
    %v289 = vld [vmem:[#allocation6 + $0x428] sm:$0xff]
    %v290 = vld [vmem:[#allocation6 + $0x430] sm:$0xff]
    %v291 = vld [vmem:[#allocation6 + $0x438] sm:$0xff]
    %v292 = vld [vmem:[#allocation6 + $0x440] sm:$0xff]
    %v293 = vld [vmem:[#allocation6 + $0x448] sm:$0xff]
    %v294 = vld [vmem:[#allocation6 + $0x450] sm:$0xff]
    %v295 = vld [vmem:[#allocation6 + $0x458] sm:$0xff]
    %v296 = vld [vmem:[#allocation6 + $0x460] sm:$0xff]
    %v297 = vld [vmem:[#allocation6 + $0x468] sm:$0xff]
    %v298 = vld [vmem:[#allocation6 + $0x470] sm:$0xff]
    %v299 = vld [vmem:[#allocation6 + $0x478] sm:$0xff]
    %v300 = vld [vmem:[#allocation6 + $0x480] sm:$0xff]
    %v301 = vld [vmem:[#allocation6 + $0x488] sm:$0xff]
    %v302 = vld [vmem:[#allocation6 + $0x490] sm:$0xff]
    %v303 = vld [vmem:[#allocation6 + $0x498] sm:$0xff]
    %v304 = vld [vmem:[#allocation6 + $0x4a0] sm:$0xff]
    %v305 = vld [vmem:[#allocation6 + $0x4a8] sm:$0xff]
    %v306 = vld [vmem:[#allocation6 + $0x4b0] sm:$0xff]
    %v307 = vld [vmem:[#allocation6 + $0x4b8] sm:$0xff]
    %v308 = vld [vmem:[#allocation6 + $0x4c0] sm:$0xff]
    %v309 = vld [vmem:[#allocation6 + $0x4c8] sm:$0xff]
    %v310 = vld [vmem:[#allocation6 + $0x4d0] sm:$0xff]
    %v311 = vld [vmem:[#allocation6 + $0x4d8] sm:$0xff]
    %v312 = vld [vmem:[#allocation6 + $0x4e0] sm:$0xff]
    %v313 = vld [vmem:[#allocation6 + $0x4e8] sm:$0xff]
    %v314 = vld [vmem:[#allocation6 + $0x4f0] sm:$0xff]
    %v315 = vld [vmem:[#allocation6 + $0x4f8] sm:$0xff]
    %v316 = vld [vmem:[#allocation6 + $0x500] sm:$0xff]
    %v317 = vld [vmem:[#allocation6 + $0x508] sm:$0xff]
    %v318 = vld [vmem:[#allocation6 + $0x510] sm:$0xff]
    %v319 = vld [vmem:[#allocation6 + $0x518] sm:$0xff]
    %v320 = vld [vmem:[#allocation6 + $0x520] sm:$0xff]
    %v321 = vld [vmem:[#allocation6 + $0x528] sm:$0xff]
    %v322 = vld [vmem:[#allocation6 + $0x530] sm:$0xff]
    %v323 = vld [vmem:[#allocation6 + $0x538] sm:$0xff]
    %v324 = vld [vmem:[#allocation6 + $0x540] sm:$0xff]
    %v325 = vld [vmem:[#allocation6 + $0x548] sm:$0xff]
    %v326 = vld [vmem:[#allocation6 + $0x550] sm:$0xff]
    %v327 = vld [vmem:[#allocation6 + $0x558] sm:$0xff]
    %v328 = vld [vmem:[#allocation6 + $0x560] sm:$0xff]
    %v329 = vld [vmem:[#allocation6 + $0x568] sm:$0xff]
    %v330 = vld [vmem:[#allocation6 + $0x570] sm:$0xff]
    %v331 = vld [vmem:[#allocation6 + $0x578] sm:$0xff]
    %v332 = vld [vmem:[#allocation6 + $0x580] sm:$0xff]
    %v333 = vld [vmem:[#allocation6 + $0x588] sm:$0xff]
    %v334 = vld [vmem:[#allocation6 + $0x590] sm:$0xff]
    %v335 = vld [vmem:[#allocation6 + $0x598] sm:$0xff]
    %v336 = vld [vmem:[#allocation6 + $0x5a0] sm:$0xff]
    %v337 = vld [vmem:[#allocation6 + $0x5a8] sm:$0xff]
    %v338 = vld [vmem:[#allocation6 + $0x5b0] sm:$0xff]
    %v339 = vld [vmem:[#allocation6 + $0x5b8] sm:$0xff]
    %v340 = vld [vmem:[#allocation6 + $0x5c0] sm:$0xff]
    %v341 = vld [vmem:[#allocation6 + $0x5c8] sm:$0xff]
    %v342 = vld [vmem:[#allocation6 + $0x5d0] sm:$0xff]
    %v343 = vld [vmem:[#allocation6 + $0x5d8] sm:$0xff]
    %v344 = vld [vmem:[#allocation6 + $0x5e0] sm:$0xff]
    %v345 = vld [vmem:[#allocation6 + $0x5e8] sm:$0xff]
    %v346 = vld [vmem:[#allocation6 + $0x5f0] sm:$0xff]
    %v347 = vld [vmem:[#allocation6 + $0x5f8] sm:$0xff]
    %v348 = vld [vmem:[#allocation6 + $0x600] sm:$0xff]
    %v349 = vld [vmem:[#allocation6 + $0x608] sm:$0xff]
    %v350 = vld [vmem:[#allocation6 + $0x610] sm:$0xff]
    %v351 = vld [vmem:[#allocation6 + $0x618] sm:$0xff]
    %v352 = vld [vmem:[%s4] sm:$0xf]
    %v354 = vlaneseq
    %v355 = vshrl.u32 %v354, 7
    %v356 = vsub.s32 0, %v355
    %v357 = vrot.slane %v352, %v356
    %v358 = vlaneseq
    %v359 = vshrl.u32 %v358, 7
    %v360 = vsub.s32 1, %v359
    %v361 = vrot.slane %v352, %v360
    %v362 = vlaneseq
    %v363 = vshrl.u32 %v362, 7
    %v364 = vsub.s32 2, %v363
    %v365 = vrot.slane %v352, %v364
    %v366 = vlaneseq
    %v367 = vshrl.u32 %v366, 7
    %v368 = vsub.s32 3, %v367
    %v369 = vrot.slane %v352, %v368
    %v570 = vunpack.c.l.b16 %v156
    %v571 = vunpack.c.h.b16 %v156
    %v572 = vunpack.c.l.b16 %v157
    %v573 = vunpack.c.h.b16 %v157
    %v574 = vunpack.c.l.b16 %v158
    %v575 = vunpack.c.h.b16 %v158
    %v576 = vunpack.c.l.b16 %v159
    %v577 = vunpack.c.h.b16 %v159
    %v578 = vunpack.c.l.b16 %v160
    %v579 = vunpack.c.h.b16 %v160
    %v580 = vunpack.c.l.b16 %v161
    %v581 = vunpack.c.h.b16 %v161
    %v582 = vunpack.c.l.b16 %v162
    %v583 = vunpack.c.h.b16 %v162
    %v584 = vunpack.c.l.b16 %v163
    %v585 = vunpack.c.h.b16 %v163
    %v586 = vunpack.c.l.b16 %v164
    %v587 = vunpack.c.h.b16 %v164
    %v588 = vunpack.c.l.b16 %v165
    %v589 = vunpack.c.h.b16 %v165
    %v590 = vunpack.c.l.b16 %v166
    %v591 = vunpack.c.h.b16 %v166
    %v592 = vunpack.c.l.b16 %v167
    %v593 = vunpack.c.h.b16 %v167
    %v594 = vunpack.c.l.b16 %v168
    %v595 = vunpack.c.h.b16 %v168
    %v596 = vunpack.c.l.b16 %v169
    %v597 = vunpack.c.h.b16 %v169
    %v598 = vunpack.c.l.b16 %v170
    %v599 = vunpack.c.h.b16 %v170
    %v600 = vunpack.c.l.b16 %v171
    %v601 = vunpack.c.h.b16 %v171
    %v602 = vunpack.c.l.b16 %v172
    %v603 = vunpack.c.h.b16 %v172
    %v604 = vunpack.c.l.b16 %v173
    %v605 = vunpack.c.h.b16 %v173
    %v606 = vunpack.c.l.b16 %v174
    %v607 = vunpack.c.h.b16 %v174
    %v608 = vunpack.c.l.b16 %v175
    %v609 = vunpack.c.h.b16 %v175
    %v610 = vunpack.c.l.b16 %v176
    %v611 = vunpack.c.h.b16 %v176
    %v612 = vunpack.c.l.b16 %v177
    %v613 = vunpack.c.h.b16 %v177
    %v614 = vunpack.c.l.b16 %v178
    %v615 = vunpack.c.h.b16 %v178
    %v616 = vunpack.c.l.b16 %v179
    %v617 = vunpack.c.h.b16 %v179
    %v618 = vunpack.c.l.b16 %v180
    %v619 = vunpack.c.h.b16 %v180
    %v620 = vunpack.c.l.b16 %v181
    %v621 = vunpack.c.h.b16 %v181
    %v622 = vunpack.c.l.b16 %v182
    %v623 = vunpack.c.h.b16 %v182
    %v624 = vunpack.c.l.b16 %v183
    %v625 = vunpack.c.h.b16 %v183
    %v626 = vunpack.c.l.b16 %v184
    %v627 = vunpack.c.h.b16 %v184
    %v628 = vunpack.c.l.b16 %v185
    %v629 = vunpack.c.h.b16 %v185
    %v630 = vunpack.c.l.b16 %v186
    %v631 = vunpack.c.h.b16 %v186
    %v632 = vunpack.c.l.b16 %v187
    %v633 = vunpack.c.h.b16 %v187
    %v634 = vunpack.c.l.b16 %v188
    %v635 = vunpack.c.h.b16 %v188
    %v636 = vunpack.c.l.b16 %v189
    %v637 = vunpack.c.h.b16 %v189
    %v638 = vunpack.c.l.b16 %v190
    %v639 = vunpack.c.h.b16 %v190
    %v640 = vunpack.c.l.b16 %v191
    %v641 = vunpack.c.h.b16 %v191
    %v642 = vunpack.c.l.b16 %v192
    %v643 = vunpack.c.h.b16 %v192
    %v644 = vunpack.c.l.b16 %v193
    %v645 = vunpack.c.h.b16 %v193
    %v646 = vunpack.c.l.b16 %v194
    %v647 = vunpack.c.h.b16 %v194
    %v648 = vunpack.c.l.b16 %v195
    %v649 = vunpack.c.h.b16 %v195
    %v650 = vunpack.c.l.b16 %v196
    %v651 = vunpack.c.h.b16 %v196
    %v652 = vunpack.c.l.b16 %v197
    %v653 = vunpack.c.h.b16 %v197
    %v654 = vunpack.c.l.b16 %v198
    %v655 = vunpack.c.h.b16 %v198
    %v656 = vunpack.c.l.b16 %v199
    %v657 = vunpack.c.h.b16 %v199
    %v658 = vunpack.c.l.b16 %v200
    %v659 = vunpack.c.h.b16 %v200
    %v660 = vunpack.c.l.b16 %v201
    %v661 = vunpack.c.h.b16 %v201
    %v662 = vunpack.c.l.b16 %v202
    %v663 = vunpack.c.h.b16 %v202
    %v664 = vunpack.c.l.b16 %v203
    %v665 = vunpack.c.h.b16 %v203
    %v666 = vunpack.c.l.b16 %v204
    %v667 = vunpack.c.h.b16 %v204
    %v668 = vunpack.c.l.b16 %v205
    %v669 = vunpack.c.h.b16 %v205
    %v670 = vunpack.c.l.b16 %v206
    %v671 = vunpack.c.h.b16 %v206
    %v672 = vunpack.c.l.b16 %v207
    %v673 = vunpack.c.h.b16 %v207
    %v674 = vunpack.c.l.b16 %v208
    %v675 = vunpack.c.h.b16 %v208
    %v676 = vunpack.c.l.b16 %v209
    %v677 = vunpack.c.h.b16 %v209
    %v678 = vunpack.c.l.b16 %v210
    %v679 = vunpack.c.h.b16 %v210
    %v680 = vunpack.c.l.b16 %v211
    %v681 = vunpack.c.h.b16 %v211
    %v682 = vunpack.c.l.b16 %v212
    %v683 = vunpack.c.h.b16 %v212
    %v684 = vunpack.c.l.b16 %v213
    %v685 = vunpack.c.h.b16 %v213
    %v686 = vunpack.c.l.b16 %v214
    %v687 = vunpack.c.h.b16 %v214
    %v688 = vunpack.c.l.b16 %v215
    %v689 = vunpack.c.h.b16 %v215
    %v690 = vunpack.c.l.b16 %v216
    %v691 = vunpack.c.h.b16 %v216
    %v692 = vunpack.c.l.b16 %v217
    %v693 = vunpack.c.h.b16 %v217
    %v694 = vunpack.c.l.b16 %v218
    %v695 = vunpack.c.h.b16 %v218
    %v696 = vunpack.c.l.b16 %v219
    %v697 = vunpack.c.h.b16 %v219
    %v698 = vunpack.c.l.b16 %v220
    %v699 = vunpack.c.h.b16 %v220
    %v700 = vunpack.c.l.b16 %v221
    %v701 = vunpack.c.h.b16 %v221
    %v702 = vunpack.c.l.b16 %v222
    %v703 = vunpack.c.h.b16 %v222
    %v704 = vunpack.c.l.b16 %v223
    %v705 = vunpack.c.h.b16 %v223
    %v706 = vunpack.c.l.b16 %v224
    %v707 = vunpack.c.h.b16 %v224
    %v708 = vunpack.c.l.b16 %v225
    %v709 = vunpack.c.h.b16 %v225
    %v710 = vunpack.c.l.b16 %v226
    %v711 = vunpack.c.h.b16 %v226
    %v712 = vunpack.c.l.b16 %v227
    %v713 = vunpack.c.h.b16 %v227
    %v714 = vunpack.c.l.b16 %v228
    %v715 = vunpack.c.h.b16 %v228
    %v716 = vunpack.c.l.b16 %v229
    %v717 = vunpack.c.h.b16 %v229
    %v718 = vunpack.c.l.b16 %v230
    %v719 = vunpack.c.h.b16 %v230
    %v720 = vunpack.c.l.b16 %v231
    %v721 = vunpack.c.h.b16 %v231
    %v722 = vunpack.c.l.b16 %v232
    %v723 = vunpack.c.h.b16 %v232
    %v724 = vunpack.c.l.b16 %v233
    %v725 = vunpack.c.h.b16 %v233
    %v726 = vunpack.c.l.b16 %v234
    %v727 = vunpack.c.h.b16 %v234
    %v728 = vunpack.c.l.b16 %v235
    %v729 = vunpack.c.h.b16 %v235
    %v730 = vunpack.c.l.b16 %v236
    %v731 = vunpack.c.h.b16 %v236
    %v732 = vunpack.c.l.b16 %v237
    %v733 = vunpack.c.h.b16 %v237
    %v734 = vunpack.c.l.b16 %v238
    %v735 = vunpack.c.h.b16 %v238
    %v736 = vunpack.c.l.b16 %v239
    %v737 = vunpack.c.h.b16 %v239
    %v738 = vunpack.c.l.b16 %v240
    %v739 = vunpack.c.h.b16 %v240
    %v740 = vunpack.c.l.b16 %v241
    %v741 = vunpack.c.h.b16 %v241
    %v742 = vunpack.c.l.b16 %v242
    %v743 = vunpack.c.h.b16 %v242
    %v744 = vunpack.c.l.b16 %v243
    %v745 = vunpack.c.h.b16 %v243
    %v746 = vunpack.c.l.b16 %v244
    %v747 = vunpack.c.h.b16 %v244
    %v748 = vunpack.c.l.b16 %v245
    %v749 = vunpack.c.h.b16 %v245
    %v750 = vunpack.c.l.b16 %v246
    %v751 = vunpack.c.h.b16 %v246
    %v752 = vunpack.c.l.b16 %v247
    %v753 = vunpack.c.h.b16 %v247
    %v754 = vunpack.c.l.b16 %v248
    %v755 = vunpack.c.h.b16 %v248
    %v756 = vunpack.c.l.b16 %v249
    %v757 = vunpack.c.h.b16 %v249
    %v758 = vunpack.c.l.b16 %v250
    %v759 = vunpack.c.h.b16 %v250
    %v760 = vunpack.c.l.b16 %v251
    %v761 = vunpack.c.h.b16 %v251
    %v762 = vunpack.c.l.b16 %v252
    %v763 = vunpack.c.h.b16 %v252
    %v764 = vunpack.c.l.b16 %v253
    %v765 = vunpack.c.h.b16 %v253
    %v766 = vunpack.c.l.b16 %v254
    %v767 = vunpack.c.h.b16 %v254
    %v768 = vunpack.c.l.b16 %v255
    %v769 = vunpack.c.h.b16 %v255
    %v770 = vunpack.c.l.b16 %v256
    %v771 = vunpack.c.h.b16 %v256
    %v772 = vunpack.c.l.b16 %v257
    %v773 = vunpack.c.h.b16 %v257
    %v774 = vunpack.c.l.b16 %v258
    %v775 = vunpack.c.h.b16 %v258
    %v776 = vunpack.c.l.b16 %v259
    %v777 = vunpack.c.h.b16 %v259
    %v778 = vunpack.c.l.b16 %v260
    %v779 = vunpack.c.h.b16 %v260
    %v780 = vunpack.c.l.b16 %v261
    %v781 = vunpack.c.h.b16 %v261
    %v782 = vunpack.c.l.b16 %v262
    %v783 = vunpack.c.h.b16 %v262
    %v784 = vunpack.c.l.b16 %v263
    %v785 = vunpack.c.h.b16 %v263
    %v786 = vunpack.c.l.b16 %v264
    %v787 = vunpack.c.h.b16 %v264
    %v788 = vunpack.c.l.b16 %v265
    %v789 = vunpack.c.h.b16 %v265
    %v790 = vunpack.c.l.b16 %v266
    %v791 = vunpack.c.h.b16 %v266
    %v792 = vunpack.c.l.b16 %v267
    %v793 = vunpack.c.h.b16 %v267
    %v794 = vunpack.c.l.b16 %v268
    %v795 = vunpack.c.h.b16 %v268
    %v796 = vunpack.c.l.b16 %v269
    %v797 = vunpack.c.h.b16 %v269
    %v798 = vunpack.c.l.b16 %v270
    %v799 = vunpack.c.h.b16 %v270
    %v800 = vunpack.c.l.b16 %v271
    %v801 = vunpack.c.h.b16 %v271
    %v802 = vunpack.c.l.b16 %v272
    %v803 = vunpack.c.h.b16 %v272
    %v804 = vunpack.c.l.b16 %v273
    %v805 = vunpack.c.h.b16 %v273
    %v806 = vunpack.c.l.b16 %v274
    %v807 = vunpack.c.h.b16 %v274
    %v808 = vunpack.c.l.b16 %v275
    %v809 = vunpack.c.h.b16 %v275
    %v810 = vunpack.c.l.b16 %v276
    %v811 = vunpack.c.h.b16 %v276
    %v812 = vunpack.c.l.b16 %v277
    %v813 = vunpack.c.h.b16 %v277
    %v814 = vunpack.c.l.b16 %v278
    %v815 = vunpack.c.h.b16 %v278
    %v816 = vunpack.c.l.b16 %v279
    %v817 = vunpack.c.h.b16 %v279
    %v818 = vunpack.c.l.b16 %v280
    %v819 = vunpack.c.h.b16 %v280
    %v820 = vunpack.c.l.b16 %v281
    %v821 = vunpack.c.h.b16 %v281
    %v822 = vunpack.c.l.b16 %v282
    %v823 = vunpack.c.h.b16 %v282
    %v824 = vunpack.c.l.b16 %v283
    %v825 = vunpack.c.h.b16 %v283
    %v826 = vunpack.c.l.b16 %v284
    %v827 = vunpack.c.h.b16 %v284
    %v828 = vunpack.c.l.b16 %v285
    %v829 = vunpack.c.h.b16 %v285
    %v830 = vunpack.c.l.b16 %v286
    %v831 = vunpack.c.h.b16 %v286
    %v832 = vunpack.c.l.b16 %v287
    %v833 = vunpack.c.h.b16 %v287
    %v834 = vunpack.c.l.b16 %v288
    %v835 = vunpack.c.h.b16 %v288
    %v836 = vunpack.c.l.b16 %v289
    %v837 = vunpack.c.h.b16 %v289
    %v838 = vunpack.c.l.b16 %v290
    %v839 = vunpack.c.h.b16 %v290
    %v840 = vunpack.c.l.b16 %v291
    %v841 = vunpack.c.h.b16 %v291
    %v842 = vunpack.c.l.b16 %v292
    %v843 = vunpack.c.h.b16 %v292
    %v844 = vunpack.c.l.b16 %v293
    %v845 = vunpack.c.h.b16 %v293
    %v846 = vunpack.c.l.b16 %v294
    %v847 = vunpack.c.h.b16 %v294
    %v848 = vunpack.c.l.b16 %v295
    %v849 = vunpack.c.h.b16 %v295
    %v850 = vunpack.c.l.b16 %v296
    %v851 = vunpack.c.h.b16 %v296
    %v852 = vunpack.c.l.b16 %v297
    %v853 = vunpack.c.h.b16 %v297
    %v854 = vunpack.c.l.b16 %v298
    %v855 = vunpack.c.h.b16 %v298
    %v856 = vunpack.c.l.b16 %v299
    %v857 = vunpack.c.h.b16 %v299
    %v858 = vunpack.c.l.b16 %v300
    %v859 = vunpack.c.h.b16 %v300
    %v860 = vunpack.c.l.b16 %v301
    %v861 = vunpack.c.h.b16 %v301
    %v862 = vunpack.c.l.b16 %v302
    %v863 = vunpack.c.h.b16 %v302
    %v864 = vunpack.c.l.b16 %v303
    %v865 = vunpack.c.h.b16 %v303
    %v866 = vunpack.c.l.b16 %v304
    %v867 = vunpack.c.h.b16 %v304
    %v868 = vunpack.c.l.b16 %v305
    %v869 = vunpack.c.h.b16 %v305
    %v870 = vunpack.c.l.b16 %v306
    %v871 = vunpack.c.h.b16 %v306
    %v872 = vunpack.c.l.b16 %v307
    %v873 = vunpack.c.h.b16 %v307
    %v874 = vunpack.c.l.b16 %v308
    %v875 = vunpack.c.h.b16 %v308
    %v876 = vunpack.c.l.b16 %v309
    %v877 = vunpack.c.h.b16 %v309
    %v878 = vunpack.c.l.b16 %v310
    %v879 = vunpack.c.h.b16 %v310
    %v880 = vunpack.c.l.b16 %v311
    %v881 = vunpack.c.h.b16 %v311
    %v882 = vunpack.c.l.b16 %v312
    %v883 = vunpack.c.h.b16 %v312
    %v884 = vunpack.c.l.b16 %v313
    %v885 = vunpack.c.h.b16 %v313
    %v886 = vunpack.c.l.b16 %v314
    %v887 = vunpack.c.h.b16 %v314
    %v888 = vunpack.c.l.b16 %v315
    %v889 = vunpack.c.h.b16 %v315
    %v890 = vunpack.c.l.b16 %v316
    %v891 = vunpack.c.h.b16 %v316
    %v892 = vunpack.c.l.b16 %v317
    %v893 = vunpack.c.h.b16 %v317
    %v894 = vunpack.c.l.b16 %v318
    %v895 = vunpack.c.h.b16 %v318
    %v896 = vunpack.c.l.b16 %v319
    %v897 = vunpack.c.h.b16 %v319
    %v898 = vunpack.c.l.b16 %v320
    %v899 = vunpack.c.h.b16 %v320
    %v900 = vunpack.c.l.b16 %v321
    %v901 = vunpack.c.h.b16 %v321
    %v902 = vunpack.c.l.b16 %v322
    %v903 = vunpack.c.h.b16 %v322
    %v904 = vunpack.c.l.b16 %v323
    %v905 = vunpack.c.h.b16 %v323
    %v906 = vunpack.c.l.b16 %v324
    %v907 = vunpack.c.h.b16 %v324
    %v908 = vunpack.c.l.b16 %v325
    %v909 = vunpack.c.h.b16 %v325
    %v910 = vunpack.c.l.b16 %v326
    %v911 = vunpack.c.h.b16 %v326
    %v912 = vunpack.c.l.b16 %v327
    %v913 = vunpack.c.h.b16 %v327
    %v914 = vunpack.c.l.b16 %v328
    %v915 = vunpack.c.h.b16 %v328
    %v916 = vunpack.c.l.b16 %v329
    %v917 = vunpack.c.h.b16 %v329
    %v918 = vunpack.c.l.b16 %v330
    %v919 = vunpack.c.h.b16 %v330
    %v920 = vunpack.c.l.b16 %v331
    %v921 = vunpack.c.h.b16 %v331
    %v922 = vunpack.c.l.b16 %v332
    %v923 = vunpack.c.h.b16 %v332
    %v924 = vunpack.c.l.b16 %v333
    %v925 = vunpack.c.h.b16 %v333
    %v926 = vunpack.c.l.b16 %v334
    %v927 = vunpack.c.h.b16 %v334
    %v928 = vunpack.c.l.b16 %v335
    %v929 = vunpack.c.h.b16 %v335
    %v930 = vunpack.c.l.b16 %v336
    %v931 = vunpack.c.h.b16 %v336
    %v932 = vunpack.c.l.b16 %v337
    %v933 = vunpack.c.h.b16 %v337
    %v934 = vunpack.c.l.b16 %v338
    %v935 = vunpack.c.h.b16 %v338
    %v936 = vunpack.c.l.b16 %v339
    %v937 = vunpack.c.h.b16 %v339
    %v938 = vunpack.c.l.b16 %v340
    %v939 = vunpack.c.h.b16 %v340
    %v940 = vunpack.c.l.b16 %v341
    %v941 = vunpack.c.h.b16 %v341
    %v942 = vunpack.c.l.b16 %v342
    %v943 = vunpack.c.h.b16 %v342
    %v944 = vunpack.c.l.b16 %v343
    %v945 = vunpack.c.h.b16 %v343
    %v946 = vunpack.c.l.b16 %v344
    %v947 = vunpack.c.h.b16 %v344
    %v948 = vunpack.c.l.b16 %v345
    %v949 = vunpack.c.h.b16 %v345
    %v950 = vunpack.c.l.b16 %v346
    %v951 = vunpack.c.h.b16 %v346
    %v952 = vunpack.c.l.b16 %v347
    %v953 = vunpack.c.h.b16 %v347
    %v954 = vunpack.c.l.b16 %v348
    %v955 = vunpack.c.h.b16 %v348
    %v956 = vunpack.c.l.b16 %v349
    %v957 = vunpack.c.h.b16 %v349
    %v958 = vunpack.c.l.b16 %v350
    %v959 = vunpack.c.h.b16 %v350
    %v960 = vunpack.c.l.b16 %v351
    %v961 = vunpack.c.h.b16 %v351
    %v962 = vpack.c.b16 %v574, %v570
    %v963 = vpack.c.b16 %v575, %v571
    %v964 = vpack.c.b16 %v576, %v572
    %v965 = vpack.c.b16 %v577, %v573
    %v966 = vpack.c.b16 %v582, %v578
    %v967 = vpack.c.b16 %v583, %v579
    %v968 = vpack.c.b16 %v584, %v580
    %v969 = vpack.c.b16 %v585, %v581
    %v970 = vpack.c.b16 %v590, %v586
    %v971 = vpack.c.b16 %v591, %v587
    %v972 = vpack.c.b16 %v592, %v588
    %v973 = vpack.c.b16 %v593, %v589
    %v974 = vpack.c.b16 %v598, %v594
    %v975 = vpack.c.b16 %v599, %v595
    %v976 = vpack.c.b16 %v600, %v596
    %v977 = vpack.c.b16 %v601, %v597
    %v978 = vpack.c.b16 %v606, %v602
    %v979 = vpack.c.b16 %v607, %v603
    %v980 = vpack.c.b16 %v608, %v604
    %v981 = vpack.c.b16 %v609, %v605
    %v982 = vpack.c.b16 %v614, %v610
    %v983 = vpack.c.b16 %v615, %v611
    %v984 = vpack.c.b16 %v616, %v612
    %v985 = vpack.c.b16 %v617, %v613
    %v986 = vpack.c.b16 %v622, %v618
    %v987 = vpack.c.b16 %v623, %v619
    %v988 = vpack.c.b16 %v624, %v620
    %v989 = vpack.c.b16 %v625, %v621
    %v990 = vpack.c.b16 %v630, %v626
    %v991 = vpack.c.b16 %v631, %v627
    %v992 = vpack.c.b16 %v632, %v628
    %v993 = vpack.c.b16 %v633, %v629
    %v994 = vpack.c.b16 %v638, %v634
    %v995 = vpack.c.b16 %v639, %v635
    %v996 = vpack.c.b16 %v640, %v636
    %v997 = vpack.c.b16 %v641, %v637
    %v998 = vpack.c.b16 %v646, %v642
    %v999 = vpack.c.b16 %v647, %v643
    %v1000 = vpack.c.b16 %v648, %v644
    %v1001 = vpack.c.b16 %v649, %v645
    %v1002 = vpack.c.b16 %v654, %v650
    %v1003 = vpack.c.b16 %v655, %v651
    %v1004 = vpack.c.b16 %v656, %v652
    %v1005 = vpack.c.b16 %v657, %v653
    %v1006 = vpack.c.b16 %v662, %v658
    %v1007 = vpack.c.b16 %v663, %v659
    %v1008 = vpack.c.b16 %v664, %v660
    %v1009 = vpack.c.b16 %v665, %v661
    %v1010 = vpack.c.b16 %v670, %v666
    %v1011 = vpack.c.b16 %v671, %v667
    %v1012 = vpack.c.b16 %v672, %v668
    %v1013 = vpack.c.b16 %v673, %v669
    %v1014 = vpack.c.b16 %v678, %v674
    %v1015 = vpack.c.b16 %v679, %v675
    %v1016 = vpack.c.b16 %v680, %v676
    %v1017 = vpack.c.b16 %v681, %v677
    %v1018 = vpack.c.b16 %v686, %v682
    %v1019 = vpack.c.b16 %v687, %v683
    %v1020 = vpack.c.b16 %v688, %v684
    %v1021 = vpack.c.b16 %v689, %v685
    %v1022 = vpack.c.b16 %v694, %v690
    %v1023 = vpack.c.b16 %v695, %v691
    %v1024 = vpack.c.b16 %v696, %v692
    %v1025 = vpack.c.b16 %v697, %v693
    %v1026 = vpack.c.b16 %v702, %v698
    %v1027 = vpack.c.b16 %v703, %v699
    %v1028 = vpack.c.b16 %v704, %v700
    %v1029 = vpack.c.b16 %v705, %v701
    %v1030 = vpack.c.b16 %v710, %v706
    %v1031 = vpack.c.b16 %v711, %v707
    %v1032 = vpack.c.b16 %v712, %v708
    %v1033 = vpack.c.b16 %v713, %v709
    %v1034 = vpack.c.b16 %v718, %v714
    %v1035 = vpack.c.b16 %v719, %v715
    %v1036 = vpack.c.b16 %v720, %v716
    %v1037 = vpack.c.b16 %v721, %v717
    %v1038 = vpack.c.b16 %v726, %v722
    %v1039 = vpack.c.b16 %v727, %v723
    %v1040 = vpack.c.b16 %v728, %v724
    %v1041 = vpack.c.b16 %v729, %v725
    %v1042 = vpack.c.b16 %v734, %v730
    %v1043 = vpack.c.b16 %v735, %v731
    %v1044 = vpack.c.b16 %v736, %v732
    %v1045 = vpack.c.b16 %v737, %v733
    %v1046 = vpack.c.b16 %v742, %v738
    %v1047 = vpack.c.b16 %v743, %v739
    %v1048 = vpack.c.b16 %v744, %v740
    %v1049 = vpack.c.b16 %v745, %v741
    %v1050 = vpack.c.b16 %v750, %v746
    %v1051 = vpack.c.b16 %v751, %v747
    %v1052 = vpack.c.b16 %v752, %v748
    %v1053 = vpack.c.b16 %v753, %v749
    %v1054 = vpack.c.b16 %v758, %v754
    %v1055 = vpack.c.b16 %v759, %v755
    %v1056 = vpack.c.b16 %v760, %v756
    %v1057 = vpack.c.b16 %v761, %v757
    %v1058 = vpack.c.b16 %v766, %v762
    %v1059 = vpack.c.b16 %v767, %v763
    %v1060 = vpack.c.b16 %v768, %v764
    %v1061 = vpack.c.b16 %v769, %v765
    %v1062 = vpack.c.b16 %v774, %v770
    %v1063 = vpack.c.b16 %v775, %v771
    %v1064 = vpack.c.b16 %v776, %v772
    %v1065 = vpack.c.b16 %v777, %v773
    %v1066 = vpack.c.b16 %v782, %v778
    %v1067 = vpack.c.b16 %v783, %v779
    %v1068 = vpack.c.b16 %v784, %v780
    %v1069 = vpack.c.b16 %v785, %v781
    %v1070 = vpack.c.b16 %v790, %v786
    %v1071 = vpack.c.b16 %v791, %v787
    %v1072 = vpack.c.b16 %v792, %v788
    %v1073 = vpack.c.b16 %v793, %v789
    %v1074 = vpack.c.b16 %v798, %v794
    %v1075 = vpack.c.b16 %v799, %v795
    %v1076 = vpack.c.b16 %v800, %v796
    %v1077 = vpack.c.b16 %v801, %v797
    %v1078 = vpack.c.b16 %v806, %v802
    %v1079 = vpack.c.b16 %v807, %v803
    %v1080 = vpack.c.b16 %v808, %v804
    %v1081 = vpack.c.b16 %v809, %v805
    %v1082 = vpack.c.b16 %v814, %v810
    %v1083 = vpack.c.b16 %v815, %v811
    %v1084 = vpack.c.b16 %v816, %v812
    %v1085 = vpack.c.b16 %v817, %v813
    %v1086 = vpack.c.b16 %v822, %v818
    %v1087 = vpack.c.b16 %v823, %v819
    %v1088 = vpack.c.b16 %v824, %v820
    %v1089 = vpack.c.b16 %v825, %v821
    %v1090 = vpack.c.b16 %v830, %v826
    %v1091 = vpack.c.b16 %v831, %v827
    %v1092 = vpack.c.b16 %v832, %v828
    %v1093 = vpack.c.b16 %v833, %v829
    %v1094 = vpack.c.b16 %v838, %v834
    %v1095 = vpack.c.b16 %v839, %v835
    %v1096 = vpack.c.b16 %v840, %v836
    %v1097 = vpack.c.b16 %v841, %v837
    %v1098 = vpack.c.b16 %v846, %v842
    %v1099 = vpack.c.b16 %v847, %v843
    %v1100 = vpack.c.b16 %v848, %v844
    %v1101 = vpack.c.b16 %v849, %v845
    %v1102 = vpack.c.b16 %v854, %v850
    %v1103 = vpack.c.b16 %v855, %v851
    %v1104 = vpack.c.b16 %v856, %v852
    %v1105 = vpack.c.b16 %v857, %v853
    %v1106 = vpack.c.b16 %v862, %v858
    %v1107 = vpack.c.b16 %v863, %v859
    %v1108 = vpack.c.b16 %v864, %v860
    %v1109 = vpack.c.b16 %v865, %v861
    %v1110 = vpack.c.b16 %v870, %v866
    %v1111 = vpack.c.b16 %v871, %v867
    %v1112 = vpack.c.b16 %v872, %v868
    %v1113 = vpack.c.b16 %v873, %v869
    %v1114 = vpack.c.b16 %v878, %v874
    %v1115 = vpack.c.b16 %v879, %v875
    %v1116 = vpack.c.b16 %v880, %v876
    %v1117 = vpack.c.b16 %v881, %v877
    %v1118 = vpack.c.b16 %v886, %v882
    %v1119 = vpack.c.b16 %v887, %v883
    %v1120 = vpack.c.b16 %v888, %v884
    %v1121 = vpack.c.b16 %v889, %v885
    %v1122 = vpack.c.b16 %v894, %v890
    %v1123 = vpack.c.b16 %v895, %v891
    %v1124 = vpack.c.b16 %v896, %v892
    %v1125 = vpack.c.b16 %v897, %v893
    %v1126 = vpack.c.b16 %v902, %v898
    %v1127 = vpack.c.b16 %v903, %v899
    %v1128 = vpack.c.b16 %v904, %v900
    %v1129 = vpack.c.b16 %v905, %v901
    %v1130 = vpack.c.b16 %v910, %v906
    %v1131 = vpack.c.b16 %v911, %v907
    %v1132 = vpack.c.b16 %v912, %v908
    %v1133 = vpack.c.b16 %v913, %v909
    %v1134 = vpack.c.b16 %v918, %v914
    %v1135 = vpack.c.b16 %v919, %v915
    %v1136 = vpack.c.b16 %v920, %v916
    %v1137 = vpack.c.b16 %v921, %v917
    %v1138 = vpack.c.b16 %v926, %v922
    %v1139 = vpack.c.b16 %v927, %v923
    %v1140 = vpack.c.b16 %v928, %v924
    %v1141 = vpack.c.b16 %v929, %v925
    %v1142 = vpack.c.b16 %v934, %v930
    %v1143 = vpack.c.b16 %v935, %v931
    %v1144 = vpack.c.b16 %v936, %v932
    %v1145 = vpack.c.b16 %v937, %v933
    %v1146 = vpack.c.b16 %v942, %v938
    %v1147 = vpack.c.b16 %v943, %v939
    %v1148 = vpack.c.b16 %v944, %v940
    %v1149 = vpack.c.b16 %v945, %v941
    %v1150 = vpack.c.b16 %v950, %v946
    %v1151 = vpack.c.b16 %v951, %v947
    %v1152 = vpack.c.b16 %v952, %v948
    %v1153 = vpack.c.b16 %v953, %v949
    %v1154 = vpack.c.b16 %v958, %v954
    %v1155 = vpack.c.b16 %v959, %v955
    %v1156 = vpack.c.b16 %v960, %v956
    %v1157 = vpack.c.b16 %v961, %v957
    %vm1354 = vcmask 130048
    %v1356 = vsel %vm1354, %v155, 0
    %1358 = vmatprep.subr.bf16.mxu0 %v991
    %1359 = vmatpush1.bf16.msra.mxu0 %v990
    %1360 = vmatprep.subr.bf16.mxu0 %v987
    %1361 = vmatpush1.bf16.msra.mxu0 %v986
    %1362 = vmatprep.subr.bf16.mxu0 %v983
    %1363 = vmatpush1.bf16.msra.mxu0 %v982
    %1364 = vmatprep.subr.bf16.mxu0 %v979
    %1365 = vmatpush1.bf16.msra.mxu0 %v978
    %1366 = vmatprep.subr.bf16.mxu0 %v975
    %1367 = vmatpush1.bf16.msra.mxu0 %v974
    %1368 = vmatprep.subr.bf16.mxu0 %v971
    %1369 = vmatpush1.bf16.msra.mxu0 %v970
    %1370 = vmatprep.subr.bf16.mxu0 %v967
    %1371 = vmatpush1.bf16.msra.mxu0 %v966
    %1372 = vmatprep.subr.bf16.mxu0 %v963
    %1373 = vmatpush1.bf16.msra.mxu0 %v962
    %1374 = vmatprep.subr.bf16.mxu0 %v1023
    %1375 = vmatpush2.bf16.msra.mxu0 %v1022
    %1376 = vmatprep.subr.bf16.mxu0 %v1019
    %1377 = vmatpush2.bf16.msra.mxu0 %v1018
    %1378 = vmatprep.subr.bf16.mxu0 %v1015
    %1379 = vmatpush2.bf16.msra.mxu0 %v1014
    %1380 = vmatprep.subr.bf16.mxu0 %v1011
    %1381 = vmatpush2.bf16.msra.mxu0 %v1010
    %1382 = vmatprep.subr.bf16.mxu0 %v1007
    %1383 = vmatpush2.bf16.msra.mxu0 %v1006
    %1384 = vmatprep.subr.bf16.mxu0 %v1003
    %1385 = vmatpush2.bf16.msra.mxu0 %v1002
    %1386 = vmatprep.subr.bf16.mxu0 %v999
    %1387 = vmatpush2.bf16.msra.mxu0 %v998
    %1388 = vmatprep.subr.bf16.mxu0 %v995
    %1389 = vmatpush2.bf16.msra.mxu0 %v994
    %1390 = vmatprep.mubr.bf16.mxu0 %v150
    %1391 = vmatmul.mubr.bf16.gmra.mxu0 %v149
    %v1392 = vpop.f32.mrf.mxu0
    %v1393 = vadd.f32 %v357, %v1392
    %v1394 = vpop.f32.mrf.mxu0
    %v1395 = vadd.f32 %v361, %v1394
    %v1396 = vpop.f32.mrf.mxu0
    %v1397 = vpop.f32.mrf.mxu0
    %1398 = vdwg.mxu0
    %1399 = vmatprep.subr.bf16.mxu0 %v1055
    %1400 = vmatpush1.bf16.msra.mxu0 %v1054
    %1401 = vmatprep.subr.bf16.mxu0 %v1051
    %1402 = vmatpush1.bf16.msra.mxu0 %v1050
    %1403 = vmatprep.subr.bf16.mxu0 %v1047
    %1404 = vmatpush1.bf16.msra.mxu0 %v1046
    %1405 = vmatprep.subr.bf16.mxu0 %v1043
    %1406 = vmatpush1.bf16.msra.mxu0 %v1042
    %1407 = vmatprep.subr.bf16.mxu0 %v1039
    %1408 = vmatpush1.bf16.msra.mxu0 %v1038
    %1409 = vmatprep.subr.bf16.mxu0 %v1035
    %1410 = vmatpush1.bf16.msra.mxu0 %v1034
    %1411 = vmatprep.subr.bf16.mxu0 %v1031
    %1412 = vmatpush1.bf16.msra.mxu0 %v1030
    %1413 = vmatprep.subr.bf16.mxu0 %v1027
    %1414 = vmatpush1.bf16.msra.mxu0 %v1026
    %1415 = vmatprep.subr.bf16.mxu0 %v1087
    %1416 = vmatpush2.bf16.msra.mxu0 %v1086
    %1417 = vmatprep.subr.bf16.mxu0 %v1083
    %1418 = vmatpush2.bf16.msra.mxu0 %v1082
    %1419 = vmatprep.subr.bf16.mxu0 %v1079
    %1420 = vmatpush2.bf16.msra.mxu0 %v1078
    %1421 = vmatprep.subr.bf16.mxu0 %v1075
    %1422 = vmatpush2.bf16.msra.mxu0 %v1074
    %1423 = vmatprep.subr.bf16.mxu0 %v1071
    %1424 = vmatpush2.bf16.msra.mxu0 %v1070
    %1425 = vmatprep.subr.bf16.mxu0 %v1067
    %1426 = vmatpush2.bf16.msra.mxu0 %v1066
    %1427 = vmatprep.subr.bf16.mxu0 %v1063
    %1428 = vmatpush2.bf16.msra.mxu0 %v1062
    %1429 = vmatprep.subr.bf16.mxu0 %v1059
    %1430 = vmatpush2.bf16.msra.mxu0 %v1058
    %1431 = vmatprep.mubr.bf16.mxu0 %v152
    %1432 = vmatmul.mubr.bf16.gmra.mxu0 %v151
    %v1433 = vpop.f32.mrf.mxu0
    %v1434 = vadd.f32 %v1393, %v1433
    %v1435 = vpop.f32.mrf.mxu0
    %v1436 = vadd.f32 %v1395, %v1435
    %v1437 = vpop.f32.mrf.mxu0
    %v1438 = vpop.f32.mrf.mxu0
    %1439 = vdwg.mxu0
    %1440 = vmatprep.subr.bf16.mxu0 %v1119
    %1441 = vmatpush1.bf16.msra.mxu0 %v1118
    %1442 = vmatprep.subr.bf16.mxu0 %v1115
    %1443 = vmatpush1.bf16.msra.mxu0 %v1114
    %1444 = vmatprep.subr.bf16.mxu0 %v1111
    %1445 = vmatpush1.bf16.msra.mxu0 %v1110
    %1446 = vmatprep.subr.bf16.mxu0 %v1107
    %1447 = vmatpush1.bf16.msra.mxu0 %v1106
    %1448 = vmatprep.subr.bf16.mxu0 %v1103
    %1449 = vmatpush1.bf16.msra.mxu0 %v1102
    %1450 = vmatprep.subr.bf16.mxu0 %v1099
    %1451 = vmatpush1.bf16.msra.mxu0 %v1098
    %1452 = vmatprep.subr.bf16.mxu0 %v1095
    %1453 = vmatpush1.bf16.msra.mxu0 %v1094
    %1454 = vmatprep.subr.bf16.mxu0 %v1091
    %1455 = vmatpush1.bf16.msra.mxu0 %v1090
    %1456 = vmatprep.subr.bf16.mxu0 %v1151
    %1457 = vmatpush2.bf16.msra.mxu0 %v1150
    %1458 = vmatprep.subr.bf16.mxu0 %v1147
    %1459 = vmatpush2.bf16.msra.mxu0 %v1146
    %1460 = vmatprep.subr.bf16.mxu0 %v1143
    %1461 = vmatpush2.bf16.msra.mxu0 %v1142
    %1462 = vmatprep.subr.bf16.mxu0 %v1139
    %1463 = vmatpush2.bf16.msra.mxu0 %v1138
    %1464 = vmatprep.subr.bf16.mxu0 %v1135
    %1465 = vmatpush2.bf16.msra.mxu0 %v1134
    %1466 = vmatprep.subr.bf16.mxu0 %v1131
    %1467 = vmatpush2.bf16.msra.mxu0 %v1130
    %1468 = vmatprep.subr.bf16.mxu0 %v1127
    %1469 = vmatpush2.bf16.msra.mxu0 %v1126
    %1470 = vmatprep.subr.bf16.mxu0 %v1123
    %1471 = vmatpush2.bf16.msra.mxu0 %v1122
    %1472 = vmatprep.mubr.bf16.mxu0 %v154
    %1473 = vmatmul.mubr.bf16.gmra.mxu0 %v153
    %v1474 = vpop.f32.mrf.mxu0
    %v1475 = vadd.f32 %v1434, %v1474
    %v1476 = vpop.f32.mrf.mxu0
    %v1477 = vadd.f32 %v1436, %v1476
    %v1478 = vpop.f32.mrf.mxu0
    %v1479 = vpop.f32.mrf.mxu0
    %1480 = vdwg.mxu0
    %1481 = vmatprep.subr.bf16.mxu0 0
    %1482 = vmatpush1.bf16.msra.mxu0 0
    %1483 = vmatprep.subr.bf16.mxu0 0
    %1484 = vmatpush1.bf16.msra.mxu0 0
    %1485 = vmatprep.subr.bf16.mxu0 0
    %1486 = vmatpush1.bf16.msra.mxu0 0
    %1487 = vmatprep.subr.bf16.mxu0 0
    %1488 = vmatpush1.bf16.msra.mxu0 0
    %1489 = vmatprep.subr.bf16.mxu0 0
    %1490 = vmatpush1.bf16.msra.mxu0 0
    %1491 = vmatprep.subr.bf16.mxu0 0
    %1492 = vmatpush1.bf16.msra.mxu0 0
    %1493 = vmatprep.subr.bf16.mxu0 0
    %1494 = vmatpush1.bf16.msra.mxu0 0
    %1495 = vmatprep.subr.bf16.mxu0 %v1155
    %1496 = vmatpush1.bf16.msra.mxu0 %v1154
    %1497 = vmatprep.subr.bf16.mxu0 0
    %1498 = vmatpush2.bf16.msra.mxu0 0
    %1499 = vmatprep.subr.bf16.mxu0 0
    %1500 = vmatpush2.bf16.msra.mxu0 0
    %1501 = vmatprep.subr.bf16.mxu0 0
    %1502 = vmatpush2.bf16.msra.mxu0 0
    %1503 = vmatprep.subr.bf16.mxu0 0
    %1504 = vmatpush2.bf16.msra.mxu0 0
    %1505 = vmatprep.subr.bf16.mxu0 0
    %1506 = vmatpush2.bf16.msra.mxu0 0
    %1507 = vmatprep.subr.bf16.mxu0 0
    %1508 = vmatpush2.bf16.msra.mxu0 0
    %1509 = vmatprep.subr.bf16.mxu0 0
    %1510 = vmatpush2.bf16.msra.mxu0 0
    %1511 = vmatprep.subr.bf16.mxu0 0
    %1512 = vmatpush2.bf16.msra.mxu0 0
    %1513 = vmatprep.mubr.bf16.mxu0 0
    %1514 = vmatmul.mubr.bf16.gmra.mxu0 %v1356
    %v1515 = vpop.f32.mrf.mxu0
    %v1516 = vadd.f32 %v1475, %v1515
    %v1517 = vpop.f32.mrf.mxu0
    %v1518 = vadd.f32 %v1477, %v1517
    %v1519 = vpop.f32.mrf.mxu0
    %v1520 = vpop.f32.mrf.mxu0
    %1521 = vdwg.mxu0
    %1522 = vmatprep.subr.bf16.mxu0 %v993
    %1523 = vmatpush1.bf16.msra.mxu0 %v992
    %1524 = vmatprep.subr.bf16.mxu0 %v989
    %1525 = vmatpush1.bf16.msra.mxu0 %v988
    %1526 = vmatprep.subr.bf16.mxu0 %v985
    %1527 = vmatpush1.bf16.msra.mxu0 %v984
    %1528 = vmatprep.subr.bf16.mxu0 %v981
    %1529 = vmatpush1.bf16.msra.mxu0 %v980
    %1530 = vmatprep.subr.bf16.mxu0 %v977
    %1531 = vmatpush1.bf16.msra.mxu0 %v976
    %1532 = vmatprep.subr.bf16.mxu0 %v973
    %1533 = vmatpush1.bf16.msra.mxu0 %v972
    %1534 = vmatprep.subr.bf16.mxu0 %v969
    %1535 = vmatpush1.bf16.msra.mxu0 %v968
    %1536 = vmatprep.subr.bf16.mxu0 %v965
    %1537 = vmatpush1.bf16.msra.mxu0 %v964
    %1538 = vmatprep.subr.bf16.mxu0 %v1025
    %1539 = vmatpush2.bf16.msra.mxu0 %v1024
    %1540 = vmatprep.subr.bf16.mxu0 %v1021
    %1541 = vmatpush2.bf16.msra.mxu0 %v1020
    %1542 = vmatprep.subr.bf16.mxu0 %v1017
    %1543 = vmatpush2.bf16.msra.mxu0 %v1016
    %1544 = vmatprep.subr.bf16.mxu0 %v1013
    %1545 = vmatpush2.bf16.msra.mxu0 %v1012
    %1546 = vmatprep.subr.bf16.mxu0 %v1009
    %1547 = vmatpush2.bf16.msra.mxu0 %v1008
    %1548 = vmatprep.subr.bf16.mxu0 %v1005
    %1549 = vmatpush2.bf16.msra.mxu0 %v1004
    %1550 = vmatprep.subr.bf16.mxu0 %v1001
    %1551 = vmatpush2.bf16.msra.mxu0 %v1000
    %1552 = vmatprep.subr.bf16.mxu0 %v997
    %1553 = vmatpush2.bf16.msra.mxu0 %v996
    %1554 = vmatprep.mubr.bf16.mxu0 %v150
    %1555 = vmatmul.mubr.bf16.gmra.mxu0 %v149
    %v1556 = vpop.f32.mrf.mxu0
    %v1557 = vadd.f32 %v365, %v1556
    %v1558 = vpop.f32.mrf.mxu0
    %v1559 = vadd.f32 %v369, %v1558
    %v1560 = vpop.f32.mrf.mxu0
    %v1561 = vpop.f32.mrf.mxu0
    %1562 = vdwg.mxu0
    %1563 = vmatprep.subr.bf16.mxu0 %v1057
    %1564 = vmatpush1.bf16.msra.mxu0 %v1056
    %1565 = vmatprep.subr.bf16.mxu0 %v1053
    %1566 = vmatpush1.bf16.msra.mxu0 %v1052
    %1567 = vmatprep.subr.bf16.mxu0 %v1049
    %1568 = vmatpush1.bf16.msra.mxu0 %v1048
    %1569 = vmatprep.subr.bf16.mxu0 %v1045
    %1570 = vmatpush1.bf16.msra.mxu0 %v1044
    %1571 = vmatprep.subr.bf16.mxu0 %v1041
    %1572 = vmatpush1.bf16.msra.mxu0 %v1040
    %1573 = vmatprep.subr.bf16.mxu0 %v1037
    %1574 = vmatpush1.bf16.msra.mxu0 %v1036
    %1575 = vmatprep.subr.bf16.mxu0 %v1033
    %1576 = vmatpush1.bf16.msra.mxu0 %v1032
    %1577 = vmatprep.subr.bf16.mxu0 %v1029
    %1578 = vmatpush1.bf16.msra.mxu0 %v1028
    %1579 = vmatprep.subr.bf16.mxu0 %v1089
    %1580 = vmatpush2.bf16.msra.mxu0 %v1088
    %1581 = vmatprep.subr.bf16.mxu0 %v1085
    %1582 = vmatpush2.bf16.msra.mxu0 %v1084
    %1583 = vmatprep.subr.bf16.mxu0 %v1081
    %1584 = vmatpush2.bf16.msra.mxu0 %v1080
    %1585 = vmatprep.subr.bf16.mxu0 %v1077
    %1586 = vmatpush2.bf16.msra.mxu0 %v1076
    %1587 = vmatprep.subr.bf16.mxu0 %v1073
    %1588 = vmatpush2.bf16.msra.mxu0 %v1072
    %1589 = vmatprep.subr.bf16.mxu0 %v1069
    %1590 = vmatpush2.bf16.msra.mxu0 %v1068
    %1591 = vmatprep.subr.bf16.mxu0 %v1065
    %1592 = vmatpush2.bf16.msra.mxu0 %v1064
    %1593 = vmatprep.subr.bf16.mxu0 %v1061
    %1594 = vmatpush2.bf16.msra.mxu0 %v1060
    %1595 = vmatprep.mubr.bf16.mxu0 %v152
    %1596 = vmatmul.mubr.bf16.gmra.mxu0 %v151
    %v1597 = vpop.f32.mrf.mxu0
    %v1598 = vadd.f32 %v1557, %v1597
    %v1599 = vpop.f32.mrf.mxu0
    %v1600 = vadd.f32 %v1559, %v1599
    %v1601 = vpop.f32.mrf.mxu0
    %v1602 = vpop.f32.mrf.mxu0
    %1603 = vdwg.mxu0
    %1604 = vmatprep.subr.bf16.mxu0 %v1121
    %1605 = vmatpush1.bf16.msra.mxu0 %v1120
    %1606 = vmatprep.subr.bf16.mxu0 %v1117
    %1607 = vmatpush1.bf16.msra.mxu0 %v1116
    %1608 = vmatprep.subr.bf16.mxu0 %v1113
    %1609 = vmatpush1.bf16.msra.mxu0 %v1112
    %1610 = vmatprep.subr.bf16.mxu0 %v1109
    %1611 = vmatpush1.bf16.msra.mxu0 %v1108
    %1612 = vmatprep.subr.bf16.mxu0 %v1105
    %1613 = vmatpush1.bf16.msra.mxu0 %v1104
    %1614 = vmatprep.subr.bf16.mxu0 %v1101
    %1615 = vmatpush1.bf16.msra.mxu0 %v1100
    %1616 = vmatprep.subr.bf16.mxu0 %v1097
    %1617 = vmatpush1.bf16.msra.mxu0 %v1096
    %1618 = vmatprep.subr.bf16.mxu0 %v1093
    %1619 = vmatpush1.bf16.msra.mxu0 %v1092
    %1620 = vmatprep.subr.bf16.mxu0 %v1153
    %1621 = vmatpush2.bf16.msra.mxu0 %v1152
    %1622 = vmatprep.subr.bf16.mxu0 %v1149
    %1623 = vmatpush2.bf16.msra.mxu0 %v1148
    %1624 = vmatprep.subr.bf16.mxu0 %v1145
    %1625 = vmatpush2.bf16.msra.mxu0 %v1144
    %1626 = vmatprep.subr.bf16.mxu0 %v1141
    %1627 = vmatpush2.bf16.msra.mxu0 %v1140
    %1628 = vmatprep.subr.bf16.mxu0 %v1137
    %1629 = vmatpush2.bf16.msra.mxu0 %v1136
    %1630 = vmatprep.subr.bf16.mxu0 %v1133
    %1631 = vmatpush2.bf16.msra.mxu0 %v1132
    %1632 = vmatprep.subr.bf16.mxu0 %v1129
    %1633 = vmatpush2.bf16.msra.mxu0 %v1128
    %1634 = vmatprep.subr.bf16.mxu0 %v1125
    %1635 = vmatpush2.bf16.msra.mxu0 %v1124
    %1636 = vmatprep.mubr.bf16.mxu0 %v154
    %1637 = vmatmul.mubr.bf16.gmra.mxu0 %v153
    %v1638 = vpop.f32.mrf.mxu0
    %v1639 = vadd.f32 %v1598, %v1638
    %v1640 = vpop.f32.mrf.mxu0
    %v1641 = vadd.f32 %v1600, %v1640
    %v1642 = vpop.f32.mrf.mxu0
    %v1643 = vpop.f32.mrf.mxu0
    %1644 = vdwg.mxu0
    %1645 = vmatprep.subr.bf16.mxu0 0
    %1646 = vmatpush1.bf16.msra.mxu0 0
    %1647 = vmatprep.subr.bf16.mxu0 0
    %1648 = vmatpush1.bf16.msra.mxu0 0
    %1649 = vmatprep.subr.bf16.mxu0 0
    %1650 = vmatpush1.bf16.msra.mxu0 0
    %1651 = vmatprep.subr.bf16.mxu0 0
    %1652 = vmatpush1.bf16.msra.mxu0 0
    %1653 = vmatprep.subr.bf16.mxu0 0
    %1654 = vmatpush1.bf16.msra.mxu0 0
    %1655 = vmatprep.subr.bf16.mxu0 0
    %1656 = vmatpush1.bf16.msra.mxu0 0
    %1657 = vmatprep.subr.bf16.mxu0 0
    %1658 = vmatpush1.bf16.msra.mxu0 0
    %1659 = vmatprep.subr.bf16.mxu0 %v1157
    %1660 = vmatpush1.bf16.msra.mxu0 %v1156
    %1661 = vmatprep.subr.bf16.mxu0 0
    %1662 = vmatpush2.bf16.msra.mxu0 0
    %1663 = vmatprep.subr.bf16.mxu0 0
    %1664 = vmatpush2.bf16.msra.mxu0 0
    %1665 = vmatprep.subr.bf16.mxu0 0
    %1666 = vmatpush2.bf16.msra.mxu0 0
    %1667 = vmatprep.subr.bf16.mxu0 0
    %1668 = vmatpush2.bf16.msra.mxu0 0
    %1669 = vmatprep.subr.bf16.mxu0 0
    %1670 = vmatpush2.bf16.msra.mxu0 0
    %1671 = vmatprep.subr.bf16.mxu0 0
    %1672 = vmatpush2.bf16.msra.mxu0 0
    %1673 = vmatprep.subr.bf16.mxu0 0
    %1674 = vmatpush2.bf16.msra.mxu0 0
    %1675 = vmatprep.subr.bf16.mxu0 0
    %1676 = vmatpush2.bf16.msra.mxu0 0
    %1677 = vmatprep.mubr.bf16.mxu0 0
    %1678 = vmatmul.mubr.bf16.gmra.mxu0 %v1356
    %v1679 = vpop.f32.mrf.mxu0
    %v1680 = vadd.f32 %v1639, %v1679
    %v1681 = vpop.f32.mrf.mxu0
    %v1682 = vadd.f32 %v1641, %v1681
    %v1683 = vpop.f32.mrf.mxu0
    %v1684 = vpop.f32.mrf.mxu0
    %1685 = vdwg.mxu0
    %v1686 = vmax.f32 %v1516, 0.0
    %v1687 = vmax.f32 %v1518, 0.0
    %v1688 = vmax.f32 %v1680, 0.0
    %v1689 = vmax.f32 %v1682, 0.0
    %v1690 = vpack.c.bf16 %v1686, %v1686
    %v1691 = vpack.c.bf16 %v1687, %v1687
    %v1692 = vpack.c.bf16 %v1688, %v1688
    %v1693 = vpack.c.bf16 %v1689, %v1689
    %v1694 = vld [vmem:[#allocation8] sm:$0xff]
    %v1695 = vld [vmem:[#allocation8 + $0x8] sm:$0xff]
    %v1696 = vld [vmem:[#allocation8 + $0x10] sm:$0xff]
    %v1697 = vld [vmem:[#allocation8 + $0x18] sm:$0xff]
    %v1698 = vld [vmem:[#allocation8 + $0x20] sm:$0xff]
    %v1699 = vld [vmem:[#allocation8 + $0x28] sm:$0xff]
    %v1700 = vld [vmem:[#allocation8 + $0x30] sm:$0xff]
    %v1701 = vld [vmem:[#allocation8 + $0x38] sm:$0xff]
    %v1702 = vld [vmem:[#allocation8 + $0x40] sm:$0xff]
    %v1703 = vld [vmem:[#allocation8 + $0x48] sm:$0xff]
    %v1704 = vld [vmem:[#allocation8 + $0x50] sm:$0xff]
    %v1705 = vld [vmem:[#allocation8 + $0x58] sm:$0xff]
    %v1706 = vld [vmem:[#allocation8 + $0x60] sm:$0xff]
    %v1707 = vld [vmem:[#allocation8 + $0x68] sm:$0xff]
    %v1708 = vld [vmem:[#allocation8 + $0x70] sm:$0xff]
    %v1709 = vld [vmem:[#allocation8 + $0x78] sm:$0xff]
    %v1710 = vld [vmem:[#allocation8 + $0x80] sm:$0xff]
    %v1711 = vld [vmem:[#allocation8 + $0x88] sm:$0xff]
    %v1712 = vld [vmem:[#allocation8 + $0x90] sm:$0xff]
    %v1713 = vld [vmem:[#allocation8 + $0x98] sm:$0xff]
    %v1714 = vld [vmem:[#allocation8 + $0xa0] sm:$0xff]
    %v1715 = vld [vmem:[#allocation8 + $0xa8] sm:$0xff]
    %v1716 = vld [vmem:[#allocation8 + $0xb0] sm:$0xff]
    %v1717 = vld [vmem:[#allocation8 + $0xb8] sm:$0xff]
    %v1718 = vld [vmem:[#allocation8 + $0xc0] sm:$0xff]
    %v1719 = vld [vmem:[#allocation8 + $0xc8] sm:$0xff]
    %v1720 = vld [vmem:[#allocation8 + $0xd0] sm:$0xff]
    %v1721 = vld [vmem:[#allocation8 + $0xd8] sm:$0xff]
    %v1722 = vld [vmem:[#allocation8 + $0xe0] sm:$0xff]
    %v1723 = vld [vmem:[#allocation8 + $0xe8] sm:$0xff]
    %v1724 = vld [vmem:[#allocation8 + $0xf0] sm:$0xff]
    %v1725 = vld [vmem:[#allocation8 + $0xf8] sm:$0xff]
    %v1726 = vld [vmem:[#allocation8 + $0x100] sm:$0xff]
    %v1727 = vld [vmem:[#allocation8 + $0x108] sm:$0xff]
    %v1728 = vld [vmem:[#allocation8 + $0x110] sm:$0xff]
    %v1729 = vld [vmem:[#allocation8 + $0x118] sm:$0xff]
    %v1730 = vld [vmem:[#allocation8 + $0x120] sm:$0xff]
    %v1731 = vld [vmem:[#allocation8 + $0x128] sm:$0xff]
    %v1732 = vld [vmem:[#allocation8 + $0x130] sm:$0xff]
    %v1733 = vld [vmem:[#allocation8 + $0x138] sm:$0xff]
    %v1734 = vld [vmem:[#allocation8 + $0x140] sm:$0xff]
    %v1735 = vld [vmem:[#allocation8 + $0x148] sm:$0xff]
    %v1736 = vld [vmem:[#allocation8 + $0x150] sm:$0xff]
    %v1737 = vld [vmem:[#allocation8 + $0x158] sm:$0xff]
    %v1738 = vld [vmem:[#allocation8 + $0x160] sm:$0xff]
    %v1739 = vld [vmem:[#allocation8 + $0x168] sm:$0xff]
    %v1740 = vld [vmem:[#allocation8 + $0x170] sm:$0xff]
    %v1741 = vld [vmem:[#allocation8 + $0x178] sm:$0xff]
    %v1742 = vld [vmem:[#allocation8 + $0x180] sm:$0xff]
    %v1743 = vld [vmem:[#allocation8 + $0x188] sm:$0xff]
    %v1744 = vld [vmem:[#allocation8 + $0x190] sm:$0xff]
    %v1745 = vld [vmem:[#allocation8 + $0x198] sm:$0xff]
    %v1746 = vld [vmem:[#allocation8 + $0x1a0] sm:$0xff]
    %v1747 = vld [vmem:[#allocation8 + $0x1a8] sm:$0xff]
    %v1748 = vld [vmem:[#allocation8 + $0x1b0] sm:$0xff]
    %v1749 = vld [vmem:[#allocation8 + $0x1b8] sm:$0xff]
    %v1750 = vld [vmem:[#allocation8 + $0x1c0] sm:$0xff]
    %v1751 = vld [vmem:[#allocation8 + $0x1c8] sm:$0xff]
    %v1752 = vld [vmem:[#allocation8 + $0x1d0] sm:$0xff]
    %v1753 = vld [vmem:[#allocation8 + $0x1d8] sm:$0xff]
    %v1754 = vld [vmem:[#allocation8 + $0x1e0] sm:$0xff]
    %v1755 = vld [vmem:[#allocation8 + $0x1e8] sm:$0xff]
    %v1756 = vld [vmem:[#allocation8 + $0x1f0] sm:$0xff]
    %v1757 = vld [vmem:[#allocation8 + $0x1f8] sm:$0xff]
    %v1758 = vld [vmem:[#allocation9] sm:$0x3]
    %v1760 = vlaneseq
    %v1761 = vshrl.u32 %v1760, 7
    %v1762 = vsub.s32 0, %v1761
    %v1763 = vrot.slane %v1758, %v1762
    %v1764 = vlaneseq
    %v1765 = vshrl.u32 %v1764, 7
    %v1766 = vsub.s32 1, %v1765
    %v1767 = vrot.slane %v1758, %v1766
    %v1834 = vunpack.c.l.b16 %v1694
    %v1835 = vunpack.c.h.b16 %v1694
    %v1836 = vunpack.c.l.b16 %v1695
    %v1837 = vunpack.c.h.b16 %v1695
    %v1838 = vunpack.c.l.b16 %v1696
    %v1839 = vunpack.c.h.b16 %v1696
    %v1840 = vunpack.c.l.b16 %v1697
    %v1841 = vunpack.c.h.b16 %v1697
    %v1842 = vunpack.c.l.b16 %v1698
    %v1843 = vunpack.c.h.b16 %v1698
    %v1844 = vunpack.c.l.b16 %v1699
    %v1845 = vunpack.c.h.b16 %v1699
    %v1846 = vunpack.c.l.b16 %v1700
    %v1847 = vunpack.c.h.b16 %v1700
    %v1848 = vunpack.c.l.b16 %v1701
    %v1849 = vunpack.c.h.b16 %v1701
    %v1850 = vunpack.c.l.b16 %v1702
    %v1851 = vunpack.c.h.b16 %v1702
    %v1852 = vunpack.c.l.b16 %v1703
    %v1853 = vunpack.c.h.b16 %v1703
    %v1854 = vunpack.c.l.b16 %v1704
    %v1855 = vunpack.c.h.b16 %v1704
    %v1856 = vunpack.c.l.b16 %v1705
    %v1857 = vunpack.c.h.b16 %v1705
    %v1858 = vunpack.c.l.b16 %v1706
    %v1859 = vunpack.c.h.b16 %v1706
    %v1860 = vunpack.c.l.b16 %v1707
    %v1861 = vunpack.c.h.b16 %v1707
    %v1862 = vunpack.c.l.b16 %v1708
    %v1863 = vunpack.c.h.b16 %v1708
    %v1864 = vunpack.c.l.b16 %v1709
    %v1865 = vunpack.c.h.b16 %v1709
    %v1866 = vunpack.c.l.b16 %v1710
    %v1867 = vunpack.c.h.b16 %v1710
    %v1868 = vunpack.c.l.b16 %v1711
    %v1869 = vunpack.c.h.b16 %v1711
    %v1870 = vunpack.c.l.b16 %v1712
    %v1871 = vunpack.c.h.b16 %v1712
    %v1872 = vunpack.c.l.b16 %v1713
    %v1873 = vunpack.c.h.b16 %v1713
    %v1874 = vunpack.c.l.b16 %v1714
    %v1875 = vunpack.c.h.b16 %v1714
    %v1876 = vunpack.c.l.b16 %v1715
    %v1877 = vunpack.c.h.b16 %v1715
    %v1878 = vunpack.c.l.b16 %v1716
    %v1879 = vunpack.c.h.b16 %v1716
    %v1880 = vunpack.c.l.b16 %v1717
    %v1881 = vunpack.c.h.b16 %v1717
    %v1882 = vunpack.c.l.b16 %v1718
    %v1883 = vunpack.c.h.b16 %v1718
    %v1884 = vunpack.c.l.b16 %v1719
    %v1885 = vunpack.c.h.b16 %v1719
    %v1886 = vunpack.c.l.b16 %v1720
    %v1887 = vunpack.c.h.b16 %v1720
    %v1888 = vunpack.c.l.b16 %v1721
    %v1889 = vunpack.c.h.b16 %v1721
    %v1890 = vunpack.c.l.b16 %v1722
    %v1891 = vunpack.c.h.b16 %v1722
    %v1892 = vunpack.c.l.b16 %v1723
    %v1893 = vunpack.c.h.b16 %v1723
    %v1894 = vunpack.c.l.b16 %v1724
    %v1895 = vunpack.c.h.b16 %v1724
    %v1896 = vunpack.c.l.b16 %v1725
    %v1897 = vunpack.c.h.b16 %v1725
    %v1898 = vunpack.c.l.b16 %v1726
    %v1899 = vunpack.c.h.b16 %v1726
    %v1900 = vunpack.c.l.b16 %v1727
    %v1901 = vunpack.c.h.b16 %v1727
    %v1902 = vunpack.c.l.b16 %v1728
    %v1903 = vunpack.c.h.b16 %v1728
    %v1904 = vunpack.c.l.b16 %v1729
    %v1905 = vunpack.c.h.b16 %v1729
    %v1906 = vunpack.c.l.b16 %v1730
    %v1907 = vunpack.c.h.b16 %v1730
    %v1908 = vunpack.c.l.b16 %v1731
    %v1909 = vunpack.c.h.b16 %v1731
    %v1910 = vunpack.c.l.b16 %v1732
    %v1911 = vunpack.c.h.b16 %v1732
    %v1912 = vunpack.c.l.b16 %v1733
    %v1913 = vunpack.c.h.b16 %v1733
    %v1914 = vunpack.c.l.b16 %v1734
    %v1915 = vunpack.c.h.b16 %v1734
    %v1916 = vunpack.c.l.b16 %v1735
    %v1917 = vunpack.c.h.b16 %v1735
    %v1918 = vunpack.c.l.b16 %v1736
    %v1919 = vunpack.c.h.b16 %v1736
    %v1920 = vunpack.c.l.b16 %v1737
    %v1921 = vunpack.c.h.b16 %v1737
    %v1922 = vunpack.c.l.b16 %v1738
    %v1923 = vunpack.c.h.b16 %v1738
    %v1924 = vunpack.c.l.b16 %v1739
    %v1925 = vunpack.c.h.b16 %v1739
    %v1926 = vunpack.c.l.b16 %v1740
    %v1927 = vunpack.c.h.b16 %v1740
    %v1928 = vunpack.c.l.b16 %v1741
    %v1929 = vunpack.c.h.b16 %v1741
    %v1930 = vunpack.c.l.b16 %v1742
    %v1931 = vunpack.c.h.b16 %v1742
    %v1932 = vunpack.c.l.b16 %v1743
    %v1933 = vunpack.c.h.b16 %v1743
    %v1934 = vunpack.c.l.b16 %v1744
    %v1935 = vunpack.c.h.b16 %v1744
    %v1936 = vunpack.c.l.b16 %v1745
    %v1937 = vunpack.c.h.b16 %v1745
    %v1938 = vunpack.c.l.b16 %v1746
    %v1939 = vunpack.c.h.b16 %v1746
    %v1940 = vunpack.c.l.b16 %v1747
    %v1941 = vunpack.c.h.b16 %v1747
    %v1942 = vunpack.c.l.b16 %v1748
    %v1943 = vunpack.c.h.b16 %v1748
    %v1944 = vunpack.c.l.b16 %v1749
    %v1945 = vunpack.c.h.b16 %v1749
    %v1946 = vunpack.c.l.b16 %v1750
    %v1947 = vunpack.c.h.b16 %v1750
    %v1948 = vunpack.c.l.b16 %v1751
    %v1949 = vunpack.c.h.b16 %v1751
    %v1950 = vunpack.c.l.b16 %v1752
    %v1951 = vunpack.c.h.b16 %v1752
    %v1952 = vunpack.c.l.b16 %v1753
    %v1953 = vunpack.c.h.b16 %v1753
    %v1954 = vunpack.c.l.b16 %v1754
    %v1955 = vunpack.c.h.b16 %v1754
    %v1956 = vunpack.c.l.b16 %v1755
    %v1957 = vunpack.c.h.b16 %v1755
    %v1958 = vunpack.c.l.b16 %v1756
    %v1959 = vunpack.c.h.b16 %v1756
    %v1960 = vunpack.c.l.b16 %v1757
    %v1961 = vunpack.c.h.b16 %v1757
    %v1962 = vpack.c.b16 %v1836, %v1834
    %v1963 = vpack.c.b16 %v1837, %v1835
    %v1964 = vpack.c.b16 %v1840, %v1838
    %v1965 = vpack.c.b16 %v1841, %v1839
    %v1966 = vpack.c.b16 %v1844, %v1842
    %v1967 = vpack.c.b16 %v1845, %v1843
    %v1968 = vpack.c.b16 %v1848, %v1846
    %v1969 = vpack.c.b16 %v1849, %v1847
    %v1970 = vpack.c.b16 %v1852, %v1850
    %v1971 = vpack.c.b16 %v1853, %v1851
    %v1972 = vpack.c.b16 %v1856, %v1854
    %v1973 = vpack.c.b16 %v1857, %v1855
    %v1974 = vpack.c.b16 %v1860, %v1858
    %v1975 = vpack.c.b16 %v1861, %v1859
    %v1976 = vpack.c.b16 %v1864, %v1862
    %v1977 = vpack.c.b16 %v1865, %v1863
    %v1978 = vpack.c.b16 %v1868, %v1866
    %v1979 = vpack.c.b16 %v1869, %v1867
    %v1980 = vpack.c.b16 %v1872, %v1870
    %v1981 = vpack.c.b16 %v1873, %v1871
    %v1982 = vpack.c.b16 %v1876, %v1874
    %v1983 = vpack.c.b16 %v1877, %v1875
    %v1984 = vpack.c.b16 %v1880, %v1878
    %v1985 = vpack.c.b16 %v1881, %v1879
    %v1986 = vpack.c.b16 %v1884, %v1882
    %v1987 = vpack.c.b16 %v1885, %v1883
    %v1988 = vpack.c.b16 %v1888, %v1886
    %v1989 = vpack.c.b16 %v1889, %v1887
    %v1990 = vpack.c.b16 %v1892, %v1890
    %v1991 = vpack.c.b16 %v1893, %v1891
    %v1992 = vpack.c.b16 %v1896, %v1894
    %v1993 = vpack.c.b16 %v1897, %v1895
    %v1994 = vpack.c.b16 %v1900, %v1898
    %v1995 = vpack.c.b16 %v1901, %v1899
    %v1996 = vpack.c.b16 %v1904, %v1902
    %v1997 = vpack.c.b16 %v1905, %v1903
    %v1998 = vpack.c.b16 %v1908, %v1906
    %v1999 = vpack.c.b16 %v1909, %v1907
    %v2000 = vpack.c.b16 %v1912, %v1910
    %v2001 = vpack.c.b16 %v1913, %v1911
    %v2002 = vpack.c.b16 %v1916, %v1914
    %v2003 = vpack.c.b16 %v1917, %v1915
    %v2004 = vpack.c.b16 %v1920, %v1918
    %v2005 = vpack.c.b16 %v1921, %v1919
    %v2006 = vpack.c.b16 %v1924, %v1922
    %v2007 = vpack.c.b16 %v1925, %v1923
    %v2008 = vpack.c.b16 %v1928, %v1926
    %v2009 = vpack.c.b16 %v1929, %v1927
    %v2010 = vpack.c.b16 %v1932, %v1930
    %v2011 = vpack.c.b16 %v1933, %v1931
    %v2012 = vpack.c.b16 %v1936, %v1934
    %v2013 = vpack.c.b16 %v1937, %v1935
    %v2014 = vpack.c.b16 %v1940, %v1938
    %v2015 = vpack.c.b16 %v1941, %v1939
    %v2016 = vpack.c.b16 %v1944, %v1942
    %v2017 = vpack.c.b16 %v1945, %v1943
    %v2018 = vpack.c.b16 %v1948, %v1946
    %v2019 = vpack.c.b16 %v1949, %v1947
    %v2020 = vpack.c.b16 %v1952, %v1950
    %v2021 = vpack.c.b16 %v1953, %v1951
    %v2022 = vpack.c.b16 %v1956, %v1954
    %v2023 = vpack.c.b16 %v1957, %v1955
    %v2024 = vpack.c.b16 %v1960, %v1958
    %v2025 = vpack.c.b16 %v1961, %v1959
    %2090 = vmatprep.subr.bf16.mxu0 %v1977
    %2091 = vmatpush1.bf16.msra.mxu0 %v1976
    %2092 = vmatprep.subr.bf16.mxu0 %v1975
    %2093 = vmatpush1.bf16.msra.mxu0 %v1974
    %2094 = vmatprep.subr.bf16.mxu0 %v1973
    %2095 = vmatpush1.bf16.msra.mxu0 %v1972
    %2096 = vmatprep.subr.bf16.mxu0 %v1971
    %2097 = vmatpush1.bf16.msra.mxu0 %v1970
    %2098 = vmatprep.subr.bf16.mxu0 %v1969
    %2099 = vmatpush1.bf16.msra.mxu0 %v1968
    %2100 = vmatprep.subr.bf16.mxu0 %v1967
    %2101 = vmatpush1.bf16.msra.mxu0 %v1966
    %2102 = vmatprep.subr.bf16.mxu0 %v1965
    %2103 = vmatpush1.bf16.msra.mxu0 %v1964
    %2104 = vmatprep.subr.bf16.mxu0 %v1963
    %2105 = vmatpush1.bf16.msra.mxu0 %v1962
    %2106 = vmatprep.subr.bf16.mxu0 %v1993
    %2107 = vmatpush2.bf16.msra.mxu0 %v1992
    %2108 = vmatprep.subr.bf16.mxu0 %v1991
    %2109 = vmatpush2.bf16.msra.mxu0 %v1990
    %2110 = vmatprep.subr.bf16.mxu0 %v1989
    %2111 = vmatpush2.bf16.msra.mxu0 %v1988
    %2112 = vmatprep.subr.bf16.mxu0 %v1987
    %2113 = vmatpush2.bf16.msra.mxu0 %v1986
    %2114 = vmatprep.subr.bf16.mxu0 %v1985
    %2115 = vmatpush2.bf16.msra.mxu0 %v1984
    %2116 = vmatprep.subr.bf16.mxu0 %v1983
    %2117 = vmatpush2.bf16.msra.mxu0 %v1982
    %2118 = vmatprep.subr.bf16.mxu0 %v1981
    %2119 = vmatpush2.bf16.msra.mxu0 %v1980
    %2120 = vmatprep.subr.bf16.mxu0 %v1979
    %2121 = vmatpush2.bf16.msra.mxu0 %v1978
    %2122 = vmatprep.mubr.bf16.mxu0 %v1691
    %2123 = vmatmul.mubr.bf16.gmra.mxu0 %v1690
    %v2124 = vpop.f32.mrf.mxu0
    %v2125 = vadd.f32 %v1763, %v2124
    %v2126 = vpop.f32.mrf.mxu0
    %v2127 = vadd.f32 %v1767, %v2126
    %v2128 = vpop.f32.mrf.mxu0
    %v2129 = vpop.f32.mrf.mxu0
    %2130 = vdwg.mxu0
    %2131 = vmatprep.subr.bf16.mxu0 %v2009
    %2132 = vmatpush1.bf16.msra.mxu0 %v2008
    %2133 = vmatprep.subr.bf16.mxu0 %v2007
    %2134 = vmatpush1.bf16.msra.mxu0 %v2006
    %2135 = vmatprep.subr.bf16.mxu0 %v2005
    %2136 = vmatpush1.bf16.msra.mxu0 %v2004
    %2137 = vmatprep.subr.bf16.mxu0 %v2003
    %2138 = vmatpush1.bf16.msra.mxu0 %v2002
    %2139 = vmatprep.subr.bf16.mxu0 %v2001
    %2140 = vmatpush1.bf16.msra.mxu0 %v2000
    %2141 = vmatprep.subr.bf16.mxu0 %v1999
    %2142 = vmatpush1.bf16.msra.mxu0 %v1998
    %2143 = vmatprep.subr.bf16.mxu0 %v1997
    %2144 = vmatpush1.bf16.msra.mxu0 %v1996
    %2145 = vmatprep.subr.bf16.mxu0 %v1995
    %2146 = vmatpush1.bf16.msra.mxu0 %v1994
    %2147 = vmatprep.subr.bf16.mxu0 %v2025
    %2148 = vmatpush2.bf16.msra.mxu0 %v2024
    %2149 = vmatprep.subr.bf16.mxu0 %v2023
    %2150 = vmatpush2.bf16.msra.mxu0 %v2022
    %2151 = vmatprep.subr.bf16.mxu0 %v2021
    %2152 = vmatpush2.bf16.msra.mxu0 %v2020
    %2153 = vmatprep.subr.bf16.mxu0 %v2019
    %2154 = vmatpush2.bf16.msra.mxu0 %v2018
    %2155 = vmatprep.subr.bf16.mxu0 %v2017
    %2156 = vmatpush2.bf16.msra.mxu0 %v2016
    %2157 = vmatprep.subr.bf16.mxu0 %v2015
    %2158 = vmatpush2.bf16.msra.mxu0 %v2014
    %2159 = vmatprep.subr.bf16.mxu0 %v2013
    %2160 = vmatpush2.bf16.msra.mxu0 %v2012
    %2161 = vmatprep.subr.bf16.mxu0 %v2011
    %2162 = vmatpush2.bf16.msra.mxu0 %v2010
    %2163 = vmatprep.mubr.bf16.mxu0 %v1693
    %2164 = vmatmul.mubr.bf16.gmra.mxu0 %v1692
    %v2165 = vpop.f32.mrf.mxu0
    %v2166 = vadd.f32 %v2125, %v2165
    %v2167 = vpop.f32.mrf.mxu0
    %v2168 = vadd.f32 %v2127, %v2167
    %v2169 = vpop.f32.mrf.mxu0
    %v2170 = vpop.f32.mrf.mxu0
    %2171 = vdwg.mxu0
    %v2172 = vmax.f32 %v2166, 0.0
    %v2173 = vmax.f32 %v2168, 0.0
    %v2174 = vld [vmem:[%s7] ss:$2 sm:$0x3]
    %v2176 = vlaneseq
    %v2177 = vshrl.u32 %v2176, 7
    %v2178 = vsub.s32 0, %v2177
    %v2179 = vrot.slane %v2174, %v2178
    %v2180 = vlaneseq
    %v2181 = vshrl.u32 %v2180, 7
    %v2182 = vsub.s32 1, %v2181
    %v2183 = vrot.slane %v2174, %v2182
    %v2186 = vmul.f32 %v2172, %v2179
    %v2187 = vmul.f32 %v2173, %v2183
    %v2188 = vadd.f32 %v2186, %v2187
    %2189 = vadd.xlane.f32.xlu0 %v2188
    %v2190 = vpop.xlane.xlu0 %2189
    %s2191 = scalar_lea.vmem %s7, 1
    %v2192 = vld [vmem:[%s2191] ss:$2 sm:$0x3]
    %v2194 = vlaneseq
    %v2195 = vshrl.u32 %v2194, 7
    %v2196 = vsub.s32 0, %v2195
    %v2197 = vrot.slane %v2192, %v2196
    %v2198 = vlaneseq
    %v2199 = vshrl.u32 %v2198, 7
    %v2200 = vsub.s32 1, %v2199
    %v2201 = vrot.slane %v2192, %v2200
    %v2204 = vmul.f32 %v2172, %v2197
    %v2205 = vmul.f32 %v2173, %v2201
    %v2206 = vadd.f32 %v2204, %v2205
    %2207 = vadd.xlane.f32.xlu0 %v2206
    %v2208 = vpop.xlane.xlu0 %2207
    %v2209 = vld [vmem:[%s8] sm:$0x1]
    %v2211 = vlaneseq
    %v2212 = vshrl.u32 %v2211, 7
    %v2213 = vsub.s32 0, %v2212
    %v2214 = vrot.slane %v2209, %v2213
    %v2216 = vadd.f32 %v2190, %v2214
    %v2217 = vmax.f32 %v2216, 0.0
    %v2218 = vadd.f32 %v2208, %v2214
    %v2219 = vmax.f32 %v2218, 0.0
    %s2220 = sld [smem:[#allocation2]]
    %v2221 = vld [vmem:[%s2] sm:$0xff]
    %v2222 = vadd.f32 %v2217, %v2221
    %v2223 = vstv %s2220
    %v2224 = vmul.f32 %v2222, %v2223
    %v2225 = vadd.f32 %v2219, %v2221
    %v2226 = vmul.f32 %v2225, %v2223
    %2228 = vrot.lane.b32.xlu0 %v2226, 127
    %v2229 = vpop.permute.xlu0 %2228
    %vm2231 = vcmp.ge.f32.partialorder %v2224, %v2229
    %v2232 = vsel %vm2231, 1, 0
    %v2233 = vcvt.s32.f32 %v2232
    %v2234 = vsub.f32 1.0, %v2233
    %v2235 = vld [vmem:[%s15] sm:$0x1]
    %2237 = vset.pattern.permute.xlu0 0
    %2238 = vperm.xlu0 %2237, %v2233
    %v2239 = vpop.permute.xlu0 %2238
    %v2241 = vlaneseq
    %v2242 = vshrl.u32 %v2241, 7
    %v2243 = vsub.s32 0, %v2242
    %v2244 = vrot.slane %v2235, %v2243
    %v2245 = vmul.f32 %v2239, %v2244
    %v2246 = vld [vmem:[%s15 + $0x1] sm:$0x1]
    %2248 = vset.pattern.permute.xlu0 0
    %2249 = vperm.xlu0 %2248, %v2234
    %v2250 = vpop.permute.xlu0 %2249
    %v2252 = vlaneseq
    %v2253 = vshrl.u32 %v2252, 7
    %v2254 = vsub.s32 0, %v2253
    %v2255 = vrot.slane %v2246, %v2254
    %v2256 = vmul.f32 %v2250, %v2255
    %v2257 = vadd.f32 %v2245, %v2256
    %v2258 = vld [vmem:[%s16] sm:$0x1]
    %2260 = vset.pattern.permute.xlu0 0
    %2261 = vperm.xlu0 %2260, %v2217
    %v2262 = vpop.permute.xlu0 %2261
    %v2264 = vlaneseq
    %v2265 = vshrl.u32 %v2264, 7
    %v2266 = vsub.s32 0, %v2265
    %v2267 = vrot.slane %v2258, %v2266
    %v2268 = vmul.f32 %v2262, %v2267
    %v2269 = vadd.f32 %v2257, %v2268
    %v2270 = vld [vmem:[%s16 + $0x1] sm:$0x1]
    %2272 = vset.pattern.permute.xlu0 1
    %2273 = vperm.xlu0 %2272, %v2219
    %v2274 = vpop.permute.xlu0 %2273
    %v2276 = vlaneseq
    %v2277 = vshrl.u32 %v2276, 7
    %v2278 = vsub.s32 0, %v2277
    %v2279 = vrot.slane %v2270, %v2278
    %v2280 = vmul.f32 %v2274, %v2279
    %v2281 = vadd.f32 %v2269, %v2280
    %v2282 = vld [vmem:[%s17] sm:$0x1]
    %v2284 = vlaneseq
    %v2285 = vshrl.u32 %v2284, 7
    %v2286 = vsub.s32 0, %v2285
    %v2287 = vrot.slane %v2282, %v2286
    %v2289 = vadd.f32 %v2281, %v2287
    %vm2290 = vcmask 15360
    %2291 = vst.msk [vmem:[%s19] sm:$0xff] %vm2290, %v2289
    %v2292 = vld [vmem:[%s9] ss:$2 sm:$0x3]
    %v2294 = vlaneseq
    %v2295 = vshrl.u32 %v2294, 7
    %v2296 = vsub.s32 0, %v2295
    %v2297 = vrot.slane %v2292, %v2296
    %v2298 = vlaneseq
    %v2299 = vshrl.u32 %v2298, 7
    %v2300 = vsub.s32 1, %v2299
    %v2301 = vrot.slane %v2292, %v2300
    %v2304 = vmul.f32 %v2239, %v2297
    %v2305 = vmul.f32 %v2239, %v2301
    %s2306 = scalar_lea.vmem %s9, 1
    %v2307 = vld [vmem:[%s2306] ss:$2 sm:$0x3]
    %v2309 = vlaneseq
    %v2310 = vshrl.u32 %v2309, 7
    %v2311 = vsub.s32 0, %v2310
    %v2312 = vrot.slane %v2307, %v2311
    %v2313 = vlaneseq
    %v2314 = vshrl.u32 %v2313, 7
    %v2315 = vsub.s32 1, %v2314
    %v2316 = vrot.slane %v2307, %v2315
    %v2319 = vmul.f32 %v2250, %v2312
    %v2320 = vmul.f32 %v2250, %v2316
    %v2321 = vadd.f32 %v2304, %v2319
    %v2322 = vadd.f32 %v2305, %v2320
    %v2323 = vld [vmem:[%s10] sm:$0x3]
    %v2325 = vlaneseq
    %v2326 = vshrl.u32 %v2325, 7
    %v2327 = vsub.s32 0, %v2326
    %v2328 = vrot.slane %v2323, %v2327
    %v2329 = vlaneseq
    %v2330 = vshrl.u32 %v2329, 7
    %v2331 = vsub.s32 1, %v2330
    %v2332 = vrot.slane %v2323, %v2331
    %v2335 = vadd.f32 %v2321, %v2328
    %v2336 = vadd.f32 %v2322, %v2332
    %v2337 = vmax.f32 %v2335, 0.0
    %v2338 = vmax.f32 %v2336, 0.0
    %v2339 = vpack.c.bf16 %v2337, %v2337
    %v2340 = vpack.c.bf16 %v2338, %v2338
    %v2341 = vld [vmem:[#allocation11] sm:$0xff]
    %v2342 = vld [vmem:[#allocation11 + $0x8] sm:$0xff]
    %v2343 = vld [vmem:[#allocation11 + $0x10] sm:$0xff]
    %v2344 = vld [vmem:[#allocation11 + $0x18] sm:$0xff]
    %v2345 = vld [vmem:[#allocation11 + $0x20] sm:$0xff]
    %v2346 = vld [vmem:[#allocation11 + $0x28] sm:$0xff]
    %v2347 = vld [vmem:[#allocation11 + $0x30] sm:$0xff]
    %v2348 = vld [vmem:[#allocation11 + $0x38] sm:$0xff]
    %v2349 = vld [vmem:[#allocation11 + $0x40] sm:$0xff]
    %v2350 = vld [vmem:[#allocation11 + $0x48] sm:$0xff]
    %v2351 = vld [vmem:[#allocation11 + $0x50] sm:$0xff]
    %v2352 = vld [vmem:[#allocation11 + $0x58] sm:$0xff]
    %v2353 = vld [vmem:[#allocation11 + $0x60] sm:$0xff]
    %v2354 = vld [vmem:[#allocation11 + $0x68] sm:$0xff]
    %v2355 = vld [vmem:[#allocation11 + $0x70] sm:$0xff]
    %v2356 = vld [vmem:[#allocation11 + $0x78] sm:$0xff]
    %v2357 = vld [vmem:[#allocation11 + $0x80] sm:$0xff]
    %v2358 = vld [vmem:[#allocation11 + $0x88] sm:$0xff]
    %v2359 = vld [vmem:[#allocation11 + $0x90] sm:$0xff]
    %v2360 = vld [vmem:[#allocation11 + $0x98] sm:$0xff]
    %v2361 = vld [vmem:[#allocation11 + $0xa0] sm:$0xff]
    %v2362 = vld [vmem:[#allocation11 + $0xa8] sm:$0xff]
    %v2363 = vld [vmem:[#allocation11 + $0xb0] sm:$0xff]
    %v2364 = vld [vmem:[#allocation11 + $0xb8] sm:$0xff]
    %v2365 = vld [vmem:[#allocation11 + $0xc0] sm:$0xff]
    %v2366 = vld [vmem:[#allocation11 + $0xc8] sm:$0xff]
    %v2367 = vld [vmem:[#allocation11 + $0xd0] sm:$0xff]
    %v2368 = vld [vmem:[#allocation11 + $0xd8] sm:$0xff]
    %v2369 = vld [vmem:[#allocation11 + $0xe0] sm:$0xff]
    %v2370 = vld [vmem:[#allocation11 + $0xe8] sm:$0xff]
    %v2371 = vld [vmem:[#allocation11 + $0xf0] sm:$0xff]
    %v2372 = vld [vmem:[#allocation11 + $0xf8] sm:$0xff]
    %v2373 = vld [vmem:[#allocation11 + $0x100] sm:$0xff]
    %v2374 = vld [vmem:[#allocation11 + $0x108] sm:$0xff]
    %v2375 = vld [vmem:[#allocation11 + $0x110] sm:$0xff]
    %v2376 = vld [vmem:[#allocation11 + $0x118] sm:$0xff]
    %v2377 = vld [vmem:[#allocation11 + $0x120] sm:$0xff]
    %v2378 = vld [vmem:[#allocation11 + $0x128] sm:$0xff]
    %v2379 = vld [vmem:[#allocation11 + $0x130] sm:$0xff]
    %v2380 = vld [vmem:[#allocation11 + $0x138] sm:$0xff]
    %v2381 = vld [vmem:[#allocation11 + $0x140] sm:$0xff]
    %v2382 = vld [vmem:[#allocation11 + $0x148] sm:$0xff]
    %v2383 = vld [vmem:[#allocation11 + $0x150] sm:$0xff]
    %v2384 = vld [vmem:[#allocation11 + $0x158] sm:$0xff]
    %v2385 = vld [vmem:[#allocation11 + $0x160] sm:$0xff]
    %v2386 = vld [vmem:[#allocation11 + $0x168] sm:$0xff]
    %v2387 = vld [vmem:[#allocation11 + $0x170] sm:$0xff]
    %v2388 = vld [vmem:[#allocation11 + $0x178] sm:$0xff]
    %v2389 = vld [vmem:[#allocation11 + $0x180] sm:$0xff]
    %v2390 = vld [vmem:[#allocation11 + $0x188] sm:$0xff]
    %v2391 = vld [vmem:[#allocation11 + $0x190] sm:$0xff]
    %v2392 = vld [vmem:[#allocation11 + $0x198] sm:$0xff]
    %v2393 = vld [vmem:[#allocation11 + $0x1a0] sm:$0xff]
    %v2394 = vld [vmem:[#allocation11 + $0x1a8] sm:$0xff]
    %v2395 = vld [vmem:[#allocation11 + $0x1b0] sm:$0xff]
    %v2396 = vld [vmem:[#allocation11 + $0x1b8] sm:$0xff]
    %v2397 = vld [vmem:[#allocation11 + $0x1c0] sm:$0xff]
    %v2398 = vld [vmem:[#allocation11 + $0x1c8] sm:$0xff]
    %v2399 = vld [vmem:[#allocation11 + $0x1d0] sm:$0xff]
    %v2400 = vld [vmem:[#allocation11 + $0x1d8] sm:$0xff]
    %v2401 = vld [vmem:[#allocation11 + $0x1e0] sm:$0xff]
    %v2402 = vld [vmem:[#allocation11 + $0x1e8] sm:$0xff]
    %v2403 = vld [vmem:[#allocation11 + $0x1f0] sm:$0xff]
    %v2404 = vld [vmem:[#allocation11 + $0x1f8] sm:$0xff]
    %v2405 = vld [vmem:[%s12] sm:$0xf]
    %v2407 = vlaneseq
    %v2408 = vshrl.u32 %v2407, 7
    %v2409 = vsub.s32 0, %v2408
    %v2410 = vrot.slane %v2405, %v2409
    %v2411 = vlaneseq
    %v2412 = vshrl.u32 %v2411, 7
    %v2413 = vsub.s32 1, %v2412
    %v2414 = vrot.slane %v2405, %v2413
    %v2415 = vlaneseq
    %v2416 = vshrl.u32 %v2415, 7
    %v2417 = vsub.s32 2, %v2416
    %v2418 = vrot.slane %v2405, %v2417
    %v2419 = vlaneseq
    %v2420 = vshrl.u32 %v2419, 7
    %v2421 = vsub.s32 3, %v2420
    %v2422 = vrot.slane %v2405, %v2421
    %v2491 = vunpack.c.l.b16 %v2341
    %v2492 = vunpack.c.h.b16 %v2341
    %v2493 = vunpack.c.l.b16 %v2342
    %v2494 = vunpack.c.h.b16 %v2342
    %v2495 = vunpack.c.l.b16 %v2343
    %v2496 = vunpack.c.h.b16 %v2343
    %v2497 = vunpack.c.l.b16 %v2344
    %v2498 = vunpack.c.h.b16 %v2344
    %v2499 = vunpack.c.l.b16 %v2345
    %v2500 = vunpack.c.h.b16 %v2345
    %v2501 = vunpack.c.l.b16 %v2346
    %v2502 = vunpack.c.h.b16 %v2346
    %v2503 = vunpack.c.l.b16 %v2347
    %v2504 = vunpack.c.h.b16 %v2347
    %v2505 = vunpack.c.l.b16 %v2348
    %v2506 = vunpack.c.h.b16 %v2348
    %v2507 = vunpack.c.l.b16 %v2349
    %v2508 = vunpack.c.h.b16 %v2349
    %v2509 = vunpack.c.l.b16 %v2350
    %v2510 = vunpack.c.h.b16 %v2350
    %v2511 = vunpack.c.l.b16 %v2351
    %v2512 = vunpack.c.h.b16 %v2351
    %v2513 = vunpack.c.l.b16 %v2352
    %v2514 = vunpack.c.h.b16 %v2352
    %v2515 = vunpack.c.l.b16 %v2353
    %v2516 = vunpack.c.h.b16 %v2353
    %v2517 = vunpack.c.l.b16 %v2354
    %v2518 = vunpack.c.h.b16 %v2354
    %v2519 = vunpack.c.l.b16 %v2355
    %v2520 = vunpack.c.h.b16 %v2355
    %v2521 = vunpack.c.l.b16 %v2356
    %v2522 = vunpack.c.h.b16 %v2356
    %v2523 = vunpack.c.l.b16 %v2357
    %v2524 = vunpack.c.h.b16 %v2357
    %v2525 = vunpack.c.l.b16 %v2358
    %v2526 = vunpack.c.h.b16 %v2358
    %v2527 = vunpack.c.l.b16 %v2359
    %v2528 = vunpack.c.h.b16 %v2359
    %v2529 = vunpack.c.l.b16 %v2360
    %v2530 = vunpack.c.h.b16 %v2360
    %v2531 = vunpack.c.l.b16 %v2361
    %v2532 = vunpack.c.h.b16 %v2361
    %v2533 = vunpack.c.l.b16 %v2362
    %v2534 = vunpack.c.h.b16 %v2362
    %v2535 = vunpack.c.l.b16 %v2363
    %v2536 = vunpack.c.h.b16 %v2363
    %v2537 = vunpack.c.l.b16 %v2364
    %v2538 = vunpack.c.h.b16 %v2364
    %v2539 = vunpack.c.l.b16 %v2365
    %v2540 = vunpack.c.h.b16 %v2365
    %v2541 = vunpack.c.l.b16 %v2366
    %v2542 = vunpack.c.h.b16 %v2366
    %v2543 = vunpack.c.l.b16 %v2367
    %v2544 = vunpack.c.h.b16 %v2367
    %v2545 = vunpack.c.l.b16 %v2368
    %v2546 = vunpack.c.h.b16 %v2368
    %v2547 = vunpack.c.l.b16 %v2369
    %v2548 = vunpack.c.h.b16 %v2369
    %v2549 = vunpack.c.l.b16 %v2370
    %v2550 = vunpack.c.h.b16 %v2370
    %v2551 = vunpack.c.l.b16 %v2371
    %v2552 = vunpack.c.h.b16 %v2371
    %v2553 = vunpack.c.l.b16 %v2372
    %v2554 = vunpack.c.h.b16 %v2372
    %v2555 = vunpack.c.l.b16 %v2373
    %v2556 = vunpack.c.h.b16 %v2373
    %v2557 = vunpack.c.l.b16 %v2374
    %v2558 = vunpack.c.h.b16 %v2374
    %v2559 = vunpack.c.l.b16 %v2375
    %v2560 = vunpack.c.h.b16 %v2375
    %v2561 = vunpack.c.l.b16 %v2376
    %v2562 = vunpack.c.h.b16 %v2376
    %v2563 = vunpack.c.l.b16 %v2377
    %v2564 = vunpack.c.h.b16 %v2377
    %v2565 = vunpack.c.l.b16 %v2378
    %v2566 = vunpack.c.h.b16 %v2378
    %v2567 = vunpack.c.l.b16 %v2379
    %v2568 = vunpack.c.h.b16 %v2379
    %v2569 = vunpack.c.l.b16 %v2380
    %v2570 = vunpack.c.h.b16 %v2380
    %v2571 = vunpack.c.l.b16 %v2381
    %v2572 = vunpack.c.h.b16 %v2381
    %v2573 = vunpack.c.l.b16 %v2382
    %v2574 = vunpack.c.h.b16 %v2382
    %v2575 = vunpack.c.l.b16 %v2383
    %v2576 = vunpack.c.h.b16 %v2383
    %v2577 = vunpack.c.l.b16 %v2384
    %v2578 = vunpack.c.h.b16 %v2384
    %v2579 = vunpack.c.l.b16 %v2385
    %v2580 = vunpack.c.h.b16 %v2385
    %v2581 = vunpack.c.l.b16 %v2386
    %v2582 = vunpack.c.h.b16 %v2386
    %v2583 = vunpack.c.l.b16 %v2387
    %v2584 = vunpack.c.h.b16 %v2387
    %v2585 = vunpack.c.l.b16 %v2388
    %v2586 = vunpack.c.h.b16 %v2388
    %v2587 = vunpack.c.l.b16 %v2389
    %v2588 = vunpack.c.h.b16 %v2389
    %v2589 = vunpack.c.l.b16 %v2390
    %v2590 = vunpack.c.h.b16 %v2390
    %v2591 = vunpack.c.l.b16 %v2391
    %v2592 = vunpack.c.h.b16 %v2391
    %v2593 = vunpack.c.l.b16 %v2392
    %v2594 = vunpack.c.h.b16 %v2392
    %v2595 = vunpack.c.l.b16 %v2393
    %v2596 = vunpack.c.h.b16 %v2393
    %v2597 = vunpack.c.l.b16 %v2394
    %v2598 = vunpack.c.h.b16 %v2394
    %v2599 = vunpack.c.l.b16 %v2395
    %v2600 = vunpack.c.h.b16 %v2395
    %v2601 = vunpack.c.l.b16 %v2396
    %v2602 = vunpack.c.h.b16 %v2396
    %v2603 = vunpack.c.l.b16 %v2397
    %v2604 = vunpack.c.h.b16 %v2397
    %v2605 = vunpack.c.l.b16 %v2398
    %v2606 = vunpack.c.h.b16 %v2398
    %v2607 = vunpack.c.l.b16 %v2399
    %v2608 = vunpack.c.h.b16 %v2399
    %v2609 = vunpack.c.l.b16 %v2400
    %v2610 = vunpack.c.h.b16 %v2400
    %v2611 = vunpack.c.l.b16 %v2401
    %v2612 = vunpack.c.h.b16 %v2401
    %v2613 = vunpack.c.l.b16 %v2402
    %v2614 = vunpack.c.h.b16 %v2402
    %v2615 = vunpack.c.l.b16 %v2403
    %v2616 = vunpack.c.h.b16 %v2403
    %v2617 = vunpack.c.l.b16 %v2404
    %v2618 = vunpack.c.h.b16 %v2404
    %v2619 = vpack.c.b16 %v2495, %v2491
    %v2620 = vpack.c.b16 %v2496, %v2492
    %v2621 = vpack.c.b16 %v2497, %v2493
    %v2622 = vpack.c.b16 %v2498, %v2494
    %v2623 = vpack.c.b16 %v2503, %v2499
    %v2624 = vpack.c.b16 %v2504, %v2500
    %v2625 = vpack.c.b16 %v2505, %v2501
    %v2626 = vpack.c.b16 %v2506, %v2502
    %v2627 = vpack.c.b16 %v2511, %v2507
    %v2628 = vpack.c.b16 %v2512, %v2508
    %v2629 = vpack.c.b16 %v2513, %v2509
    %v2630 = vpack.c.b16 %v2514, %v2510
    %v2631 = vpack.c.b16 %v2519, %v2515
    %v2632 = vpack.c.b16 %v2520, %v2516
    %v2633 = vpack.c.b16 %v2521, %v2517
    %v2634 = vpack.c.b16 %v2522, %v2518
    %v2635 = vpack.c.b16 %v2527, %v2523
    %v2636 = vpack.c.b16 %v2528, %v2524
    %v2637 = vpack.c.b16 %v2529, %v2525
    %v2638 = vpack.c.b16 %v2530, %v2526
    %v2639 = vpack.c.b16 %v2535, %v2531
    %v2640 = vpack.c.b16 %v2536, %v2532
    %v2641 = vpack.c.b16 %v2537, %v2533
    %v2642 = vpack.c.b16 %v2538, %v2534
    %v2643 = vpack.c.b16 %v2543, %v2539
    %v2644 = vpack.c.b16 %v2544, %v2540
    %v2645 = vpack.c.b16 %v2545, %v2541
    %v2646 = vpack.c.b16 %v2546, %v2542
    %v2647 = vpack.c.b16 %v2551, %v2547
    %v2648 = vpack.c.b16 %v2552, %v2548
    %v2649 = vpack.c.b16 %v2553, %v2549
    %v2650 = vpack.c.b16 %v2554, %v2550
    %v2651 = vpack.c.b16 %v2559, %v2555
    %v2652 = vpack.c.b16 %v2560, %v2556
    %v2653 = vpack.c.b16 %v2561, %v2557
    %v2654 = vpack.c.b16 %v2562, %v2558
    %v2655 = vpack.c.b16 %v2567, %v2563
    %v2656 = vpack.c.b16 %v2568, %v2564
    %v2657 = vpack.c.b16 %v2569, %v2565
    %v2658 = vpack.c.b16 %v2570, %v2566
    %v2659 = vpack.c.b16 %v2575, %v2571
    %v2660 = vpack.c.b16 %v2576, %v2572
    %v2661 = vpack.c.b16 %v2577, %v2573
    %v2662 = vpack.c.b16 %v2578, %v2574
    %v2663 = vpack.c.b16 %v2583, %v2579
    %v2664 = vpack.c.b16 %v2584, %v2580
    %v2665 = vpack.c.b16 %v2585, %v2581
    %v2666 = vpack.c.b16 %v2586, %v2582
    %v2667 = vpack.c.b16 %v2591, %v2587
    %v2668 = vpack.c.b16 %v2592, %v2588
    %v2669 = vpack.c.b16 %v2593, %v2589
    %v2670 = vpack.c.b16 %v2594, %v2590
    %v2671 = vpack.c.b16 %v2599, %v2595
    %v2672 = vpack.c.b16 %v2600, %v2596
    %v2673 = vpack.c.b16 %v2601, %v2597
    %v2674 = vpack.c.b16 %v2602, %v2598
    %v2675 = vpack.c.b16 %v2607, %v2603
    %v2676 = vpack.c.b16 %v2608, %v2604
    %v2677 = vpack.c.b16 %v2609, %v2605
    %v2678 = vpack.c.b16 %v2610, %v2606
    %v2679 = vpack.c.b16 %v2615, %v2611
    %v2680 = vpack.c.b16 %v2616, %v2612
    %v2681 = vpack.c.b16 %v2617, %v2613
    %v2682 = vpack.c.b16 %v2618, %v2614
    %2747 = vmatprep.subr.bf16.mxu0 %v2648
    %2748 = vmatpush1.bf16.msra.mxu0 %v2647
    %2749 = vmatprep.subr.bf16.mxu0 %v2644
    %2750 = vmatpush1.bf16.msra.mxu0 %v2643
    %2751 = vmatprep.subr.bf16.mxu0 %v2640
    %2752 = vmatpush1.bf16.msra.mxu0 %v2639
    %2753 = vmatprep.subr.bf16.mxu0 %v2636
    %2754 = vmatpush1.bf16.msra.mxu0 %v2635
    %2755 = vmatprep.subr.bf16.mxu0 %v2632
    %2756 = vmatpush1.bf16.msra.mxu0 %v2631
    %2757 = vmatprep.subr.bf16.mxu0 %v2628
    %2758 = vmatpush1.bf16.msra.mxu0 %v2627
    %2759 = vmatprep.subr.bf16.mxu0 %v2624
    %2760 = vmatpush1.bf16.msra.mxu0 %v2623
    %2761 = vmatprep.subr.bf16.mxu0 %v2620
    %2762 = vmatpush1.bf16.msra.mxu0 %v2619
    %2763 = vmatprep.subr.bf16.mxu0 %v2680
    %2764 = vmatpush2.bf16.msra.mxu0 %v2679
    %2765 = vmatprep.subr.bf16.mxu0 %v2676
    %2766 = vmatpush2.bf16.msra.mxu0 %v2675
    %2767 = vmatprep.subr.bf16.mxu0 %v2672
    %2768 = vmatpush2.bf16.msra.mxu0 %v2671
    %2769 = vmatprep.subr.bf16.mxu0 %v2668
    %2770 = vmatpush2.bf16.msra.mxu0 %v2667
    %2771 = vmatprep.subr.bf16.mxu0 %v2664
    %2772 = vmatpush2.bf16.msra.mxu0 %v2663
    %2773 = vmatprep.subr.bf16.mxu0 %v2660
    %2774 = vmatpush2.bf16.msra.mxu0 %v2659
    %2775 = vmatprep.subr.bf16.mxu0 %v2656
    %2776 = vmatpush2.bf16.msra.mxu0 %v2655
    %2777 = vmatprep.subr.bf16.mxu0 %v2652
    %2778 = vmatpush2.bf16.msra.mxu0 %v2651
    %2779 = vmatprep.mubr.bf16.mxu0 %v2340
    %2780 = vmatmul.mubr.bf16.gmra.mxu0 %v2339
    %v2781 = vpop.f32.mrf.mxu0
    %v2782 = vadd.f32 %v2410, %v2781
    %v2783 = vpop.f32.mrf.mxu0
    %v2784 = vadd.f32 %v2414, %v2783
    %v2785 = vpop.f32.mrf.mxu0
    %v2786 = vpop.f32.mrf.mxu0
    %2787 = vdwg.mxu0
    %2788 = vmatprep.subr.bf16.mxu0 %v2650
    %2789 = vmatpush1.bf16.msra.mxu0 %v2649
    %2790 = vmatprep.subr.bf16.mxu0 %v2646
    %2791 = vmatpush1.bf16.msra.mxu0 %v2645
    %2792 = vmatprep.subr.bf16.mxu0 %v2642
    %2793 = vmatpush1.bf16.msra.mxu0 %v2641
    %2794 = vmatprep.subr.bf16.mxu0 %v2638
    %2795 = vmatpush1.bf16.msra.mxu0 %v2637
    %2796 = vmatprep.subr.bf16.mxu0 %v2634
    %2797 = vmatpush1.bf16.msra.mxu0 %v2633
    %2798 = vmatprep.subr.bf16.mxu0 %v2630
    %2799 = vmatpush1.bf16.msra.mxu0 %v2629
    %2800 = vmatprep.subr.bf16.mxu0 %v2626
    %2801 = vmatpush1.bf16.msra.mxu0 %v2625
    %2802 = vmatprep.subr.bf16.mxu0 %v2622
    %2803 = vmatpush1.bf16.msra.mxu0 %v2621
    %2804 = vmatprep.subr.bf16.mxu0 %v2682
    %2805 = vmatpush2.bf16.msra.mxu0 %v2681
    %2806 = vmatprep.subr.bf16.mxu0 %v2678
    %2807 = vmatpush2.bf16.msra.mxu0 %v2677
    %2808 = vmatprep.subr.bf16.mxu0 %v2674
    %2809 = vmatpush2.bf16.msra.mxu0 %v2673
    %2810 = vmatprep.subr.bf16.mxu0 %v2670
    %2811 = vmatpush2.bf16.msra.mxu0 %v2669
    %2812 = vmatprep.subr.bf16.mxu0 %v2666
    %2813 = vmatpush2.bf16.msra.mxu0 %v2665
    %2814 = vmatprep.subr.bf16.mxu0 %v2662
    %2815 = vmatpush2.bf16.msra.mxu0 %v2661
    %2816 = vmatprep.subr.bf16.mxu0 %v2658
    %2817 = vmatpush2.bf16.msra.mxu0 %v2657
    %2818 = vmatprep.subr.bf16.mxu0 %v2654
    %2819 = vmatpush2.bf16.msra.mxu0 %v2653
    %2820 = vmatprep.mubr.bf16.mxu0 %v2340
    %2821 = vmatmul.mubr.bf16.gmra.mxu0 %v2339
    %v2822 = vpop.f32.mrf.mxu0
    %v2823 = vadd.f32 %v2418, %v2822
    %v2824 = vpop.f32.mrf.mxu0
    %v2825 = vadd.f32 %v2422, %v2824
    %v2826 = vpop.f32.mrf.mxu0
    %v2827 = vpop.f32.mrf.mxu0
    %2828 = vdwg.mxu0
    %v2829 = vmax.f32 %v2782, 0.0
    %v2830 = vmax.f32 %v2784, 0.0
    %v2831 = vmax.f32 %v2823, 0.0
    %v2832 = vmax.f32 %v2825, 0.0
    %v2833 = vpack.c.bf16 %v2829, %v2829
    %v2834 = vpack.c.bf16 %v2830, %v2830
    %v2835 = vpack.c.bf16 %v2831, %v2831
    %v2836 = vpack.c.bf16 %v2832, %v2832
    %v2837 = vld [vmem:[#allocation12] sm:$0xff]
    %v2838 = vld [vmem:[#allocation12 + $0x8] sm:$0xff]
    %v2839 = vld [vmem:[#allocation12 + $0x10] sm:$0xff]
    %v2840 = vld [vmem:[#allocation12 + $0x18] sm:$0xf]
    %v2841 = vld [vmem:[#allocation12 + $0x1c] sm:$0xff]
    %v2842 = vld [vmem:[#allocation12 + $0x24] sm:$0xff]
    %v2843 = vld [vmem:[#allocation12 + $0x2c] sm:$0xff]
    %v2844 = vld [vmem:[#allocation12 + $0x34] sm:$0xf]
    %v2845 = vld [vmem:[#allocation12 + $0x38] sm:$0xff]
    %v2846 = vld [vmem:[#allocation12 + $0x40] sm:$0xff]
    %v2847 = vld [vmem:[#allocation12 + $0x48] sm:$0xff]
    %v2848 = vld [vmem:[#allocation12 + $0x50] sm:$0xf]
    %v2849 = vld [vmem:[#allocation12 + $0x54] sm:$0xff]
    %v2850 = vld [vmem:[#allocation12 + $0x5c] sm:$0xff]
    %v2851 = vld [vmem:[#allocation12 + $0x64] sm:$0xff]
    %v2852 = vld [vmem:[#allocation12 + $0x6c] sm:$0xf]
    %v2853 = vld [vmem:[#allocation12 + $0x70] sm:$0xff]
    %v2854 = vld [vmem:[#allocation12 + $0x78] sm:$0xff]
    %v2855 = vld [vmem:[#allocation12 + $0x80] sm:$0xff]
    %v2856 = vld [vmem:[#allocation12 + $0x88] sm:$0xf]
    %v2857 = vld [vmem:[#allocation12 + $0x8c] sm:$0xff]
    %v2858 = vld [vmem:[#allocation12 + $0x94] sm:$0xff]
    %v2859 = vld [vmem:[#allocation12 + $0x9c] sm:$0xff]
    %v2860 = vld [vmem:[#allocation12 + $0xa4] sm:$0xf]
    %v2861 = vld [vmem:[#allocation12 + $0xa8] sm:$0xff]
    %v2862 = vld [vmem:[#allocation12 + $0xb0] sm:$0xff]
    %v2863 = vld [vmem:[#allocation12 + $0xb8] sm:$0xff]
    %v2864 = vld [vmem:[#allocation12 + $0xc0] sm:$0xf]
    %v2865 = vld [vmem:[#allocation12 + $0xc4] sm:$0xff]
    %v2866 = vld [vmem:[#allocation12 + $0xcc] sm:$0xff]
    %v2867 = vld [vmem:[#allocation12 + $0xd4] sm:$0xff]
    %v2868 = vld [vmem:[#allocation12 + $0xdc] sm:$0xf]
    %v2869 = vld [vmem:[#allocation12 + $0xe0] sm:$0xff]
    %v2870 = vld [vmem:[#allocation12 + $0xe8] sm:$0xff]
    %v2871 = vld [vmem:[#allocation12 + $0xf0] sm:$0xff]
    %v2872 = vld [vmem:[#allocation12 + $0xf8] sm:$0xf]
    %v2873 = vld [vmem:[#allocation12 + $0xfc] sm:$0xff]
    %v2874 = vld [vmem:[#allocation12 + $0x104] sm:$0xff]
    %v2875 = vld [vmem:[#allocation12 + $0x10c] sm:$0xff]
    %v2876 = vld [vmem:[#allocation12 + $0x114] sm:$0xf]
    %v2877 = vld [vmem:[#allocation12 + $0x118] sm:$0xff]
    %v2878 = vld [vmem:[#allocation12 + $0x120] sm:$0xff]
    %v2879 = vld [vmem:[#allocation12 + $0x128] sm:$0xff]
    %v2880 = vld [vmem:[#allocation12 + $0x130] sm:$0xf]
    %v2881 = vld [vmem:[#allocation12 + $0x134] sm:$0xff]
    %v2882 = vld [vmem:[#allocation12 + $0x13c] sm:$0xff]
    %v2883 = vld [vmem:[#allocation12 + $0x144] sm:$0xff]
    %v2884 = vld [vmem:[#allocation12 + $0x14c] sm:$0xf]
    %v2885 = vld [vmem:[#allocation12 + $0x150] sm:$0xff]
    %v2886 = vld [vmem:[#allocation12 + $0x158] sm:$0xff]
    %v2887 = vld [vmem:[#allocation12 + $0x160] sm:$0xff]
    %v2888 = vld [vmem:[#allocation12 + $0x168] sm:$0xf]
    %v2889 = vld [vmem:[#allocation12 + $0x16c] sm:$0xff]
    %v2890 = vld [vmem:[#allocation12 + $0x174] sm:$0xff]
    %v2891 = vld [vmem:[#allocation12 + $0x17c] sm:$0xff]
    %v2892 = vld [vmem:[#allocation12 + $0x184] sm:$0xf]
    %v2893 = vld [vmem:[#allocation12 + $0x188] sm:$0xff]
    %v2894 = vld [vmem:[#allocation12 + $0x190] sm:$0xff]
    %v2895 = vld [vmem:[#allocation12 + $0x198] sm:$0xff]
    %v2896 = vld [vmem:[#allocation12 + $0x1a0] sm:$0xf]
    %v2897 = vld [vmem:[#allocation12 + $0x1a4] sm:$0xff]
    %v2898 = vld [vmem:[#allocation12 + $0x1ac] sm:$0xff]
    %v2899 = vld [vmem:[#allocation12 + $0x1b4] sm:$0xff]
    %v2900 = vld [vmem:[#allocation12 + $0x1bc] sm:$0xf]
    %v2901 = vld [vmem:[#allocation12 + $0x1c0] sm:$0xff]
    %v2902 = vld [vmem:[#allocation12 + $0x1c8] sm:$0xff]
    %v2903 = vld [vmem:[#allocation12 + $0x1d0] sm:$0xff]
    %v2904 = vld [vmem:[#allocation12 + $0x1d8] sm:$0xf]
    %v2905 = vld [vmem:[#allocation12 + $0x1dc] sm:$0xff]
    %v2906 = vld [vmem:[#allocation12 + $0x1e4] sm:$0xff]
    %v2907 = vld [vmem:[#allocation12 + $0x1ec] sm:$0xff]
    %v2908 = vld [vmem:[#allocation12 + $0x1f4] sm:$0xf]
    %v2909 = vld [vmem:[#allocation12 + $0x1f8] sm:$0xff]
    %v2910 = vld [vmem:[#allocation12 + $0x200] sm:$0xff]
    %v2911 = vld [vmem:[#allocation12 + $0x208] sm:$0xff]
    %v2912 = vld [vmem:[#allocation12 + $0x210] sm:$0xf]
    %v2913 = vld [vmem:[#allocation12 + $0x214] sm:$0xff]
    %v2914 = vld [vmem:[#allocation12 + $0x21c] sm:$0xff]
    %v2915 = vld [vmem:[#allocation12 + $0x224] sm:$0xff]
    %v2916 = vld [vmem:[#allocation12 + $0x22c] sm:$0xf]
    %v2917 = vld [vmem:[#allocation12 + $0x230] sm:$0xff]
    %v2918 = vld [vmem:[#allocation12 + $0x238] sm:$0xff]
    %v2919 = vld [vmem:[#allocation12 + $0x240] sm:$0xff]
    %v2920 = vld [vmem:[#allocation12 + $0x248] sm:$0xf]
    %v2921 = vld [vmem:[#allocation12 + $0x24c] sm:$0xff]
    %v2922 = vld [vmem:[#allocation12 + $0x254] sm:$0xff]
    %v2923 = vld [vmem:[#allocation12 + $0x25c] sm:$0xff]
    %v2924 = vld [vmem:[#allocation12 + $0x264] sm:$0xf]
    %v2925 = vld [vmem:[#allocation12 + $0x268] sm:$0xff]
    %v2926 = vld [vmem:[#allocation12 + $0x270] sm:$0xff]
    %v2927 = vld [vmem:[#allocation12 + $0x278] sm:$0xff]
    %v2928 = vld [vmem:[#allocation12 + $0x280] sm:$0xf]
    %v2929 = vld [vmem:[#allocation12 + $0x284] sm:$0xff]
    %v2930 = vld [vmem:[#allocation12 + $0x28c] sm:$0xff]
    %v2931 = vld [vmem:[#allocation12 + $0x294] sm:$0xff]
    %v2932 = vld [vmem:[#allocation12 + $0x29c] sm:$0xf]
    %v2933 = vld [vmem:[#allocation12 + $0x2a0] sm:$0xff]
    %v2934 = vld [vmem:[#allocation12 + $0x2a8] sm:$0xff]
    %v2935 = vld [vmem:[#allocation12 + $0x2b0] sm:$0xff]
    %v2936 = vld [vmem:[#allocation12 + $0x2b8] sm:$0xf]
    %v2937 = vld [vmem:[#allocation12 + $0x2bc] sm:$0xff]
    %v2938 = vld [vmem:[#allocation12 + $0x2c4] sm:$0xff]
    %v2939 = vld [vmem:[#allocation12 + $0x2cc] sm:$0xff]
    %v2940 = vld [vmem:[#allocation12 + $0x2d4] sm:$0xf]
    %v2941 = vld [vmem:[#allocation12 + $0x2d8] sm:$0xff]
    %v2942 = vld [vmem:[#allocation12 + $0x2e0] sm:$0xff]
    %v2943 = vld [vmem:[#allocation12 + $0x2e8] sm:$0xff]
    %v2944 = vld [vmem:[#allocation12 + $0x2f0] sm:$0xf]
    %v2945 = vld [vmem:[#allocation12 + $0x2f4] sm:$0xff]
    %v2946 = vld [vmem:[#allocation12 + $0x2fc] sm:$0xff]
    %v2947 = vld [vmem:[#allocation12 + $0x304] sm:$0xff]
    %v2948 = vld [vmem:[#allocation12 + $0x30c] sm:$0xf]
    %v2949 = vld [vmem:[#allocation12 + $0x310] sm:$0xff]
    %v2950 = vld [vmem:[#allocation12 + $0x318] sm:$0xff]
    %v2951 = vld [vmem:[#allocation12 + $0x320] sm:$0xff]
    %v2952 = vld [vmem:[#allocation12 + $0x328] sm:$0xf]
    %v2953 = vld [vmem:[#allocation12 + $0x32c] sm:$0xff]
    %v2954 = vld [vmem:[#allocation12 + $0x334] sm:$0xff]
    %v2955 = vld [vmem:[#allocation12 + $0x33c] sm:$0xff]
    %v2956 = vld [vmem:[#allocation12 + $0x344] sm:$0xf]
    %v2957 = vld [vmem:[#allocation12 + $0x348] sm:$0xff]
    %v2958 = vld [vmem:[#allocation12 + $0x350] sm:$0xff]
    %v2959 = vld [vmem:[#allocation12 + $0x358] sm:$0xff]
    %v2960 = vld [vmem:[#allocation12 + $0x360] sm:$0xf]
    %v2961 = vld [vmem:[#allocation12 + $0x364] sm:$0xff]
    %v2962 = vld [vmem:[#allocation12 + $0x36c] sm:$0xff]
    %v2963 = vld [vmem:[#allocation12 + $0x374] sm:$0xff]
    %v2964 = vld [vmem:[#allocation12 + $0x37c] sm:$0xf]
    %v2965 = vld [vmem:[#allocation12 + $0x380] sm:$0xff]
    %v2966 = vld [vmem:[#allocation12 + $0x388] sm:$0xff]
    %v2967 = vld [vmem:[#allocation12 + $0x390] sm:$0xff]
    %v2968 = vld [vmem:[#allocation12 + $0x398] sm:$0xf]
    %v2969 = vld [vmem:[#allocation12 + $0x39c] sm:$0xff]
    %v2970 = vld [vmem:[#allocation12 + $0x3a4] sm:$0xff]
    %v2971 = vld [vmem:[#allocation12 + $0x3ac] sm:$0xff]
    %v2972 = vld [vmem:[#allocation12 + $0x3b4] sm:$0xf]
    %v2973 = vld [vmem:[#allocation12 + $0x3b8] sm:$0xff]
    %v2974 = vld [vmem:[#allocation12 + $0x3c0] sm:$0xff]
    %v2975 = vld [vmem:[#allocation12 + $0x3c8] sm:$0xff]
    %v2976 = vld [vmem:[#allocation12 + $0x3d0] sm:$0xf]
    %v2977 = vld [vmem:[#allocation12 + $0x3d4] sm:$0xff]
    %v2978 = vld [vmem:[#allocation12 + $0x3dc] sm:$0xff]
    %v2979 = vld [vmem:[#allocation12 + $0x3e4] sm:$0xff]
    %v2980 = vld [vmem:[#allocation12 + $0x3ec] sm:$0xf]
    %v2981 = vld [vmem:[#allocation12 + $0x3f0] sm:$0xff]
    %v2982 = vld [vmem:[#allocation12 + $0x3f8] sm:$0xff]
    %v2983 = vld [vmem:[#allocation12 + $0x400] sm:$0xff]
    %v2984 = vld [vmem:[#allocation12 + $0x408] sm:$0xf]
    %v2985 = vld [vmem:[#allocation12 + $0x40c] sm:$0xff]
    %v2986 = vld [vmem:[#allocation12 + $0x414] sm:$0xff]
    %v2987 = vld [vmem:[#allocation12 + $0x41c] sm:$0xff]
    %v2988 = vld [vmem:[#allocation12 + $0x424] sm:$0xf]
    %v2989 = vld [vmem:[#allocation12 + $0x428] sm:$0xff]
    %v2990 = vld [vmem:[#allocation12 + $0x430] sm:$0xff]
    %v2991 = vld [vmem:[#allocation12 + $0x438] sm:$0xff]
    %v2992 = vld [vmem:[#allocation12 + $0x440] sm:$0xf]
    %v2993 = vld [vmem:[#allocation12 + $0x444] sm:$0xff]
    %v2994 = vld [vmem:[#allocation12 + $0x44c] sm:$0xff]
    %v2995 = vld [vmem:[#allocation12 + $0x454] sm:$0xff]
    %v2996 = vld [vmem:[#allocation12 + $0x45c] sm:$0xf]
    %v2997 = vld [vmem:[#allocation12 + $0x460] sm:$0xff]
    %v2998 = vld [vmem:[#allocation12 + $0x468] sm:$0xff]
    %v2999 = vld [vmem:[#allocation12 + $0x470] sm:$0xff]
    %v3000 = vld [vmem:[#allocation12 + $0x478] sm:$0xf]
    %v3001 = vld [vmem:[#allocation12 + $0x47c] sm:$0xff]
    %v3002 = vld [vmem:[#allocation12 + $0x484] sm:$0xff]
    %v3003 = vld [vmem:[#allocation12 + $0x48c] sm:$0xff]
    %v3004 = vld [vmem:[#allocation12 + $0x494] sm:$0xf]
    %v3005 = vld [vmem:[#allocation12 + $0x498] sm:$0xff]
    %v3006 = vld [vmem:[#allocation12 + $0x4a0] sm:$0xff]
    %v3007 = vld [vmem:[#allocation12 + $0x4a8] sm:$0xff]
    %v3008 = vld [vmem:[#allocation12 + $0x4b0] sm:$0xf]
    %v3009 = vld [vmem:[#allocation12 + $0x4b4] sm:$0xff]
    %v3010 = vld [vmem:[#allocation12 + $0x4bc] sm:$0xff]
    %v3011 = vld [vmem:[#allocation12 + $0x4c4] sm:$0xff]
    %v3012 = vld [vmem:[#allocation12 + $0x4cc] sm:$0xf]
    %v3013 = vld [vmem:[#allocation12 + $0x4d0] sm:$0xff]
    %v3014 = vld [vmem:[#allocation12 + $0x4d8] sm:$0xff]
    %v3015 = vld [vmem:[#allocation12 + $0x4e0] sm:$0xff]
    %v3016 = vld [vmem:[#allocation12 + $0x4e8] sm:$0xf]
    %v3017 = vld [vmem:[#allocation12 + $0x4ec] sm:$0xff]
    %v3018 = vld [vmem:[#allocation12 + $0x4f4] sm:$0xff]
    %v3019 = vld [vmem:[#allocation12 + $0x4fc] sm:$0xff]
    %v3020 = vld [vmem:[#allocation12 + $0x504] sm:$0xf]
    %v3021 = vld [vmem:[#allocation12 + $0x508] sm:$0xff]
    %v3022 = vld [vmem:[#allocation12 + $0x510] sm:$0xff]
    %v3023 = vld [vmem:[#allocation12 + $0x518] sm:$0xff]
    %v3024 = vld [vmem:[#allocation12 + $0x520] sm:$0xf]
    %v3025 = vld [vmem:[#allocation12 + $0x524] sm:$0xff]
    %v3026 = vld [vmem:[#allocation12 + $0x52c] sm:$0xff]
    %v3027 = vld [vmem:[#allocation12 + $0x534] sm:$0xff]
    %v3028 = vld [vmem:[#allocation12 + $0x53c] sm:$0xf]
    %v3029 = vld [vmem:[#allocation12 + $0x540] sm:$0xff]
    %v3030 = vld [vmem:[#allocation12 + $0x548] sm:$0xff]
    %v3031 = vld [vmem:[#allocation12 + $0x550] sm:$0xff]
    %v3032 = vld [vmem:[#allocation12 + $0x558] sm:$0xf]
    %v3033 = vld [vmem:[#allocation12 + $0x55c] sm:$0xff]
    %v3034 = vld [vmem:[#allocation12 + $0x564] sm:$0xff]
    %v3035 = vld [vmem:[#allocation12 + $0x56c] sm:$0xff]
    %v3036 = vld [vmem:[#allocation12 + $0x574] sm:$0xf]
    %v3037 = vld [vmem:[#allocation12 + $0x578] sm:$0xff]
    %v3038 = vld [vmem:[#allocation12 + $0x580] sm:$0xff]
    %v3039 = vld [vmem:[#allocation12 + $0x588] sm:$0xff]
    %v3040 = vld [vmem:[#allocation12 + $0x590] sm:$0xf]
    %v3041 = vld [vmem:[#allocation12 + $0x594] sm:$0xff]
    %v3042 = vld [vmem:[#allocation12 + $0x59c] sm:$0xff]
    %v3043 = vld [vmem:[#allocation12 + $0x5a4] sm:$0xff]
    %v3044 = vld [vmem:[#allocation12 + $0x5ac] sm:$0xf]
    %v3045 = vld [vmem:[#allocation12 + $0x5b0] sm:$0xff]
    %v3046 = vld [vmem:[#allocation12 + $0x5b8] sm:$0xff]
    %v3047 = vld [vmem:[#allocation12 + $0x5c0] sm:$0xff]
    %v3048 = vld [vmem:[#allocation12 + $0x5c8] sm:$0xf]
    %v3049 = vld [vmem:[#allocation12 + $0x5cc] sm:$0xff]
    %v3050 = vld [vmem:[#allocation12 + $0x5d4] sm:$0xff]
    %v3051 = vld [vmem:[#allocation12 + $0x5dc] sm:$0xff]
    %v3052 = vld [vmem:[#allocation12 + $0x5e4] sm:$0xf]
    %v3053 = vld [vmem:[#allocation12 + $0x5e8] sm:$0xff]
    %v3054 = vld [vmem:[#allocation12 + $0x5f0] sm:$0xff]
    %v3055 = vld [vmem:[#allocation12 + $0x5f8] sm:$0xff]
    %v3056 = vld [vmem:[#allocation12 + $0x600] sm:$0xf]
    %v3057 = vld [vmem:[#allocation12 + $0x604] sm:$0xff]
    %v3058 = vld [vmem:[#allocation12 + $0x60c] sm:$0xff]
    %v3059 = vld [vmem:[#allocation12 + $0x614] sm:$0xff]
    %v3060 = vld [vmem:[#allocation12 + $0x61c] sm:$0xf]
    %v3061 = vld [vmem:[#allocation12 + $0x620] sm:$0xff]
    %v3062 = vld [vmem:[#allocation12 + $0x628] sm:$0xff]
    %v3063 = vld [vmem:[#allocation12 + $0x630] sm:$0xff]
    %v3064 = vld [vmem:[#allocation12 + $0x638] sm:$0xf]
    %v3065 = vld [vmem:[#allocation12 + $0x63c] sm:$0xff]
    %v3066 = vld [vmem:[#allocation12 + $0x644] sm:$0xff]
    %v3067 = vld [vmem:[#allocation12 + $0x64c] sm:$0xff]
    %v3068 = vld [vmem:[#allocation12 + $0x654] sm:$0xf]
    %v3069 = vld [vmem:[#allocation12 + $0x658] sm:$0xff]
    %v3070 = vld [vmem:[#allocation12 + $0x660] sm:$0xff]
    %v3071 = vld [vmem:[#allocation12 + $0x668] sm:$0xff]
    %v3072 = vld [vmem:[#allocation12 + $0x670] sm:$0xf]
    %v3073 = vld [vmem:[#allocation12 + $0x674] sm:$0xff]
    %v3074 = vld [vmem:[#allocation12 + $0x67c] sm:$0xff]
    %v3075 = vld [vmem:[#allocation12 + $0x684] sm:$0xff]
    %v3076 = vld [vmem:[#allocation12 + $0x68c] sm:$0xf]
    %v3077 = vld [vmem:[#allocation12 + $0x690] sm:$0xff]
    %v3078 = vld [vmem:[#allocation12 + $0x698] sm:$0xff]
    %v3079 = vld [vmem:[#allocation12 + $0x6a0] sm:$0xff]
    %v3080 = vld [vmem:[#allocation12 + $0x6a8] sm:$0xf]
    %v3081 = vld [vmem:[#allocation12 + $0x6ac] sm:$0xff]
    %v3082 = vld [vmem:[#allocation12 + $0x6b4] sm:$0xff]
    %v3083 = vld [vmem:[#allocation12 + $0x6bc] sm:$0xff]
    %v3084 = vld [vmem:[#allocation12 + $0x6c4] sm:$0xf]
    %v3085 = vld [vmem:[#allocation12 + $0x6c8] sm:$0xff]
    %v3086 = vld [vmem:[#allocation12 + $0x6d0] sm:$0xff]
    %v3087 = vld [vmem:[#allocation12 + $0x6d8] sm:$0xff]
    %v3088 = vld [vmem:[#allocation12 + $0x6e0] sm:$0xf]
    %v3089 = vld [vmem:[#allocation12 + $0x6e4] sm:$0xff]
    %v3090 = vld [vmem:[#allocation12 + $0x6ec] sm:$0xff]
    %v3091 = vld [vmem:[#allocation12 + $0x6f4] sm:$0xff]
    %v3092 = vld [vmem:[#allocation12 + $0x6fc] sm:$0xf]
    %v3093 = vld [vmem:[%s14] sm:$0xff]
    %v3095 = vlaneseq
    %v3096 = vshrl.u32 %v3095, 7
    %v3097 = vsub.s32 0, %v3096
    %v3098 = vrot.slane %v3093, %v3097
    %v3099 = vlaneseq
    %v3100 = vshrl.u32 %v3099, 7
    %v3101 = vsub.s32 1, %v3100
    %v3102 = vrot.slane %v3093, %v3101
    %v3103 = vlaneseq
    %v3104 = vshrl.u32 %v3103, 7
    %v3105 = vsub.s32 2, %v3104
    %v3106 = vrot.slane %v3093, %v3105
    %v3107 = vlaneseq
    %v3108 = vshrl.u32 %v3107, 7
    %v3109 = vsub.s32 3, %v3108
    %v3110 = vrot.slane %v3093, %v3109
    %v3111 = vlaneseq
    %v3112 = vshrl.u32 %v3111, 7
    %v3113 = vsub.s32 4, %v3112
    %v3114 = vrot.slane %v3093, %v3113
    %v3115 = vlaneseq
    %v3116 = vshrl.u32 %v3115, 7
    %v3117 = vsub.s32 5, %v3116
    %v3118 = vrot.slane %v3093, %v3117
    %v3119 = vlaneseq
    %v3120 = vshrl.u32 %v3119, 7
    %v3121 = vsub.s32 6, %v3120
    %v3122 = vrot.slane %v3093, %v3121
    %v3386 = vunpack.c.l.b16 %v2837
    %v3387 = vunpack.c.h.b16 %v2837
    %v3388 = vunpack.c.l.b16 %v2838
    %v3389 = vunpack.c.h.b16 %v2838
    %v3390 = vunpack.c.l.b16 %v2839
    %v3391 = vunpack.c.h.b16 %v2839
    %v3392 = vunpack.c.l.b16 %v2840
    %v3393 = vunpack.c.l.b16 %v2841
    %v3394 = vunpack.c.h.b16 %v2841
    %v3395 = vunpack.c.l.b16 %v2842
    %v3396 = vunpack.c.h.b16 %v2842
    %v3397 = vunpack.c.l.b16 %v2843
    %v3398 = vunpack.c.h.b16 %v2843
    %v3399 = vunpack.c.l.b16 %v2844
    %v3400 = vunpack.c.l.b16 %v2845
    %v3401 = vunpack.c.h.b16 %v2845
    %v3402 = vunpack.c.l.b16 %v2846
    %v3403 = vunpack.c.h.b16 %v2846
    %v3404 = vunpack.c.l.b16 %v2847
    %v3405 = vunpack.c.h.b16 %v2847
    %v3406 = vunpack.c.l.b16 %v2848
    %v3407 = vunpack.c.l.b16 %v2849
    %v3408 = vunpack.c.h.b16 %v2849
    %v3409 = vunpack.c.l.b16 %v2850
    %v3410 = vunpack.c.h.b16 %v2850
    %v3411 = vunpack.c.l.b16 %v2851
    %v3412 = vunpack.c.h.b16 %v2851
    %v3413 = vunpack.c.l.b16 %v2852
    %v3414 = vunpack.c.l.b16 %v2853
    %v3415 = vunpack.c.h.b16 %v2853
    %v3416 = vunpack.c.l.b16 %v2854
    %v3417 = vunpack.c.h.b16 %v2854
    %v3418 = vunpack.c.l.b16 %v2855
    %v3419 = vunpack.c.h.b16 %v2855
    %v3420 = vunpack.c.l.b16 %v2856
    %v3421 = vunpack.c.l.b16 %v2857
    %v3422 = vunpack.c.h.b16 %v2857
    %v3423 = vunpack.c.l.b16 %v2858
    %v3424 = vunpack.c.h.b16 %v2858
    %v3425 = vunpack.c.l.b16 %v2859
    %v3426 = vunpack.c.h.b16 %v2859
    %v3427 = vunpack.c.l.b16 %v2860
    %v3428 = vunpack.c.l.b16 %v2861
    %v3429 = vunpack.c.h.b16 %v2861
    %v3430 = vunpack.c.l.b16 %v2862
    %v3431 = vunpack.c.h.b16 %v2862
    %v3432 = vunpack.c.l.b16 %v2863
    %v3433 = vunpack.c.h.b16 %v2863
    %v3434 = vunpack.c.l.b16 %v2864
    %v3435 = vunpack.c.l.b16 %v2865
    %v3436 = vunpack.c.h.b16 %v2865
    %v3437 = vunpack.c.l.b16 %v2866
    %v3438 = vunpack.c.h.b16 %v2866
    %v3439 = vunpack.c.l.b16 %v2867
    %v3440 = vunpack.c.h.b16 %v2867
    %v3441 = vunpack.c.l.b16 %v2868
    %v3442 = vunpack.c.l.b16 %v2869
    %v3443 = vunpack.c.h.b16 %v2869
    %v3444 = vunpack.c.l.b16 %v2870
    %v3445 = vunpack.c.h.b16 %v2870
    %v3446 = vunpack.c.l.b16 %v2871
    %v3447 = vunpack.c.h.b16 %v2871
    %v3448 = vunpack.c.l.b16 %v2872
    %v3449 = vunpack.c.l.b16 %v2873
    %v3450 = vunpack.c.h.b16 %v2873
    %v3451 = vunpack.c.l.b16 %v2874
    %v3452 = vunpack.c.h.b16 %v2874
    %v3453 = vunpack.c.l.b16 %v2875
    %v3454 = vunpack.c.h.b16 %v2875
    %v3455 = vunpack.c.l.b16 %v2876
    %v3456 = vunpack.c.l.b16 %v2877
    %v3457 = vunpack.c.h.b16 %v2877
    %v3458 = vunpack.c.l.b16 %v2878
    %v3459 = vunpack.c.h.b16 %v2878
    %v3460 = vunpack.c.l.b16 %v2879
    %v3461 = vunpack.c.h.b16 %v2879
    %v3462 = vunpack.c.l.b16 %v2880
    %v3463 = vunpack.c.l.b16 %v2881
    %v3464 = vunpack.c.h.b16 %v2881
    %v3465 = vunpack.c.l.b16 %v2882
    %v3466 = vunpack.c.h.b16 %v2882
    %v3467 = vunpack.c.l.b16 %v2883
    %v3468 = vunpack.c.h.b16 %v2883
    %v3469 = vunpack.c.l.b16 %v2884
    %v3470 = vunpack.c.l.b16 %v2885
    %v3471 = vunpack.c.h.b16 %v2885
    %v3472 = vunpack.c.l.b16 %v2886
    %v3473 = vunpack.c.h.b16 %v2886
    %v3474 = vunpack.c.l.b16 %v2887
    %v3475 = vunpack.c.h.b16 %v2887
    %v3476 = vunpack.c.l.b16 %v2888
    %v3477 = vunpack.c.l.b16 %v2889
    %v3478 = vunpack.c.h.b16 %v2889
    %v3479 = vunpack.c.l.b16 %v2890
    %v3480 = vunpack.c.h.b16 %v2890
    %v3481 = vunpack.c.l.b16 %v2891
    %v3482 = vunpack.c.h.b16 %v2891
    %v3483 = vunpack.c.l.b16 %v2892
    %v3484 = vunpack.c.l.b16 %v2893
    %v3485 = vunpack.c.h.b16 %v2893
    %v3486 = vunpack.c.l.b16 %v2894
    %v3487 = vunpack.c.h.b16 %v2894
    %v3488 = vunpack.c.l.b16 %v2895
    %v3489 = vunpack.c.h.b16 %v2895
    %v3490 = vunpack.c.l.b16 %v2896
    %v3491 = vunpack.c.l.b16 %v2897
    %v3492 = vunpack.c.h.b16 %v2897
    %v3493 = vunpack.c.l.b16 %v2898
    %v3494 = vunpack.c.h.b16 %v2898
    %v3495 = vunpack.c.l.b16 %v2899
    %v3496 = vunpack.c.h.b16 %v2899
    %v3497 = vunpack.c.l.b16 %v2900
    %v3498 = vunpack.c.l.b16 %v2901
    %v3499 = vunpack.c.h.b16 %v2901
    %v3500 = vunpack.c.l.b16 %v2902
    %v3501 = vunpack.c.h.b16 %v2902
    %v3502 = vunpack.c.l.b16 %v2903
    %v3503 = vunpack.c.h.b16 %v2903
    %v3504 = vunpack.c.l.b16 %v2904
    %v3505 = vunpack.c.l.b16 %v2905
    %v3506 = vunpack.c.h.b16 %v2905
    %v3507 = vunpack.c.l.b16 %v2906
    %v3508 = vunpack.c.h.b16 %v2906
    %v3509 = vunpack.c.l.b16 %v2907
    %v3510 = vunpack.c.h.b16 %v2907
    %v3511 = vunpack.c.l.b16 %v2908
    %v3512 = vunpack.c.l.b16 %v2909
    %v3513 = vunpack.c.h.b16 %v2909
    %v3514 = vunpack.c.l.b16 %v2910
    %v3515 = vunpack.c.h.b16 %v2910
    %v3516 = vunpack.c.l.b16 %v2911
    %v3517 = vunpack.c.h.b16 %v2911
    %v3518 = vunpack.c.l.b16 %v2912
    %v3519 = vunpack.c.l.b16 %v2913
    %v3520 = vunpack.c.h.b16 %v2913
    %v3521 = vunpack.c.l.b16 %v2914
    %v3522 = vunpack.c.h.b16 %v2914
    %v3523 = vunpack.c.l.b16 %v2915
    %v3524 = vunpack.c.h.b16 %v2915
    %v3525 = vunpack.c.l.b16 %v2916
    %v3526 = vunpack.c.l.b16 %v2917
    %v3527 = vunpack.c.h.b16 %v2917
    %v3528 = vunpack.c.l.b16 %v2918
    %v3529 = vunpack.c.h.b16 %v2918
    %v3530 = vunpack.c.l.b16 %v2919
    %v3531 = vunpack.c.h.b16 %v2919
    %v3532 = vunpack.c.l.b16 %v2920
    %v3533 = vunpack.c.l.b16 %v2921
    %v3534 = vunpack.c.h.b16 %v2921
    %v3535 = vunpack.c.l.b16 %v2922
    %v3536 = vunpack.c.h.b16 %v2922
    %v3537 = vunpack.c.l.b16 %v2923
    %v3538 = vunpack.c.h.b16 %v2923
    %v3539 = vunpack.c.l.b16 %v2924
    %v3540 = vunpack.c.l.b16 %v2925
    %v3541 = vunpack.c.h.b16 %v2925
    %v3542 = vunpack.c.l.b16 %v2926
    %v3543 = vunpack.c.h.b16 %v2926
    %v3544 = vunpack.c.l.b16 %v2927
    %v3545 = vunpack.c.h.b16 %v2927
    %v3546 = vunpack.c.l.b16 %v2928
    %v3547 = vunpack.c.l.b16 %v2929
    %v3548 = vunpack.c.h.b16 %v2929
    %v3549 = vunpack.c.l.b16 %v2930
    %v3550 = vunpack.c.h.b16 %v2930
    %v3551 = vunpack.c.l.b16 %v2931
    %v3552 = vunpack.c.h.b16 %v2931
    %v3553 = vunpack.c.l.b16 %v2932
    %v3554 = vunpack.c.l.b16 %v2933
    %v3555 = vunpack.c.h.b16 %v2933
    %v3556 = vunpack.c.l.b16 %v2934
    %v3557 = vunpack.c.h.b16 %v2934
    %v3558 = vunpack.c.l.b16 %v2935
    %v3559 = vunpack.c.h.b16 %v2935
    %v3560 = vunpack.c.l.b16 %v2936
    %v3561 = vunpack.c.l.b16 %v2937
    %v3562 = vunpack.c.h.b16 %v2937
    %v3563 = vunpack.c.l.b16 %v2938
    %v3564 = vunpack.c.h.b16 %v2938
    %v3565 = vunpack.c.l.b16 %v2939
    %v3566 = vunpack.c.h.b16 %v2939
    %v3567 = vunpack.c.l.b16 %v2940
    %v3568 = vunpack.c.l.b16 %v2941
    %v3569 = vunpack.c.h.b16 %v2941
    %v3570 = vunpack.c.l.b16 %v2942
    %v3571 = vunpack.c.h.b16 %v2942
    %v3572 = vunpack.c.l.b16 %v2943
    %v3573 = vunpack.c.h.b16 %v2943
    %v3574 = vunpack.c.l.b16 %v2944
    %v3575 = vunpack.c.l.b16 %v2945
    %v3576 = vunpack.c.h.b16 %v2945
    %v3577 = vunpack.c.l.b16 %v2946
    %v3578 = vunpack.c.h.b16 %v2946
    %v3579 = vunpack.c.l.b16 %v2947
    %v3580 = vunpack.c.h.b16 %v2947
    %v3581 = vunpack.c.l.b16 %v2948
    %v3582 = vunpack.c.l.b16 %v2949
    %v3583 = vunpack.c.h.b16 %v2949
    %v3584 = vunpack.c.l.b16 %v2950
    %v3585 = vunpack.c.h.b16 %v2950
    %v3586 = vunpack.c.l.b16 %v2951
    %v3587 = vunpack.c.h.b16 %v2951
    %v3588 = vunpack.c.l.b16 %v2952
    %v3589 = vunpack.c.l.b16 %v2953
    %v3590 = vunpack.c.h.b16 %v2953
    %v3591 = vunpack.c.l.b16 %v2954
    %v3592 = vunpack.c.h.b16 %v2954
    %v3593 = vunpack.c.l.b16 %v2955
    %v3594 = vunpack.c.h.b16 %v2955
    %v3595 = vunpack.c.l.b16 %v2956
    %v3596 = vunpack.c.l.b16 %v2957
    %v3597 = vunpack.c.h.b16 %v2957
    %v3598 = vunpack.c.l.b16 %v2958
    %v3599 = vunpack.c.h.b16 %v2958
    %v3600 = vunpack.c.l.b16 %v2959
    %v3601 = vunpack.c.h.b16 %v2959
    %v3602 = vunpack.c.l.b16 %v2960
    %v3603 = vunpack.c.l.b16 %v2961
    %v3604 = vunpack.c.h.b16 %v2961
    %v3605 = vunpack.c.l.b16 %v2962
    %v3606 = vunpack.c.h.b16 %v2962
    %v3607 = vunpack.c.l.b16 %v2963
    %v3608 = vunpack.c.h.b16 %v2963
    %v3609 = vunpack.c.l.b16 %v2964
    %v3610 = vunpack.c.l.b16 %v2965
    %v3611 = vunpack.c.h.b16 %v2965
    %v3612 = vunpack.c.l.b16 %v2966
    %v3613 = vunpack.c.h.b16 %v2966
    %v3614 = vunpack.c.l.b16 %v2967
    %v3615 = vunpack.c.h.b16 %v2967
    %v3616 = vunpack.c.l.b16 %v2968
    %v3617 = vunpack.c.l.b16 %v2969
    %v3618 = vunpack.c.h.b16 %v2969
    %v3619 = vunpack.c.l.b16 %v2970
    %v3620 = vunpack.c.h.b16 %v2970
    %v3621 = vunpack.c.l.b16 %v2971
    %v3622 = vunpack.c.h.b16 %v2971
    %v3623 = vunpack.c.l.b16 %v2972
    %v3624 = vunpack.c.l.b16 %v2973
    %v3625 = vunpack.c.h.b16 %v2973
    %v3626 = vunpack.c.l.b16 %v2974
    %v3627 = vunpack.c.h.b16 %v2974
    %v3628 = vunpack.c.l.b16 %v2975
    %v3629 = vunpack.c.h.b16 %v2975
    %v3630 = vunpack.c.l.b16 %v2976
    %v3631 = vunpack.c.l.b16 %v2977
    %v3632 = vunpack.c.h.b16 %v2977
    %v3633 = vunpack.c.l.b16 %v2978
    %v3634 = vunpack.c.h.b16 %v2978
    %v3635 = vunpack.c.l.b16 %v2979
    %v3636 = vunpack.c.h.b16 %v2979
    %v3637 = vunpack.c.l.b16 %v2980
    %v3638 = vunpack.c.l.b16 %v2981
    %v3639 = vunpack.c.h.b16 %v2981
    %v3640 = vunpack.c.l.b16 %v2982
    %v3641 = vunpack.c.h.b16 %v2982
    %v3642 = vunpack.c.l.b16 %v2983
    %v3643 = vunpack.c.h.b16 %v2983
    %v3644 = vunpack.c.l.b16 %v2984
    %v3645 = vunpack.c.l.b16 %v2985
    %v3646 = vunpack.c.h.b16 %v2985
    %v3647 = vunpack.c.l.b16 %v2986
    %v3648 = vunpack.c.h.b16 %v2986
    %v3649 = vunpack.c.l.b16 %v2987
    %v3650 = vunpack.c.h.b16 %v2987
    %v3651 = vunpack.c.l.b16 %v2988
    %v3652 = vunpack.c.l.b16 %v2989
    %v3653 = vunpack.c.h.b16 %v2989
    %v3654 = vunpack.c.l.b16 %v2990
    %v3655 = vunpack.c.h.b16 %v2990
    %v3656 = vunpack.c.l.b16 %v2991
    %v3657 = vunpack.c.h.b16 %v2991
    %v3658 = vunpack.c.l.b16 %v2992
    %v3659 = vunpack.c.l.b16 %v2993
    %v3660 = vunpack.c.h.b16 %v2993
    %v3661 = vunpack.c.l.b16 %v2994
    %v3662 = vunpack.c.h.b16 %v2994
    %v3663 = vunpack.c.l.b16 %v2995
    %v3664 = vunpack.c.h.b16 %v2995
    %v3665 = vunpack.c.l.b16 %v2996
    %v3666 = vunpack.c.l.b16 %v2997
    %v3667 = vunpack.c.h.b16 %v2997
    %v3668 = vunpack.c.l.b16 %v2998
    %v3669 = vunpack.c.h.b16 %v2998
    %v3670 = vunpack.c.l.b16 %v2999
    %v3671 = vunpack.c.h.b16 %v2999
    %v3672 = vunpack.c.l.b16 %v3000
    %v3673 = vunpack.c.l.b16 %v3001
    %v3674 = vunpack.c.h.b16 %v3001
    %v3675 = vunpack.c.l.b16 %v3002
    %v3676 = vunpack.c.h.b16 %v3002
    %v3677 = vunpack.c.l.b16 %v3003
    %v3678 = vunpack.c.h.b16 %v3003
    %v3679 = vunpack.c.l.b16 %v3004
    %v3680 = vunpack.c.l.b16 %v3005
    %v3681 = vunpack.c.h.b16 %v3005
    %v3682 = vunpack.c.l.b16 %v3006
    %v3683 = vunpack.c.h.b16 %v3006
    %v3684 = vunpack.c.l.b16 %v3007
    %v3685 = vunpack.c.h.b16 %v3007
    %v3686 = vunpack.c.l.b16 %v3008
    %v3687 = vunpack.c.l.b16 %v3009
    %v3688 = vunpack.c.h.b16 %v3009
    %v3689 = vunpack.c.l.b16 %v3010
    %v3690 = vunpack.c.h.b16 %v3010
    %v3691 = vunpack.c.l.b16 %v3011
    %v3692 = vunpack.c.h.b16 %v3011
    %v3693 = vunpack.c.l.b16 %v3012
    %v3694 = vunpack.c.l.b16 %v3013
    %v3695 = vunpack.c.h.b16 %v3013
    %v3696 = vunpack.c.l.b16 %v3014
    %v3697 = vunpack.c.h.b16 %v3014
    %v3698 = vunpack.c.l.b16 %v3015
    %v3699 = vunpack.c.h.b16 %v3015
    %v3700 = vunpack.c.l.b16 %v3016
    %v3701 = vunpack.c.l.b16 %v3017
    %v3702 = vunpack.c.h.b16 %v3017
    %v3703 = vunpack.c.l.b16 %v3018
    %v3704 = vunpack.c.h.b16 %v3018
    %v3705 = vunpack.c.l.b16 %v3019
    %v3706 = vunpack.c.h.b16 %v3019
    %v3707 = vunpack.c.l.b16 %v3020
    %v3708 = vunpack.c.l.b16 %v3021
    %v3709 = vunpack.c.h.b16 %v3021
    %v3710 = vunpack.c.l.b16 %v3022
    %v3711 = vunpack.c.h.b16 %v3022
    %v3712 = vunpack.c.l.b16 %v3023
    %v3713 = vunpack.c.h.b16 %v3023
    %v3714 = vunpack.c.l.b16 %v3024
    %v3715 = vunpack.c.l.b16 %v3025
    %v3716 = vunpack.c.h.b16 %v3025
    %v3717 = vunpack.c.l.b16 %v3026
    %v3718 = vunpack.c.h.b16 %v3026
    %v3719 = vunpack.c.l.b16 %v3027
    %v3720 = vunpack.c.h.b16 %v3027
    %v3721 = vunpack.c.l.b16 %v3028
    %v3722 = vunpack.c.l.b16 %v3029
    %v3723 = vunpack.c.h.b16 %v3029
    %v3724 = vunpack.c.l.b16 %v3030
    %v3725 = vunpack.c.h.b16 %v3030
    %v3726 = vunpack.c.l.b16 %v3031
    %v3727 = vunpack.c.h.b16 %v3031
    %v3728 = vunpack.c.l.b16 %v3032
    %v3729 = vunpack.c.l.b16 %v3033
    %v3730 = vunpack.c.h.b16 %v3033
    %v3731 = vunpack.c.l.b16 %v3034
    %v3732 = vunpack.c.h.b16 %v3034
    %v3733 = vunpack.c.l.b16 %v3035
    %v3734 = vunpack.c.h.b16 %v3035
    %v3735 = vunpack.c.l.b16 %v3036
    %v3736 = vunpack.c.l.b16 %v3037
    %v3737 = vunpack.c.h.b16 %v3037
    %v3738 = vunpack.c.l.b16 %v3038
    %v3739 = vunpack.c.h.b16 %v3038
    %v3740 = vunpack.c.l.b16 %v3039
    %v3741 = vunpack.c.h.b16 %v3039
    %v3742 = vunpack.c.l.b16 %v3040
    %v3743 = vunpack.c.l.b16 %v3041
    %v3744 = vunpack.c.h.b16 %v3041
    %v3745 = vunpack.c.l.b16 %v3042
    %v3746 = vunpack.c.h.b16 %v3042
    %v3747 = vunpack.c.l.b16 %v3043
    %v3748 = vunpack.c.h.b16 %v3043
    %v3749 = vunpack.c.l.b16 %v3044
    %v3750 = vunpack.c.l.b16 %v3045
    %v3751 = vunpack.c.h.b16 %v3045
    %v3752 = vunpack.c.l.b16 %v3046
    %v3753 = vunpack.c.h.b16 %v3046
    %v3754 = vunpack.c.l.b16 %v3047
    %v3755 = vunpack.c.h.b16 %v3047
    %v3756 = vunpack.c.l.b16 %v3048
    %v3757 = vunpack.c.l.b16 %v3049
    %v3758 = vunpack.c.h.b16 %v3049
    %v3759 = vunpack.c.l.b16 %v3050
    %v3760 = vunpack.c.h.b16 %v3050
    %v3761 = vunpack.c.l.b16 %v3051
    %v3762 = vunpack.c.h.b16 %v3051
    %v3763 = vunpack.c.l.b16 %v3052
    %v3764 = vunpack.c.l.b16 %v3053
    %v3765 = vunpack.c.h.b16 %v3053
    %v3766 = vunpack.c.l.b16 %v3054
    %v3767 = vunpack.c.h.b16 %v3054
    %v3768 = vunpack.c.l.b16 %v3055
    %v3769 = vunpack.c.h.b16 %v3055
    %v3770 = vunpack.c.l.b16 %v3056
    %v3771 = vunpack.c.l.b16 %v3057
    %v3772 = vunpack.c.h.b16 %v3057
    %v3773 = vunpack.c.l.b16 %v3058
    %v3774 = vunpack.c.h.b16 %v3058
    %v3775 = vunpack.c.l.b16 %v3059
    %v3776 = vunpack.c.h.b16 %v3059
    %v3777 = vunpack.c.l.b16 %v3060
    %v3778 = vunpack.c.l.b16 %v3061
    %v3779 = vunpack.c.h.b16 %v3061
    %v3780 = vunpack.c.l.b16 %v3062
    %v3781 = vunpack.c.h.b16 %v3062
    %v3782 = vunpack.c.l.b16 %v3063
    %v3783 = vunpack.c.h.b16 %v3063
    %v3784 = vunpack.c.l.b16 %v3064
    %v3785 = vunpack.c.l.b16 %v3065
    %v3786 = vunpack.c.h.b16 %v3065
    %v3787 = vunpack.c.l.b16 %v3066
    %v3788 = vunpack.c.h.b16 %v3066
    %v3789 = vunpack.c.l.b16 %v3067
    %v3790 = vunpack.c.h.b16 %v3067
    %v3791 = vunpack.c.l.b16 %v3068
    %v3792 = vunpack.c.l.b16 %v3069
    %v3793 = vunpack.c.h.b16 %v3069
    %v3794 = vunpack.c.l.b16 %v3070
    %v3795 = vunpack.c.h.b16 %v3070
    %v3796 = vunpack.c.l.b16 %v3071
    %v3797 = vunpack.c.h.b16 %v3071
    %v3798 = vunpack.c.l.b16 %v3072
    %v3799 = vunpack.c.l.b16 %v3073
    %v3800 = vunpack.c.h.b16 %v3073
    %v3801 = vunpack.c.l.b16 %v3074
    %v3802 = vunpack.c.h.b16 %v3074
    %v3803 = vunpack.c.l.b16 %v3075
    %v3804 = vunpack.c.h.b16 %v3075
    %v3805 = vunpack.c.l.b16 %v3076
    %v3806 = vunpack.c.l.b16 %v3077
    %v3807 = vunpack.c.h.b16 %v3077
    %v3808 = vunpack.c.l.b16 %v3078
    %v3809 = vunpack.c.h.b16 %v3078
    %v3810 = vunpack.c.l.b16 %v3079
    %v3811 = vunpack.c.h.b16 %v3079
    %v3812 = vunpack.c.l.b16 %v3080
    %v3813 = vunpack.c.l.b16 %v3081
    %v3814 = vunpack.c.h.b16 %v3081
    %v3815 = vunpack.c.l.b16 %v3082
    %v3816 = vunpack.c.h.b16 %v3082
    %v3817 = vunpack.c.l.b16 %v3083
    %v3818 = vunpack.c.h.b16 %v3083
    %v3819 = vunpack.c.l.b16 %v3084
    %v3820 = vunpack.c.l.b16 %v3085
    %v3821 = vunpack.c.h.b16 %v3085
    %v3822 = vunpack.c.l.b16 %v3086
    %v3823 = vunpack.c.h.b16 %v3086
    %v3824 = vunpack.c.l.b16 %v3087
    %v3825 = vunpack.c.h.b16 %v3087
    %v3826 = vunpack.c.l.b16 %v3088
    %v3827 = vunpack.c.l.b16 %v3089
    %v3828 = vunpack.c.h.b16 %v3089
    %v3829 = vunpack.c.l.b16 %v3090
    %v3830 = vunpack.c.h.b16 %v3090
    %v3831 = vunpack.c.l.b16 %v3091
    %v3832 = vunpack.c.h.b16 %v3091
    %v3833 = vunpack.c.l.b16 %v3092
    %v3834 = vpack.c.b16 %v3393, %v3386
    %v3835 = vpack.c.b16 %v3394, %v3387
    %v3836 = vpack.c.b16 %v3395, %v3388
    %v3837 = vpack.c.b16 %v3396, %v3389
    %v3838 = vpack.c.b16 %v3397, %v3390
    %v3839 = vpack.c.b16 %v3398, %v3391
    %v3840 = vpack.c.b16 %v3399, %v3392
    %v3841 = vpack.c.b16 %v3407, %v3400
    %v3842 = vpack.c.b16 %v3408, %v3401
    %v3843 = vpack.c.b16 %v3409, %v3402
    %v3844 = vpack.c.b16 %v3410, %v3403
    %v3845 = vpack.c.b16 %v3411, %v3404
    %v3846 = vpack.c.b16 %v3412, %v3405
    %v3847 = vpack.c.b16 %v3413, %v3406
    %v3848 = vpack.c.b16 %v3421, %v3414
    %v3849 = vpack.c.b16 %v3422, %v3415
    %v3850 = vpack.c.b16 %v3423, %v3416
    %v3851 = vpack.c.b16 %v3424, %v3417
    %v3852 = vpack.c.b16 %v3425, %v3418
    %v3853 = vpack.c.b16 %v3426, %v3419
    %v3854 = vpack.c.b16 %v3427, %v3420
    %v3855 = vpack.c.b16 %v3435, %v3428
    %v3856 = vpack.c.b16 %v3436, %v3429
    %v3857 = vpack.c.b16 %v3437, %v3430
    %v3858 = vpack.c.b16 %v3438, %v3431
    %v3859 = vpack.c.b16 %v3439, %v3432
    %v3860 = vpack.c.b16 %v3440, %v3433
    %v3861 = vpack.c.b16 %v3441, %v3434
    %v3862 = vpack.c.b16 %v3449, %v3442
    %v3863 = vpack.c.b16 %v3450, %v3443
    %v3864 = vpack.c.b16 %v3451, %v3444
    %v3865 = vpack.c.b16 %v3452, %v3445
    %v3866 = vpack.c.b16 %v3453, %v3446
    %v3867 = vpack.c.b16 %v3454, %v3447
    %v3868 = vpack.c.b16 %v3455, %v3448
    %v3869 = vpack.c.b16 %v3463, %v3456
    %v3870 = vpack.c.b16 %v3464, %v3457
    %v3871 = vpack.c.b16 %v3465, %v3458
    %v3872 = vpack.c.b16 %v3466, %v3459
    %v3873 = vpack.c.b16 %v3467, %v3460
    %v3874 = vpack.c.b16 %v3468, %v3461
    %v3875 = vpack.c.b16 %v3469, %v3462
    %v3876 = vpack.c.b16 %v3477, %v3470
    %v3877 = vpack.c.b16 %v3478, %v3471
    %v3878 = vpack.c.b16 %v3479, %v3472
    %v3879 = vpack.c.b16 %v3480, %v3473
    %v3880 = vpack.c.b16 %v3481, %v3474
    %v3881 = vpack.c.b16 %v3482, %v3475
    %v3882 = vpack.c.b16 %v3483, %v3476
    %v3883 = vpack.c.b16 %v3491, %v3484
    %v3884 = vpack.c.b16 %v3492, %v3485
    %v3885 = vpack.c.b16 %v3493, %v3486
    %v3886 = vpack.c.b16 %v3494, %v3487
    %v3887 = vpack.c.b16 %v3495, %v3488
    %v3888 = vpack.c.b16 %v3496, %v3489
    %v3889 = vpack.c.b16 %v3497, %v3490
    %v3890 = vpack.c.b16 %v3505, %v3498
    %v3891 = vpack.c.b16 %v3506, %v3499
    %v3892 = vpack.c.b16 %v3507, %v3500
    %v3893 = vpack.c.b16 %v3508, %v3501
    %v3894 = vpack.c.b16 %v3509, %v3502
    %v3895 = vpack.c.b16 %v3510, %v3503
    %v3896 = vpack.c.b16 %v3511, %v3504
    %v3897 = vpack.c.b16 %v3519, %v3512
    %v3898 = vpack.c.b16 %v3520, %v3513
    %v3899 = vpack.c.b16 %v3521, %v3514
    %v3900 = vpack.c.b16 %v3522, %v3515
    %v3901 = vpack.c.b16 %v3523, %v3516
    %v3902 = vpack.c.b16 %v3524, %v3517
    %v3903 = vpack.c.b16 %v3525, %v3518
    %v3904 = vpack.c.b16 %v3533, %v3526
    %v3905 = vpack.c.b16 %v3534, %v3527
    %v3906 = vpack.c.b16 %v3535, %v3528
    %v3907 = vpack.c.b16 %v3536, %v3529
    %v3908 = vpack.c.b16 %v3537, %v3530
    %v3909 = vpack.c.b16 %v3538, %v3531
    %v3910 = vpack.c.b16 %v3539, %v3532
    %v3911 = vpack.c.b16 %v3547, %v3540
    %v3912 = vpack.c.b16 %v3548, %v3541
    %v3913 = vpack.c.b16 %v3549, %v3542
    %v3914 = vpack.c.b16 %v3550, %v3543
    %v3915 = vpack.c.b16 %v3551, %v3544
    %v3916 = vpack.c.b16 %v3552, %v3545
    %v3917 = vpack.c.b16 %v3553, %v3546
    %v3918 = vpack.c.b16 %v3561, %v3554
    %v3919 = vpack.c.b16 %v3562, %v3555
    %v3920 = vpack.c.b16 %v3563, %v3556
    %v3921 = vpack.c.b16 %v3564, %v3557
    %v3922 = vpack.c.b16 %v3565, %v3558
    %v3923 = vpack.c.b16 %v3566, %v3559
    %v3924 = vpack.c.b16 %v3567, %v3560
    %v3925 = vpack.c.b16 %v3575, %v3568
    %v3926 = vpack.c.b16 %v3576, %v3569
    %v3927 = vpack.c.b16 %v3577, %v3570
    %v3928 = vpack.c.b16 %v3578, %v3571
    %v3929 = vpack.c.b16 %v3579, %v3572
    %v3930 = vpack.c.b16 %v3580, %v3573
    %v3931 = vpack.c.b16 %v3581, %v3574
    %v3932 = vpack.c.b16 %v3589, %v3582
    %v3933 = vpack.c.b16 %v3590, %v3583
    %v3934 = vpack.c.b16 %v3591, %v3584
    %v3935 = vpack.c.b16 %v3592, %v3585
    %v3936 = vpack.c.b16 %v3593, %v3586
    %v3937 = vpack.c.b16 %v3594, %v3587
    %v3938 = vpack.c.b16 %v3595, %v3588
    %v3939 = vpack.c.b16 %v3603, %v3596
    %v3940 = vpack.c.b16 %v3604, %v3597
    %v3941 = vpack.c.b16 %v3605, %v3598
    %v3942 = vpack.c.b16 %v3606, %v3599
    %v3943 = vpack.c.b16 %v3607, %v3600
    %v3944 = vpack.c.b16 %v3608, %v3601
    %v3945 = vpack.c.b16 %v3609, %v3602
    %v3946 = vpack.c.b16 %v3617, %v3610
    %v3947 = vpack.c.b16 %v3618, %v3611
    %v3948 = vpack.c.b16 %v3619, %v3612
    %v3949 = vpack.c.b16 %v3620, %v3613
    %v3950 = vpack.c.b16 %v3621, %v3614
    %v3951 = vpack.c.b16 %v3622, %v3615
    %v3952 = vpack.c.b16 %v3623, %v3616
    %v3953 = vpack.c.b16 %v3631, %v3624
    %v3954 = vpack.c.b16 %v3632, %v3625
    %v3955 = vpack.c.b16 %v3633, %v3626
    %v3956 = vpack.c.b16 %v3634, %v3627
    %v3957 = vpack.c.b16 %v3635, %v3628
    %v3958 = vpack.c.b16 %v3636, %v3629
    %v3959 = vpack.c.b16 %v3637, %v3630
    %v3960 = vpack.c.b16 %v3645, %v3638
    %v3961 = vpack.c.b16 %v3646, %v3639
    %v3962 = vpack.c.b16 %v3647, %v3640
    %v3963 = vpack.c.b16 %v3648, %v3641
    %v3964 = vpack.c.b16 %v3649, %v3642
    %v3965 = vpack.c.b16 %v3650, %v3643
    %v3966 = vpack.c.b16 %v3651, %v3644
    %v3967 = vpack.c.b16 %v3659, %v3652
    %v3968 = vpack.c.b16 %v3660, %v3653
    %v3969 = vpack.c.b16 %v3661, %v3654
    %v3970 = vpack.c.b16 %v3662, %v3655
    %v3971 = vpack.c.b16 %v3663, %v3656
    %v3972 = vpack.c.b16 %v3664, %v3657
    %v3973 = vpack.c.b16 %v3665, %v3658
    %v3974 = vpack.c.b16 %v3673, %v3666
    %v3975 = vpack.c.b16 %v3674, %v3667
    %v3976 = vpack.c.b16 %v3675, %v3668
    %v3977 = vpack.c.b16 %v3676, %v3669
    %v3978 = vpack.c.b16 %v3677, %v3670
    %v3979 = vpack.c.b16 %v3678, %v3671
    %v3980 = vpack.c.b16 %v3679, %v3672
    %v3981 = vpack.c.b16 %v3687, %v3680
    %v3982 = vpack.c.b16 %v3688, %v3681
    %v3983 = vpack.c.b16 %v3689, %v3682
    %v3984 = vpack.c.b16 %v3690, %v3683
    %v3985 = vpack.c.b16 %v3691, %v3684
    %v3986 = vpack.c.b16 %v3692, %v3685
    %v3987 = vpack.c.b16 %v3693, %v3686
    %v3988 = vpack.c.b16 %v3701, %v3694
    %v3989 = vpack.c.b16 %v3702, %v3695
    %v3990 = vpack.c.b16 %v3703, %v3696
    %v3991 = vpack.c.b16 %v3704, %v3697
    %v3992 = vpack.c.b16 %v3705, %v3698
    %v3993 = vpack.c.b16 %v3706, %v3699
    %v3994 = vpack.c.b16 %v3707, %v3700
    %v3995 = vpack.c.b16 %v3715, %v3708
    %v3996 = vpack.c.b16 %v3716, %v3709
    %v3997 = vpack.c.b16 %v3717, %v3710
    %v3998 = vpack.c.b16 %v3718, %v3711
    %v3999 = vpack.c.b16 %v3719, %v3712
    %v4000 = vpack.c.b16 %v3720, %v3713
    %v4001 = vpack.c.b16 %v3721, %v3714
    %v4002 = vpack.c.b16 %v3729, %v3722
    %v4003 = vpack.c.b16 %v3730, %v3723
    %v4004 = vpack.c.b16 %v3731, %v3724
    %v4005 = vpack.c.b16 %v3732, %v3725
    %v4006 = vpack.c.b16 %v3733, %v3726
    %v4007 = vpack.c.b16 %v3734, %v3727
    %v4008 = vpack.c.b16 %v3735, %v3728
    %v4009 = vpack.c.b16 %v3743, %v3736
    %v4010 = vpack.c.b16 %v3744, %v3737
    %v4011 = vpack.c.b16 %v3745, %v3738
    %v4012 = vpack.c.b16 %v3746, %v3739
    %v4013 = vpack.c.b16 %v3747, %v3740
    %v4014 = vpack.c.b16 %v3748, %v3741
    %v4015 = vpack.c.b16 %v3749, %v3742
    %v4016 = vpack.c.b16 %v3757, %v3750
    %v4017 = vpack.c.b16 %v3758, %v3751
    %v4018 = vpack.c.b16 %v3759, %v3752
    %v4019 = vpack.c.b16 %v3760, %v3753
    %v4020 = vpack.c.b16 %v3761, %v3754
    %v4021 = vpack.c.b16 %v3762, %v3755
    %v4022 = vpack.c.b16 %v3763, %v3756
    %v4023 = vpack.c.b16 %v3771, %v3764
    %v4024 = vpack.c.b16 %v3772, %v3765
    %v4025 = vpack.c.b16 %v3773, %v3766
    %v4026 = vpack.c.b16 %v3774, %v3767
    %v4027 = vpack.c.b16 %v3775, %v3768
    %v4028 = vpack.c.b16 %v3776, %v3769
    %v4029 = vpack.c.b16 %v3777, %v3770
    %v4030 = vpack.c.b16 %v3785, %v3778
    %v4031 = vpack.c.b16 %v3786, %v3779
    %v4032 = vpack.c.b16 %v3787, %v3780
    %v4033 = vpack.c.b16 %v3788, %v3781
    %v4034 = vpack.c.b16 %v3789, %v3782
    %v4035 = vpack.c.b16 %v3790, %v3783
    %v4036 = vpack.c.b16 %v3791, %v3784
    %v4037 = vpack.c.b16 %v3799, %v3792
    %v4038 = vpack.c.b16 %v3800, %v3793
    %v4039 = vpack.c.b16 %v3801, %v3794
    %v4040 = vpack.c.b16 %v3802, %v3795
    %v4041 = vpack.c.b16 %v3803, %v3796
    %v4042 = vpack.c.b16 %v3804, %v3797
    %v4043 = vpack.c.b16 %v3805, %v3798
    %v4044 = vpack.c.b16 %v3813, %v3806
    %v4045 = vpack.c.b16 %v3814, %v3807
    %v4046 = vpack.c.b16 %v3815, %v3808
    %v4047 = vpack.c.b16 %v3816, %v3809
    %v4048 = vpack.c.b16 %v3817, %v3810
    %v4049 = vpack.c.b16 %v3818, %v3811
    %v4050 = vpack.c.b16 %v3819, %v3812
    %v4051 = vpack.c.b16 %v3827, %v3820
    %v4052 = vpack.c.b16 %v3828, %v3821
    %v4053 = vpack.c.b16 %v3829, %v3822
    %v4054 = vpack.c.b16 %v3830, %v3823
    %v4055 = vpack.c.b16 %v3831, %v3824
    %v4056 = vpack.c.b16 %v3832, %v3825
    %v4057 = vpack.c.b16 %v3833, %v3826
    %4282 = vmatprep.subr.bf16.mxu0 %v3884
    %4283 = vmatpush1.bf16.msra.mxu0 %v3883
    %4284 = vmatprep.subr.bf16.mxu0 %v3877
    %4285 = vmatpush1.bf16.msra.mxu0 %v3876
    %4286 = vmatprep.subr.bf16.mxu0 %v3870
    %4287 = vmatpush1.bf16.msra.mxu0 %v3869
    %4288 = vmatprep.subr.bf16.mxu0 %v3863
    %4289 = vmatpush1.bf16.msra.mxu0 %v3862
    %4290 = vmatprep.subr.bf16.mxu0 %v3856
    %4291 = vmatpush1.bf16.msra.mxu0 %v3855
    %4292 = vmatprep.subr.bf16.mxu0 %v3849
    %4293 = vmatpush1.bf16.msra.mxu0 %v3848
    %4294 = vmatprep.subr.bf16.mxu0 %v3842
    %4295 = vmatpush1.bf16.msra.mxu0 %v3841
    %4296 = vmatprep.subr.bf16.mxu0 %v3835
    %4297 = vmatpush1.bf16.msra.mxu0 %v3834
    %4298 = vmatprep.subr.bf16.mxu0 %v3940
    %4299 = vmatpush2.bf16.msra.mxu0 %v3939
    %4300 = vmatprep.subr.bf16.mxu0 %v3933
    %4301 = vmatpush2.bf16.msra.mxu0 %v3932
    %4302 = vmatprep.subr.bf16.mxu0 %v3926
    %4303 = vmatpush2.bf16.msra.mxu0 %v3925
    %4304 = vmatprep.subr.bf16.mxu0 %v3919
    %4305 = vmatpush2.bf16.msra.mxu0 %v3918
    %4306 = vmatprep.subr.bf16.mxu0 %v3912
    %4307 = vmatpush2.bf16.msra.mxu0 %v3911
    %4308 = vmatprep.subr.bf16.mxu0 %v3905
    %4309 = vmatpush2.bf16.msra.mxu0 %v3904
    %4310 = vmatprep.subr.bf16.mxu0 %v3898
    %4311 = vmatpush2.bf16.msra.mxu0 %v3897
    %4312 = vmatprep.subr.bf16.mxu0 %v3891
    %4313 = vmatpush2.bf16.msra.mxu0 %v3890
    %4314 = vmatprep.mubr.bf16.mxu0 %v2834
    %4315 = vmatmul.mubr.bf16.gmra.mxu0 %v2833
    %v4316 = vpop.f32.mrf.mxu0
    %v4317 = vadd.f32 %v3098, %v4316
    %v4318 = vpop.f32.mrf.mxu0
    %v4319 = vadd.f32 %v3102, %v4318
    %v4320 = vpop.f32.mrf.mxu0
    %v4321 = vpop.f32.mrf.mxu0
    %4322 = vdwg.mxu0
    %4323 = vmatprep.subr.bf16.mxu0 %v3996
    %4324 = vmatpush1.bf16.msra.mxu0 %v3995
    %4325 = vmatprep.subr.bf16.mxu0 %v3989
    %4326 = vmatpush1.bf16.msra.mxu0 %v3988
    %4327 = vmatprep.subr.bf16.mxu0 %v3982
    %4328 = vmatpush1.bf16.msra.mxu0 %v3981
    %4329 = vmatprep.subr.bf16.mxu0 %v3975
    %4330 = vmatpush1.bf16.msra.mxu0 %v3974
    %4331 = vmatprep.subr.bf16.mxu0 %v3968
    %4332 = vmatpush1.bf16.msra.mxu0 %v3967
    %4333 = vmatprep.subr.bf16.mxu0 %v3961
    %4334 = vmatpush1.bf16.msra.mxu0 %v3960
    %4335 = vmatprep.subr.bf16.mxu0 %v3954
    %4336 = vmatpush1.bf16.msra.mxu0 %v3953
    %4337 = vmatprep.subr.bf16.mxu0 %v3947
    %4338 = vmatpush1.bf16.msra.mxu0 %v3946
    %4339 = vmatprep.subr.bf16.mxu0 %v4052
    %4340 = vmatpush2.bf16.msra.mxu0 %v4051
    %4341 = vmatprep.subr.bf16.mxu0 %v4045
    %4342 = vmatpush2.bf16.msra.mxu0 %v4044
    %4343 = vmatprep.subr.bf16.mxu0 %v4038
    %4344 = vmatpush2.bf16.msra.mxu0 %v4037
    %4345 = vmatprep.subr.bf16.mxu0 %v4031
    %4346 = vmatpush2.bf16.msra.mxu0 %v4030
    %4347 = vmatprep.subr.bf16.mxu0 %v4024
    %4348 = vmatpush2.bf16.msra.mxu0 %v4023
    %4349 = vmatprep.subr.bf16.mxu0 %v4017
    %4350 = vmatpush2.bf16.msra.mxu0 %v4016
    %4351 = vmatprep.subr.bf16.mxu0 %v4010
    %4352 = vmatpush2.bf16.msra.mxu0 %v4009
    %4353 = vmatprep.subr.bf16.mxu0 %v4003
    %4354 = vmatpush2.bf16.msra.mxu0 %v4002
    %4355 = vmatprep.mubr.bf16.mxu0 %v2836
    %4356 = vmatmul.mubr.bf16.gmra.mxu0 %v2835
    %v4357 = vpop.f32.mrf.mxu0
    %v4358 = vadd.f32 %v4317, %v4357
    %v4359 = vpop.f32.mrf.mxu0
    %v4360 = vadd.f32 %v4319, %v4359
    %v4361 = vpop.f32.mrf.mxu0
    %v4362 = vpop.f32.mrf.mxu0
    %4363 = vdwg.mxu0
    %4364 = vmatprep.subr.bf16.mxu0 %v3886
    %4365 = vmatpush1.bf16.msra.mxu0 %v3885
    %4366 = vmatprep.subr.bf16.mxu0 %v3879
    %4367 = vmatpush1.bf16.msra.mxu0 %v3878
    %4368 = vmatprep.subr.bf16.mxu0 %v3872
    %4369 = vmatpush1.bf16.msra.mxu0 %v3871
    %4370 = vmatprep.subr.bf16.mxu0 %v3865
    %4371 = vmatpush1.bf16.msra.mxu0 %v3864
    %4372 = vmatprep.subr.bf16.mxu0 %v3858
    %4373 = vmatpush1.bf16.msra.mxu0 %v3857
    %4374 = vmatprep.subr.bf16.mxu0 %v3851
    %4375 = vmatpush1.bf16.msra.mxu0 %v3850
    %4376 = vmatprep.subr.bf16.mxu0 %v3844
    %4377 = vmatpush1.bf16.msra.mxu0 %v3843
    %4378 = vmatprep.subr.bf16.mxu0 %v3837
    %4379 = vmatpush1.bf16.msra.mxu0 %v3836
    %4380 = vmatprep.subr.bf16.mxu0 %v3942
    %4381 = vmatpush2.bf16.msra.mxu0 %v3941
    %4382 = vmatprep.subr.bf16.mxu0 %v3935
    %4383 = vmatpush2.bf16.msra.mxu0 %v3934
    %4384 = vmatprep.subr.bf16.mxu0 %v3928
    %4385 = vmatpush2.bf16.msra.mxu0 %v3927
    %4386 = vmatprep.subr.bf16.mxu0 %v3921
    %4387 = vmatpush2.bf16.msra.mxu0 %v3920
    %4388 = vmatprep.subr.bf16.mxu0 %v3914
    %4389 = vmatpush2.bf16.msra.mxu0 %v3913
    %4390 = vmatprep.subr.bf16.mxu0 %v3907
    %4391 = vmatpush2.bf16.msra.mxu0 %v3906
    %4392 = vmatprep.subr.bf16.mxu0 %v3900
    %4393 = vmatpush2.bf16.msra.mxu0 %v3899
    %4394 = vmatprep.subr.bf16.mxu0 %v3893
    %4395 = vmatpush2.bf16.msra.mxu0 %v3892
    %4396 = vmatprep.mubr.bf16.mxu0 %v2834
    %4397 = vmatmul.mubr.bf16.gmra.mxu0 %v2833
    %v4398 = vpop.f32.mrf.mxu0
    %v4399 = vadd.f32 %v3106, %v4398
    %v4400 = vpop.f32.mrf.mxu0
    %v4401 = vadd.f32 %v3110, %v4400
    %v4402 = vpop.f32.mrf.mxu0
    %v4403 = vpop.f32.mrf.mxu0
    %4404 = vdwg.mxu0
    %4405 = vmatprep.subr.bf16.mxu0 %v3998
    %4406 = vmatpush1.bf16.msra.mxu0 %v3997
    %4407 = vmatprep.subr.bf16.mxu0 %v3991
    %4408 = vmatpush1.bf16.msra.mxu0 %v3990
    %4409 = vmatprep.subr.bf16.mxu0 %v3984
    %4410 = vmatpush1.bf16.msra.mxu0 %v3983
    %4411 = vmatprep.subr.bf16.mxu0 %v3977
    %4412 = vmatpush1.bf16.msra.mxu0 %v3976
    %4413 = vmatprep.subr.bf16.mxu0 %v3970
    %4414 = vmatpush1.bf16.msra.mxu0 %v3969
    %4415 = vmatprep.subr.bf16.mxu0 %v3963
    %4416 = vmatpush1.bf16.msra.mxu0 %v3962
    %4417 = vmatprep.subr.bf16.mxu0 %v3956
    %4418 = vmatpush1.bf16.msra.mxu0 %v3955
    %4419 = vmatprep.subr.bf16.mxu0 %v3949
    %4420 = vmatpush1.bf16.msra.mxu0 %v3948
    %4421 = vmatprep.subr.bf16.mxu0 %v4054
    %4422 = vmatpush2.bf16.msra.mxu0 %v4053
    %4423 = vmatprep.subr.bf16.mxu0 %v4047
    %4424 = vmatpush2.bf16.msra.mxu0 %v4046
    %4425 = vmatprep.subr.bf16.mxu0 %v4040
    %4426 = vmatpush2.bf16.msra.mxu0 %v4039
    %4427 = vmatprep.subr.bf16.mxu0 %v4033
    %4428 = vmatpush2.bf16.msra.mxu0 %v4032
    %4429 = vmatprep.subr.bf16.mxu0 %v4026
    %4430 = vmatpush2.bf16.msra.mxu0 %v4025
    %4431 = vmatprep.subr.bf16.mxu0 %v4019
    %4432 = vmatpush2.bf16.msra.mxu0 %v4018
    %4433 = vmatprep.subr.bf16.mxu0 %v4012
    %4434 = vmatpush2.bf16.msra.mxu0 %v4011
    %4435 = vmatprep.subr.bf16.mxu0 %v4005
    %4436 = vmatpush2.bf16.msra.mxu0 %v4004
    %4437 = vmatprep.mubr.bf16.mxu0 %v2836
    %4438 = vmatmul.mubr.bf16.gmra.mxu0 %v2835
    %v4439 = vpop.f32.mrf.mxu0
    %v4440 = vadd.f32 %v4399, %v4439
    %v4441 = vpop.f32.mrf.mxu0
    %v4442 = vadd.f32 %v4401, %v4441
    %v4443 = vpop.f32.mrf.mxu0
    %v4444 = vpop.f32.mrf.mxu0
    %4445 = vdwg.mxu0
    %4446 = vmatprep.subr.bf16.mxu0 %v3888
    %4447 = vmatpush1.bf16.msra.mxu0 %v3887
    %4448 = vmatprep.subr.bf16.mxu0 %v3881
    %4449 = vmatpush1.bf16.msra.mxu0 %v3880
    %4450 = vmatprep.subr.bf16.mxu0 %v3874
    %4451 = vmatpush1.bf16.msra.mxu0 %v3873
    %4452 = vmatprep.subr.bf16.mxu0 %v3867
    %4453 = vmatpush1.bf16.msra.mxu0 %v3866
    %4454 = vmatprep.subr.bf16.mxu0 %v3860
    %4455 = vmatpush1.bf16.msra.mxu0 %v3859
    %4456 = vmatprep.subr.bf16.mxu0 %v3853
    %4457 = vmatpush1.bf16.msra.mxu0 %v3852
    %4458 = vmatprep.subr.bf16.mxu0 %v3846
    %4459 = vmatpush1.bf16.msra.mxu0 %v3845
    %4460 = vmatprep.subr.bf16.mxu0 %v3839
    %4461 = vmatpush1.bf16.msra.mxu0 %v3838
    %4462 = vmatprep.subr.bf16.mxu0 %v3944
    %4463 = vmatpush2.bf16.msra.mxu0 %v3943
    %4464 = vmatprep.subr.bf16.mxu0 %v3937
    %4465 = vmatpush2.bf16.msra.mxu0 %v3936
    %4466 = vmatprep.subr.bf16.mxu0 %v3930
    %4467 = vmatpush2.bf16.msra.mxu0 %v3929
    %4468 = vmatprep.subr.bf16.mxu0 %v3923
    %4469 = vmatpush2.bf16.msra.mxu0 %v3922
    %4470 = vmatprep.subr.bf16.mxu0 %v3916
    %4471 = vmatpush2.bf16.msra.mxu0 %v3915
    %4472 = vmatprep.subr.bf16.mxu0 %v3909
    %4473 = vmatpush2.bf16.msra.mxu0 %v3908
    %4474 = vmatprep.subr.bf16.mxu0 %v3902
    %4475 = vmatpush2.bf16.msra.mxu0 %v3901
    %4476 = vmatprep.subr.bf16.mxu0 %v3895
    %4477 = vmatpush2.bf16.msra.mxu0 %v3894
    %4478 = vmatprep.mubr.bf16.mxu0 %v2834
    %4479 = vmatmul.mubr.bf16.gmra.mxu0 %v2833
    %v4480 = vpop.f32.mrf.mxu0
    %v4481 = vadd.f32 %v3114, %v4480
    %v4482 = vpop.f32.mrf.mxu0
    %v4483 = vadd.f32 %v3118, %v4482
    %v4484 = vpop.f32.mrf.mxu0
    %v4485 = vpop.f32.mrf.mxu0
    %4486 = vdwg.mxu0
    %4487 = vmatprep.subr.bf16.mxu0 %v4000
    %4488 = vmatpush1.bf16.msra.mxu0 %v3999
    %4489 = vmatprep.subr.bf16.mxu0 %v3993
    %4490 = vmatpush1.bf16.msra.mxu0 %v3992
    %4491 = vmatprep.subr.bf16.mxu0 %v3986
    %4492 = vmatpush1.bf16.msra.mxu0 %v3985
    %4493 = vmatprep.subr.bf16.mxu0 %v3979
    %4494 = vmatpush1.bf16.msra.mxu0 %v3978
    %4495 = vmatprep.subr.bf16.mxu0 %v3972
    %4496 = vmatpush1.bf16.msra.mxu0 %v3971
    %4497 = vmatprep.subr.bf16.mxu0 %v3965
    %4498 = vmatpush1.bf16.msra.mxu0 %v3964
    %4499 = vmatprep.subr.bf16.mxu0 %v3958
    %4500 = vmatpush1.bf16.msra.mxu0 %v3957
    %4501 = vmatprep.subr.bf16.mxu0 %v3951
    %4502 = vmatpush1.bf16.msra.mxu0 %v3950
    %4503 = vmatprep.subr.bf16.mxu0 %v4056
    %4504 = vmatpush2.bf16.msra.mxu0 %v4055
    %4505 = vmatprep.subr.bf16.mxu0 %v4049
    %4506 = vmatpush2.bf16.msra.mxu0 %v4048
    %4507 = vmatprep.subr.bf16.mxu0 %v4042
    %4508 = vmatpush2.bf16.msra.mxu0 %v4041
    %4509 = vmatprep.subr.bf16.mxu0 %v4035
    %4510 = vmatpush2.bf16.msra.mxu0 %v4034
    %4511 = vmatprep.subr.bf16.mxu0 %v4028
    %4512 = vmatpush2.bf16.msra.mxu0 %v4027
    %4513 = vmatprep.subr.bf16.mxu0 %v4021
    %4514 = vmatpush2.bf16.msra.mxu0 %v4020
    %4515 = vmatprep.subr.bf16.mxu0 %v4014
    %4516 = vmatpush2.bf16.msra.mxu0 %v4013
    %4517 = vmatprep.subr.bf16.mxu0 %v4007
    %4518 = vmatpush2.bf16.msra.mxu0 %v4006
    %4519 = vmatprep.mubr.bf16.mxu0 %v2836
    %4520 = vmatmul.mubr.bf16.gmra.mxu0 %v2835
    %v4521 = vpop.f32.mrf.mxu0
    %v4522 = vadd.f32 %v4481, %v4521
    %v4523 = vpop.f32.mrf.mxu0
    %v4524 = vadd.f32 %v4483, %v4523
    %v4525 = vpop.f32.mrf.mxu0
    %v4526 = vpop.f32.mrf.mxu0
    %4527 = vdwg.mxu0
    %4528 = vmatprep.subr.bf16.mxu0 0
    %4529 = vmatpush1.bf16.msra.mxu0 %v3889
    %4530 = vmatprep.subr.bf16.mxu0 0
    %4531 = vmatpush1.bf16.msra.mxu0 %v3882
    %4532 = vmatprep.subr.bf16.mxu0 0
    %4533 = vmatpush1.bf16.msra.mxu0 %v3875
    %4534 = vmatprep.subr.bf16.mxu0 0
    %4535 = vmatpush1.bf16.msra.mxu0 %v3868
    %4536 = vmatprep.subr.bf16.mxu0 0
    %4537 = vmatpush1.bf16.msra.mxu0 %v3861
    %4538 = vmatprep.subr.bf16.mxu0 0
    %4539 = vmatpush1.bf16.msra.mxu0 %v3854
    %4540 = vmatprep.subr.bf16.mxu0 0
    %4541 = vmatpush1.bf16.msra.mxu0 %v3847
    %4542 = vmatprep.subr.bf16.mxu0 0
    %4543 = vmatpush1.bf16.msra.mxu0 %v3840
    %4544 = vmatprep.subr.bf16.mxu0 0
    %4545 = vmatpush2.bf16.msra.mxu0 %v3945
    %4546 = vmatprep.subr.bf16.mxu0 0
    %4547 = vmatpush2.bf16.msra.mxu0 %v3938
    %4548 = vmatprep.subr.bf16.mxu0 0
    %4549 = vmatpush2.bf16.msra.mxu0 %v3931
    %4550 = vmatprep.subr.bf16.mxu0 0
    %4551 = vmatpush2.bf16.msra.mxu0 %v3924
    %4552 = vmatprep.subr.bf16.mxu0 0
    %4553 = vmatpush2.bf16.msra.mxu0 %v3917
    %4554 = vmatprep.subr.bf16.mxu0 0
    %4555 = vmatpush2.bf16.msra.mxu0 %v3910
    %4556 = vmatprep.subr.bf16.mxu0 0
    %4557 = vmatpush2.bf16.msra.mxu0 %v3903
    %4558 = vmatprep.subr.bf16.mxu0 0
    %4559 = vmatpush2.bf16.msra.mxu0 %v3896
    %4560 = vmatprep.mubr.bf16.mxu0 %v2834
    %4561 = vmatmul.mubr.bf16.gmra.mxu0 %v2833
    %v4562 = vpop.f32.mrf.mxu0
    %v4563 = vadd.f32 %v3122, %v4562
    %v4564 = vpop.f32.mrf.mxu0
    %v4565 = vpop.f32.mrf.mxu0
    %v4566 = vpop.f32.mrf.mxu0
    %4567 = vdwg.mxu0
    %4568 = vmatprep.subr.bf16.mxu0 0
    %4569 = vmatpush1.bf16.msra.mxu0 %v4001
    %4570 = vmatprep.subr.bf16.mxu0 0
    %4571 = vmatpush1.bf16.msra.mxu0 %v3994
    %4572 = vmatprep.subr.bf16.mxu0 0
    %4573 = vmatpush1.bf16.msra.mxu0 %v3987
    %4574 = vmatprep.subr.bf16.mxu0 0
    %4575 = vmatpush1.bf16.msra.mxu0 %v3980
    %4576 = vmatprep.subr.bf16.mxu0 0
    %4577 = vmatpush1.bf16.msra.mxu0 %v3973
    %4578 = vmatprep.subr.bf16.mxu0 0
    %4579 = vmatpush1.bf16.msra.mxu0 %v3966
    %4580 = vmatprep.subr.bf16.mxu0 0
    %4581 = vmatpush1.bf16.msra.mxu0 %v3959
    %4582 = vmatprep.subr.bf16.mxu0 0
    %4583 = vmatpush1.bf16.msra.mxu0 %v3952
    %4584 = vmatprep.subr.bf16.mxu0 0
    %4585 = vmatpush2.bf16.msra.mxu0 %v4057
    %4586 = vmatprep.subr.bf16.mxu0 0
    %4587 = vmatpush2.bf16.msra.mxu0 %v4050
    %4588 = vmatprep.subr.bf16.mxu0 0
    %4589 = vmatpush2.bf16.msra.mxu0 %v4043
    %4590 = vmatprep.subr.bf16.mxu0 0
    %4591 = vmatpush2.bf16.msra.mxu0 %v4036
    %4592 = vmatprep.subr.bf16.mxu0 0
    %4593 = vmatpush2.bf16.msra.mxu0 %v4029
    %4594 = vmatprep.subr.bf16.mxu0 0
    %4595 = vmatpush2.bf16.msra.mxu0 %v4022
    %4596 = vmatprep.subr.bf16.mxu0 0
    %4597 = vmatpush2.bf16.msra.mxu0 %v4015
    %4598 = vmatprep.subr.bf16.mxu0 0
    %4599 = vmatpush2.bf16.msra.mxu0 %v4008
    %4600 = vmatprep.mubr.bf16.mxu0 %v2836
    %4601 = vmatmul.mubr.bf16.gmra.mxu0 %v2835
    %v4602 = vpop.f32.mrf.mxu0
    %v4603 = vadd.f32 %v4563, %v4602
    %v4604 = vpop.f32.mrf.mxu0
    %v4605 = vpop.f32.mrf.mxu0
    %v4606 = vpop.f32.mrf.mxu0
    %4607 = vdwg.mxu0
    %v4608 = vmul.f32 %v4358, 0.5
    %v4609 = vmul.f32 %v4360, 0.5
    %v4610 = vmul.f32 %v4440, 0.5
    %v4611 = vmul.f32 %v4442, 0.5
    %v4612 = vmul.f32 %v4522, 0.5
    %v4613 = vmul.f32 %v4524, 0.5
    %v4614 = vmul.f32 %v4603, 0.5
    %v4615 = vtanh.pop %v4608
    %v4616 = vtanh.pop %v4609
    %v4617 = vtanh.pop %v4610
    %v4618 = vtanh.pop %v4611
    %v4619 = vtanh.pop %v4612
    %v4620 = vtanh.pop %v4613
    %v4621 = vtanh.pop %v4614
    %v4622 = vmul.f32 %v4615, 0.5
    %v4623 = vmul.f32 %v4616, 0.5
    %v4624 = vmul.f32 %v4617, 0.5
    %v4625 = vmul.f32 %v4618, 0.5
    %v4626 = vmul.f32 %v4619, 0.5
    %v4627 = vmul.f32 %v4620, 0.5
    %v4628 = vmul.f32 %v4621, 0.5
    %v4629 = vadd.f32 %v4622, 0.5
    %v4630 = vadd.f32 %v4623, 0.5
    %v4631 = vadd.f32 %v4624, 0.5
    %v4632 = vadd.f32 %v4625, 0.5
    %v4633 = vadd.f32 %v4626, 0.5
    %v4634 = vadd.f32 %v4627, 0.5
    %v4635 = vadd.f32 %v4628, 0.5
    %4636 = vst [vmem:[#allocation14] sm:$0xff] %v4629
    %4637 = vst [vmem:[#allocation14 + $0x8] sm:$0xff] %v4630
    %4638 = vst [vmem:[#allocation14 + $0x10] sm:$0xff] %v4631
    %4639 = vst [vmem:[#allocation14 + $0x18] sm:$0xff] %v4632
    %4640 = vst [vmem:[#allocation14 + $0x20] sm:$0xff] %v4633
    %4641 = vst [vmem:[#allocation14 + $0x28] sm:$0xff] %v4634
    %4642 = vst [vmem:[#allocation14 + $0x30] sm:$0xff] %v4635
    // Predicated region
    $region98: #{tpu_custom_call.1} parent=1 // pred_check
      _
    $region99: #{tpu_custom_call.1} parent=1 // pred_check_branch
      %4644 = sbr.rel (0) target = $region101
    $region100: #{tpu_custom_call.1} parent=1 // pred_region
      %s4646 = ssub.s32 896, 896
      %4647 = vsyncadd [#allocation5], %s4646
      %s4649 = sshll.u32 [#allocation14], 4
      %s4650 = int_to_ptr.vmem [resolvable:$true] %s4649
      %4652 = dma.vmem_to_hbm [thread:$0]  %s4650, 896, %s18, [#allocation5]
    $region101: #{tpu_custom_call.1} parent=1 // pred_fallthru
      _
    // Predicated region
    $region102: #{tpu_custom_call.1} parent=1 // pred_check
      _
    $region103: #{tpu_custom_call.1} parent=1 // pred_check_branch
      %4654 = sbr.rel (0) target = $region105
    $region104: #{tpu_custom_call.1} parent=1 // pred_region
      _
    $region105: #{tpu_custom_call.1} parent=1 // pred_fallthru
      _
    // Predicated region
    $region106: #{tpu_custom_call.1} parent=1 // pred_check
      _
    $region107: #{tpu_custom_call.1} parent=1 // pred_check_branch
      %4656 = sbr.rel (0) target = $region109
    $region108: #{tpu_custom_call.1} parent=1 // pred_region
      %4657 = dma.done [#allocation5], 896
    $region109: #{tpu_custom_call.1} parent=1 // pred_fallthru
      _
    // Predicated region
    $region110: #{tpu_custom_call.1} parent=1 // pred_check
      _
    $region111: #{tpu_custom_call.1} parent=1 // pred_check_branch
      %4659 = sbr.rel (0) target = $region113
    $region112: #{tpu_custom_call.1} parent=1 // pred_region
      _
    $region113: #{tpu_custom_call.1} parent=1 // pred_fallthru
      _
    %4660 = vsyncpa [#allocation4], 1
    %4661 = vsyncpa [#allocation7], 1
    %4662 = vsyncpa [#allocation10], 1
    %4663 = vsyncpa [#allocation13], 1
    %4664 = vsyncpa [#allocation5], 1

</llo_original>
